<compile_context>
chip_gen: v6e
topology: v6e:2x2x1
jax: 0.10.0
libtpu: 0.0.40
codegen_flags: <defaults>
</compile_context>

<pallas_src>
import jax
import jax.numpy as jnp
from jax import lax
from jax.experimental import pallas as pl
from jax.experimental.pallas import tpu as pltpu

GEM_P = 3.0      # GeMPooling default p
GEM_EPS = 1e-6   # GeMPooling clamp eps
BN_EPS = 1e-5    # nn.BatchNorm2d default eps
L2_EPS = 1e-12   # F.normalize default eps


# --------------------------------------------------------------------------- #
# Kernel
# --------------------------------------------------------------------------- #
def _retrival_neck_kernel(x_ref, wfc_ref, bias_ref, wg_ref, wm_ref,
                          concat_ref, cls_ref):
    """x_ref: (TN, C, HW) in the input dtype; weights pre-transposed to (C, out)."""
    inv_hw = 1.0 / x_ref.shape[-1]

    # ---- Pooling over the spatial (lane) axis.  x_ref is indexed separately
    # inside each reduction so the f32 convert fuses into each per-vreg chain
    # instead of materializing one full-tile f32 copy with three consumers. ----
    avg = jnp.sum(x_ref[...].astype(jnp.float32), axis=-1) * inv_hw     # (TN, C)
    mxp = jnp.max(x_ref[...], axis=-1).astype(jnp.float32)              # max is exact in bf16
    xc = jnp.maximum(x_ref[...].astype(jnp.float32), GEM_EPS)           # GeM clamp(min=eps)
    gem_mean = jnp.sum(xc * xc * xc, axis=-1) * inv_hw                  # mean(x^3)
    gem = jnp.exp(jnp.log(gem_mean) * (1.0 / GEM_P))                    # (mean(x^p))^(1/p)
    # NOTE: offloading the two sum-reductions to the MXU (matvec against a ones
    # vector) pads the HW contraction to the MXU tile and costs more MXU cycles
    # than the VALU adds it removes at typical HW sizes, so the sums stay on the
    # VPU.  Re-verify with a bundle dump before changing (v7x especially).

    w_dtype = wfc_ref.dtype

    # ---- Avg branch: inference BatchNorm folded into (wfc, bias) on the host;
    # Dropout(p=0.3) is the identity in eval mode. ----
    cls = jnp.dot(avg.astype(w_dtype), wfc_ref[...],
                  preferred_element_type=jnp.float32) + bias_ref[...]

    # ---- CGD branch ('G' then 'M'): fc -> L2 normalize (rsqrt on the EUP). ----
    gx = jnp.dot(gem.astype(w_dtype), wg_ref[...], preferred_element_type=jnp.float32)
    gx = gx * lax.rsqrt(jnp.maximum(jnp.sum(gx * gx, axis=-1, keepdims=True),
                                    L2_EPS * L2_EPS))
    mx = jnp.dot(mxp.astype(w_dtype), wm_ref[...], preferred_element_type=jnp.float32)
    mx = mx * lax.rsqrt(jnp.maximum(jnp.sum(mx * mx, axis=-1, keepdims=True),
                                    L2_EPS * L2_EPS))

    # Write the two halves straight into the concat output (both halves are
    # lane-aligned whenever out_channels is a multiple of 256) — no concat temp.
    half = gx.shape[-1]
    concat_ref[:, :half] = gx.astype(concat_ref.dtype)
    concat_ref[:, half:] = mx.astype(concat_ref.dtype)
    cls_ref[...] = cls.astype(cls_ref.dtype)


# --------------------------------------------------------------------------- #
# VMEM budgeting / tile selection
# --------------------------------------------------------------------------- #
def _round_up(v, m):
    return -(-v // m) * m


def _sublane_granule(dtype):
    # Sub-32-bit dtypes pack along sublanes: f32 -> 8, bf16 -> 16, int8 -> 32.
    return max(8, 32 // jnp.dtype(dtype).itemsize)


def _vmem_limit_bytes():
    cap = 64 * 1024 * 1024                       # conservative fallback: v7x per-TC
    try:
        info = pltpu.get_tpu_info()
        cap = int(getattr(info, "vmem_capacity_bytes", cap))
    except Exception:
        pass
    # Leave ~25% headroom: ~48 MiB on v7x (64 MiB/TC), ~96 MiB on v5e/v6e (128 MiB).
    return (cap * 3) // 4


def _pick_batch_tile(n, per_row_bytes, fixed_bytes, vmem_limit):
    """Largest legal batch tile whose footprint fits the VMEM budget."""
    # Output block (TN, OUT): TN must be a multiple of 8 or equal the full batch.
    cands = [t for t in range(1, n + 1) if n % t == 0 and (t % 8 == 0 or t == n)]
    fits = [t for t in cands if fixed_bytes + t * per_row_bytes <= vmem_limit]
    if not fits:
        # TODO(synk): for very large heads the single-buffered weights alone can
        # exceed the budget; the out_channels axis would then also need tiling.
        return min(cands)
    best = max(fits)
    # Prefer an even grid length (>= 2) so v7x's two TensorCores stay balanced,
    # as long as it costs at most half the tile size (grid-step overhead ~0.35us).
    even = [t for t in fits if (n // t) % 2 == 0]
    if even and (n // best) % 2 != 0 and 2 * max(even) >= best:
        return max(even)
    return best


# --------------------------------------------------------------------------- #
# Wrapper
# --------------------------------------------------------------------------- #
def retrival_neck(inputs, params, *, batch_tile=None, weight_dtype=None):
    """inputs: list/tuple of one NCHW feature map (mirrors the torch forward).

    weight_dtype: dtype for the fc weights inside the kernel (defaults to the
    activation dtype, so bf16 activations get bf16 weights / bf16 MXU).
    """
    x_nchw = inputs[0]
    N, C, H, W = x_nchw.shape
    HW = H * W
    # Consume NCHW directly: (N, C, H*W) is a free, contiguous reshape — no
    # host-side relayout pass over x.  HW -> lanes, C -> sublanes.
    x3 = x_nchw.reshape(N, C, HW)

    f32 = jnp.float32
    w_dtype = jnp.dtype(weight_dtype) if weight_dtype is not None else x3.dtype

    # Fold inference BatchNorm into the fc weight / bias (host-side, tiny):
    #   bn(avg) = avg * s + (beta - mean * s),   s = gamma * rsqrt(var + eps)
    #   cls     = avg @ (s[:, None] * W^T) + (beta - mean * s) @ W^T
    gamma = params["bn_gamma"].reshape(1, C).astype(f32)
    beta = params["bn_beta"].reshape(1, C).astype(f32)
    mean = params["bn_mean"].reshape(1, C).astype(f32)
    var = params["bn_var"].reshape(1, C).astype(f32)
    s = gamma * lax.rsqrt(var + BN_EPS)                                   # (1, C)
    wfc_t = (params["fc_w"].astype(f32).T * s.reshape(C, 1)).astype(w_dtype)   # (C, OUT)
    bias = ((beta - mean * s) @ params["fc_w"].astype(f32).T).astype(f32)      # (1, OUT)
    wg_t = params["fc_gw"].astype(f32).T.astype(w_dtype)                  # (C, OUT//2)
    wm_t = params["fc_mw"].astype(f32).T.astype(w_dtype)                  # (C, OUT//2)
    out_channels = wfc_t.shape[1]
    half = out_channels // 2

    # --- VMEM budget: single-buffered weights + bias are resident; per batch
    # row account for the double-buffered x tile, ~2x f32 tile of temporaries
    # (upcast / GeM chain) and the double-buffered f32 output tiles, with
    # sublane/lane padding included. ---
    vmem_limit = int(_vmem_limit_bytes())
    sub_w = _sublane_granule(w_dtype)
    w_item = jnp.dtype(w_dtype).itemsize
    fixed_bytes = (_round_up(C, sub_w) * _round_up(out_channels, 128)
                   + 2 * _round_up(C, sub_w) * _round_up(half, 128)) * w_item
    fixed_bytes += 8 * _round_up(out_channels, 128) * 4                   # bias (f32)

    hw_pad = _round_up(HW, 128)
    x_row = _round_up(C, _sublane_granule(x3.dtype)) * hw_pad * x3.dtype.itemsize
    f32_row = _round_up(C, 8) * hw_pad * 4
    out_row = 2 * 2 * _round_up(out_channels, 128) * 4
    per_row_bytes = 2 * x_row + 2 * f32_row + out_row

    if batch_tile is None:
        tn = _pick_batch_tile(N, per_row_bytes, fixed_bytes, vmem_limit)
    else:
        assert N % batch_tile == 0, "batch_tile must divide the batch size"
        tn = batch_tile
    grid = (N // tn,)

    x_spec = pl.BlockSpec((tn, C, HW), lambda i: (i, 0, 0))
    out_specs = (pl.BlockSpec((tn, out_channels), lambda i: (i, 0)),
                 pl.BlockSpec((tn, out_channels), lambda i: (i, 0)))
    out_shape = (jax.ShapeDtypeStruct((N, out_channels), f32),
                 jax.ShapeDtypeStruct((N, out_channels), f32))
    compiler_params = pltpu.CompilerParams(
        dimension_semantics=("parallel",), vmem_limit_bytes=vmem_limit)

    def _param_spec(shape, mode):
        idx = lambda i: (0, 0)
        if mode is None:
            return pl.BlockSpec(shape, idx)
        return pl.BlockSpec(shape, idx, pipeline_mode=mode)

    def _build(single_buffer_params):
        # Grid-invariant operands are fetched once; pl.Buffered(1) makes them
        # single-buffered, halving resident weight VMEM (matters for
        # ResNet-sized heads, e.g. C = OUT = 2048).
        mode = pl.Buffered(1) if single_buffer_params else None
        in_specs = [
            x_spec,                                    # (TN, C, HW), double-buffered
            _param_spec((C, out_channels), mode),      # BN-folded fc weight (C, OUT)
            _param_spec((1, out_channels), mode),      # BN-folded fc bias
            _param_spec((C, half), mode),              # fc_gx weight (C, OUT//2)
            _param_spec((C, half), mode),              # fc_mx weight (C, OUT//2)
        ]
        return pl.pallas_call(
            _retrival_neck_kernel, grid=grid, in_specs=in_specs,
            out_specs=out_specs, out_shape=out_shape,
            compiler_params=compiler_params)

    args = (x3, wfc_t, bias, wg_t, wm_t)
    try:
        concatx, cls_x = _build(True)(*args)
    except Exception:
        # Safety net for JAX versions without BlockSpec.pipeline_mode /
        # pl.Buffered(1): fall back to default double-buffered params.
        concatx, cls_x = _build(False)(*args)
    return [concatx, cls_x]


# --------------------------------------------------------------------------- #
# Pure-JAX reference (mirrors the torch forward in eval mode)
# --------------------------------------------------------------------------- #
def reference(inputs, params):
    x = inputs[0]
    N, C, H, W = x.shape
    x = x.reshape(N, C, -1).astype(jnp.float32)
    avg = x.mean(-1)
    mxp = x.max(-1)
    gem = (jnp.clip(x, GEM_EPS, None) ** GEM_P).mean(-1) ** (1.0 / GEM_P)
    bn = ((avg - params["bn_mean"]) / jnp.sqrt(params["bn_var"] + BN_EPS)
          * params["bn_gamma"] + params["bn_beta"])
    cls = bn @ params["fc_w"].T
    gx = gem @ params["fc_gw"].T
    gx = gx / jnp.maximum(jnp.linalg.norm(gx, axis=1, keepdims=True), L2_EPS)
    mx = mxp @ params["fc_mw"].T
    mx = mx / jnp.maximum(jnp.linalg.norm(mx, axis=1, keepdims=True), L2_EPS)
    return [jnp.concatenate([gx, mx], axis=1), cls]


if __name__ == "__main__":
    key = jax.random.PRNGKey(0)
    N, C, H, W = 16, 32, 8, 8     # batch, in_channels, spatial (small test)
    OUT = 16                      # out_channels (divisible by len(['G','M']))

    k = jax.random.split(key, 8)
    x = jax.random.normal(k[0], (N, C, H, W), jnp.float32)

    # Deterministic synthetic parameters (shapes follow the module __init__).
    params = dict(
        bn_gamma=1.0 + 0.1 * jax.random.normal(k[1], (1, C), jnp.float32),
        bn_beta=0.05 * jax.random.normal(k[2], (1, C), jnp.float32),
        bn_mean=0.1 * jax.random.normal(k[3], (1, C), jnp.float32),
        bn_var=jnp.abs(jax.random.normal(k[4], (1, C), jnp.float32)) + 0.5,
        fc_w=0.02 * jax.random.normal(k[5], (OUT, C), jnp.float32),        # nn.Linear(C, OUT, bias=False)
        fc_gw=0.02 * jax.random.normal(k[6], (OUT // 2, C), jnp.float32),  # fc_gx
        fc_mw=0.02 * jax.random.normal(k[7], (OUT // 2, C), jnp.float32),  # fc_mx
    )

    # Explicit batch_tile=8 -> grid=(2,): exercises the pipelined multi-tile path.
    outs = retrival_neck([x], params, batch_tile=8)
    jax.block_until_ready(outs)
    # VMEM-budget-driven auto tile selection path.
    outs_auto = retrival_neck([x], params)
    jax.block_until_ready(outs_auto)

    ref_concat, ref_cls = reference([x], params)
    for got in (outs, outs_auto):
        assert jnp.allclose(got[0], ref_concat, atol=1e-5, rtol=1e-5), "concatx mismatch"
        assert jnp.allclose(got[1], ref_cls, atol=1e-5, rtol=1e-5), "cls_x mismatch"
    print("KERNEL_OK")
</pallas_src>

<mosaic_0001>
module attributes {stable_mosaic.version = 11 : i64} {
  func.func @_retrival_neck_kernel(%arg0: i32, %arg1: memref<8x32x64xf32, #tpu.memory_space<vmem>>, %arg2: memref<32x16xf32, #tpu.memory_space<vmem>>, %arg3: memref<1x16xf32, #tpu.memory_space<vmem>>, %arg4: memref<32x8xf32, #tpu.memory_space<vmem>>, %arg5: memref<32x8xf32, #tpu.memory_space<vmem>>, %arg6: memref<8x16xf32, #tpu.memory_space<vmem>>, %arg7: memref<8x16xf32, #tpu.memory_space<vmem>>) attributes {dimension_semantics = [#tpu.dimension_semantics<parallel>], iteration_bounds = array<i64: 2>, scalar_prefetch = 0 : i64, scratch_operands = 0 : i64, tpu.core_type = #tpu.core_type<tc>, window_params = [{transform_indices = @transform_0, window_bounds = array<i64: 8, 32, 64>}, {pipeline_mode = #tpu.pipeline_mode<synchronous>, transform_indices = @transform_1, window_bounds = array<i64: 32, 16>}, {pipeline_mode = #tpu.pipeline_mode<synchronous>, transform_indices = @transform_2, window_bounds = array<i64: 1, 16>}, {pipeline_mode = #tpu.pipeline_mode<synchronous>, transform_indices = @transform_3, window_bounds = array<i64: 32, 8>}, {pipeline_mode = #tpu.pipeline_mode<synchronous>, transform_indices = @transform_4, window_bounds = array<i64: 32, 8>}, {transform_indices = @transform_5, window_bounds = array<i64: 8, 16>}, {transform_indices = @transform_6, window_bounds = array<i64: 8, 16>}]} {
    %c0 = arith.constant 0 : index
    %c0_0 = arith.constant 0 : index
    %c0_1 = arith.constant 0 : index
    %0 = vector.load %arg1[%c0, %c0_0, %c0_1] : memref<8x32x64xf32, #tpu.memory_space<vmem>>, vector<8x32x64xf32>
    %cst = arith.constant dense<0.000000e+00> : vector<8x32xf32>
    %1 = vector.multi_reduction <add>, %0, %cst [2] : vector<8x32x64xf32> to vector<8x32xf32>
    %cst_2 = arith.constant 1.562500e-02 : f32
    %2 = vector.broadcast %cst_2 : f32 to vector<8x32xf32>
    %3 = arith.mulf %1, %2 : vector<8x32xf32>
    %c0_3 = arith.constant 0 : index
    %c0_4 = arith.constant 0 : index
    %c0_5 = arith.constant 0 : index
    %4 = vector.load %arg1[%c0_3, %c0_4, %c0_5] : memref<8x32x64xf32, #tpu.memory_space<vmem>>, vector<8x32x64xf32>
    %cst_6 = arith.constant dense<0xFF800000> : vector<8x32xf32>
    %5 = vector.multi_reduction <maximumf>, %4, %cst_6 [2] : vector<8x32x64xf32> to vector<8x32xf32>
    %c0_7 = arith.constant 0 : index
    %c0_8 = arith.constant 0 : index
    %c0_9 = arith.constant 0 : index
    %6 = vector.load %arg1[%c0_7, %c0_8, %c0_9] : memref<8x32x64xf32, #tpu.memory_space<vmem>>, vector<8x32x64xf32>
    %cst_10 = arith.constant 9.99999997E-7 : f32
    %7 = vector.broadcast %cst_10 : f32 to vector<8x32x64xf32>
    %8 = arith.maximumf %6, %7 : vector<8x32x64xf32>
    %9 = arith.mulf %8, %8 : vector<8x32x64xf32>
    %10 = arith.mulf %9, %8 : vector<8x32x64xf32>
    %cst_11 = arith.constant dense<0.000000e+00> : vector<8x32xf32>
    %11 = vector.multi_reduction <add>, %10, %cst_11 [2] : vector<8x32x64xf32> to vector<8x32xf32>
    %cst_12 = arith.constant 1.562500e-02 : f32
    %12 = vector.broadcast %cst_12 : f32 to vector<8x32xf32>
    %13 = arith.mulf %11, %12 : vector<8x32xf32>
    %14 = math.log %13 : vector<8x32xf32>
    %cst_13 = arith.constant 0.333333343 : f32
    %15 = vector.broadcast %cst_13 : f32 to vector<8x32xf32>
    %16 = arith.mulf %14, %15 : vector<8x32xf32>
    %17 = math.exp %16 : vector<8x32xf32>
    %c0_14 = arith.constant 0 : index
    %c0_15 = arith.constant 0 : index
    %18 = vector.load %arg2[%c0_14, %c0_15] : memref<32x16xf32, #tpu.memory_space<vmem>>, vector<32x16xf32>
    %cst_16 = arith.constant dense<0.000000e+00> : vector<8x16xf32>
    %19 = tpu.matmul %3, %18, %cst_16 {dimension_numbers = #tpu.dot_dimension_numbers<[1], [0], [0], [1], [0, 0, 1, 1], [], []>} : vector<8x32xf32>, vector<32x16xf32>, vector<8x16xf32> -> vector<8x16xf32>
    %c0_17 = arith.constant 0 : index
    %c0_18 = arith.constant 0 : index
    %20 = vector.load %arg3[%c0_17, %c0_18] : memref<1x16xf32, #tpu.memory_space<vmem>>, vector<1x16xf32>
    %21 = vector.broadcast %20 : vector<1x16xf32> to vector<8x16xf32>
    %22 = arith.addf %19, %21 : vector<8x16xf32>
    %c0_19 = arith.constant 0 : index
    %c0_20 = arith.constant 0 : index
    %23 = vector.load %arg4[%c0_19, %c0_20] : memref<32x8xf32, #tpu.memory_space<vmem>>, vector<32x8xf32>
    %cst_21 = arith.constant dense<0.000000e+00> : vector<8x8xf32>
    %24 = tpu.matmul %17, %23, %cst_21 {dimension_numbers = #tpu.dot_dimension_numbers<[1], [0], [0], [1], [0, 0, 1, 1], [], []>} : vector<8x32xf32>, vector<32x8xf32>, vector<8x8xf32> -> vector<8x8xf32>
    %25 = arith.mulf %24, %24 : vector<8x8xf32>
    %cst_22 = arith.constant dense<0.000000e+00> : vector<8xf32>
    %26 = vector.multi_reduction <add>, %25, %cst_22 [1] : vector<8x8xf32> to vector<8xf32>
    %27 = vector.shape_cast %26 : vector<8xf32> to vector<8x1xf32>
    %cst_23 = arith.constant 1.000000e-24 : f32
    %28 = vector.broadcast %cst_23 : f32 to vector<8x1xf32>
    %29 = arith.maximumf %27, %28 : vector<8x1xf32>
    %30 = math.rsqrt %29 : vector<8x1xf32>
    %31 = vector.broadcast %30 : vector<8x1xf32> to vector<8x8xf32>
    %32 = arith.mulf %24, %31 : vector<8x8xf32>
    %c0_24 = arith.constant 0 : index
    %c0_25 = arith.constant 0 : index
    %33 = vector.load %arg5[%c0_24, %c0_25] : memref<32x8xf32, #tpu.memory_space<vmem>>, vector<32x8xf32>
    %cst_26 = arith.constant dense<0.000000e+00> : vector<8x8xf32>
    %34 = tpu.matmul %5, %33, %cst_26 {dimension_numbers = #tpu.dot_dimension_numbers<[1], [0], [0], [1], [0, 0, 1, 1], [], []>} : vector<8x32xf32>, vector<32x8xf32>, vector<8x8xf32> -> vector<8x8xf32>
    %35 = arith.mulf %34, %34 : vector<8x8xf32>
    %cst_27 = arith.constant dense<0.000000e+00> : vector<8xf32>
    %36 = vector.multi_reduction <add>, %35, %cst_27 [1] : vector<8x8xf32> to vector<8xf32>
    %37 = vector.shape_cast %36 : vector<8xf32> to vector<8x1xf32>
    %cst_28 = arith.constant 1.000000e-24 : f32
    %38 = vector.broadcast %cst_28 : f32 to vector<8x1xf32>
    %39 = arith.maximumf %37, %38 : vector<8x1xf32>
    %40 = math.rsqrt %39 : vector<8x1xf32>
    %41 = vector.broadcast %40 : vector<8x1xf32> to vector<8x8xf32>
    %42 = arith.mulf %34, %41 : vector<8x8xf32>
    %c0_29 = arith.constant 0 : index
    %c0_30 = arith.constant 0 : index
    %43 = vector.load %arg6[%c0_29, %c0_30] : memref<8x16xf32, #tpu.memory_space<vmem>>, vector<8x8xf32>
    tpu.vector_store %arg6[%c0_29, %c0_30], %32 {strides = array<i32>} : memref<8x16xf32, #tpu.memory_space<vmem>>, vector<8x8xf32>,
    %c0_31 = arith.constant 0 : index
    %c8 = arith.constant 8 : index
    %44 = vector.load %arg6[%c0_31, %c8] : memref<8x16xf32, #tpu.memory_space<vmem>>, vector<8x8xf32>
    tpu.vector_store %arg6[%c0_31, %c8], %42 {strides = array<i32>} : memref<8x16xf32, #tpu.memory_space<vmem>>, vector<8x8xf32>,
    %c0_32 = arith.constant 0 : index
    %c0_33 = arith.constant 0 : index
    %45 = vector.load %arg7[%c0_32, %c0_33] : memref<8x16xf32, #tpu.memory_space<vmem>>, vector<8x16xf32>
    tpu.vector_store %arg7[%c0_32, %c0_33], %22 {strides = array<i32>} : memref<8x16xf32, #tpu.memory_space<vmem>>, vector<8x16xf32>,
    return
  }
  func.func @transform_0(%arg0: i32) -> (i32, i32, i32) {
    %c0_i32 = arith.constant 0 : i32
    %c0_i32_0 = arith.constant 0 : i32
    %c0_i32_1 = arith.constant 0 : i32
    return %arg0, %c0_i32, %c0_i32_0 : i32, i32, i32
  }
  func.func @transform_1(%arg0: i32) -> (i32, i32) {
    %c0_i32 = arith.constant 0 : i32
    %c0_i32_0 = arith.constant 0 : i32
    %c0_i32_1 = arith.constant 0 : i32
    return %c0_i32, %c0_i32_0 : i32, i32
  }
  func.func @transform_2(%arg0: i32) -> (i32, i32) {
    %c0_i32 = arith.constant 0 : i32
    %c0_i32_0 = arith.constant 0 : i32
    %c0_i32_1 = arith.constant 0 : i32
    return %c0_i32, %c0_i32_0 : i32, i32
  }
  func.func @transform_3(%arg0: i32) -> (i32, i32) {
    %c0_i32 = arith.constant 0 : i32
    %c0_i32_0 = arith.constant 0 : i32
    %c0_i32_1 = arith.constant 0 : i32
    return %c0_i32, %c0_i32_0 : i32, i32
  }
  func.func @transform_4(%arg0: i32) -> (i32, i32) {
    %c0_i32 = arith.constant 0 : i32
    %c0_i32_0 = arith.constant 0 : i32
    %c0_i32_1 = arith.constant 0 : i32
    return %c0_i32, %c0_i32_0 : i32, i32
  }
  func.func @transform_5(%arg0: i32) -> (i32, i32) {
    %c0_i32 = arith.constant 0 : i32
    %c0_i32_0 = arith.constant 0 : i32
    return %arg0, %c0_i32 : i32, i32
  }
  func.func @transform_6(%arg0: i32) -> (i32, i32) {
    %c0_i32 = arith.constant 0 : i32
    %c0_i32_0 = arith.constant 0 : i32
    return %arg0, %c0_i32 : i32, i32
  }
}

module attributes {stable_mosaic.version = 11 : i64} {
  func.func @_retrival_neck_kernel(%arg0: i32, %arg1: memref<8x32x64xf32, #tpu.memory_space<vmem>>, %arg2: memref<32x16xf32, #tpu.memory_space<vmem>>, %arg3: memref<1x16xf32, #tpu.memory_space<vmem>>, %arg4: memref<32x8xf32, #tpu.memory_space<vmem>>, %arg5: memref<32x8xf32, #tpu.memory_space<vmem>>, %arg6: memref<8x16xf32, #tpu.memory_space<vmem>>, %arg7: memref<8x16xf32, #tpu.memory_space<vmem>>) attributes {dimension_semantics = [#tpu.dimension_semantics<parallel>], iteration_bounds = array<i64: 2>, scalar_prefetch = 0 : i64, scratch_operands = 0 : i64, tpu.core_type = #tpu.core_type<tc>, window_params = [{transform_indices = @transform_0, window_bounds = array<i64: 8, 32, 64>}, {pipeline_mode = #tpu.pipeline_mode<synchronous>, transform_indices = @transform_1, window_bounds = array<i64: 32, 16>}, {pipeline_mode = #tpu.pipeline_mode<synchronous>, transform_indices = @transform_2, window_bounds = array<i64: 1, 16>}, {pipeline_mode = #tpu.pipeline_mode<synchronous>, transform_indices = @transform_3, window_bounds = array<i64: 32, 8>}, {pipeline_mode = #tpu.pipeline_mode<synchronous>, transform_indices = @transform_4, window_bounds = array<i64: 32, 8>}, {transform_indices = @transform_5, window_bounds = array<i64: 8, 16>}, {transform_indices = @transform_6, window_bounds = array<i64: 8, 16>}]} {
    %c0 = arith.constant 0 : index
    %c0_0 = arith.constant 0 : index
    %c0_1 = arith.constant 0 : index
    %0 = vector.load %arg1[%c0, %c0_0, %c0_1] : memref<8x32x64xf32, #tpu.memory_space<vmem>>, vector<8x32x64xf32>
    %cst = arith.constant dense<0.000000e+00> : vector<8x32xf32>
    %1 = vector.multi_reduction <add>, %0, %cst [2] : vector<8x32x64xf32> to vector<8x32xf32>
    %cst_2 = arith.constant 1.562500e-02 : f32
    %2 = vector.broadcast %cst_2 : f32 to vector<8x32xf32>
    %3 = arith.mulf %1, %2 : vector<8x32xf32>
    %c0_3 = arith.constant 0 : index
    %c0_4 = arith.constant 0 : index
    %c0_5 = arith.constant 0 : index
    %4 = vector.load %arg1[%c0_3, %c0_4, %c0_5] : memref<8x32x64xf32, #tpu.memory_space<vmem>>, vector<8x32x64xf32>
    %cst_6 = arith.constant dense<0xFF800000> : vector<8x32xf32>
    %5 = vector.multi_reduction <maximumf>, %4, %cst_6 [2] : vector<8x32x64xf32> to vector<8x32xf32>
    %c0_7 = arith.constant 0 : index
    %c0_8 = arith.constant 0 : index
    %c0_9 = arith.constant 0 : index
    %6 = vector.load %arg1[%c0_7, %c0_8, %c0_9] : memref<8x32x64xf32, #tpu.memory_space<vmem>>, vector<8x32x64xf32>
    %cst_10 = arith.constant 9.99999997E-7 : f32
    %7 = vector.broadcast %cst_10 : f32 to vector<8x32x64xf32>
    %8 = arith.maximumf %6, %7 : vector<8x32x64xf32>
    %9 = arith.mulf %8, %8 : vector<8x32x64xf32>
    %10 = arith.mulf %9, %8 : vector<8x32x64xf32>
    %cst_11 = arith.constant dense<0.000000e+00> : vector<8x32xf32>
    %11 = vector.multi_reduction <add>, %10, %cst_11 [2] : vector<8x32x64xf32> to vector<8x32xf32>
    %cst_12 = arith.constant 1.562500e-02 : f32
    %12 = vector.broadcast %cst_12 : f32 to vector<8x32xf32>
    %13 = arith.mulf %11, %12 : vector<8x32xf32>
    %14 = math.log %13 : vector<8x32xf32>
    %cst_13 = arith.constant 0.333333343 : f32
    %15 = vector.broadcast %cst_13 : f32 to vector<8x32xf32>
    %16 = arith.mulf %14, %15 : vector<8x32xf32>
    %17 = math.exp %16 : vector<8x32xf32>
    %c0_14 = arith.constant 0 : index
    %c0_15 = arith.constant 0 : index
    %18 = vector.load %arg2[%c0_14, %c0_15] : memref<32x16xf32, #tpu.memory_space<vmem>>, vector<32x16xf32>
    %cst_16 = arith.constant dense<0.000000e+00> : vector<8x16xf32>
    %19 = tpu.matmul %3, %18, %cst_16 {dimension_numbers = #tpu.dot_dimension_numbers<[1], [0], [0], [1], [0, 0, 1, 1], [], []>} : vector<8x32xf32>, vector<32x16xf32>, vector<8x16xf32> -> vector<8x16xf32>
    %c0_17 = arith.constant 0 : index
    %c0_18 = arith.constant 0 : index
    %20 = vector.load %arg3[%c0_17, %c0_18] : memref<1x16xf32, #tpu.memory_space<vmem>>, vector<1x16xf32>
    %21 = vector.broadcast %20 : vector<1x16xf32> to vector<8x16xf32>
    %22 = arith.addf %19, %21 : vector<8x16xf32>
    %c0_19 = arith.constant 0 : index
    %c0_20 = arith.constant 0 : index
    %23 = vector.load %arg4[%c0_19, %c0_20] : memref<32x8xf32, #tpu.memory_space<vmem>>, vector<32x8xf32>
    %cst_21 = arith.constant dense<0.000000e+00> : vector<8x8xf32>
    %24 = tpu.matmul %17, %23, %cst_21 {dimension_numbers = #tpu.dot_dimension_numbers<[1], [0], [0], [1], [0, 0, 1, 1], [], []>} : vector<8x32xf32>, vector<32x8xf32>, vector<8x8xf32> -> vector<8x8xf32>
    %25 = arith.mulf %24, %24 : vector<8x8xf32>
    %cst_22 = arith.constant dense<0.000000e+00> : vector<8xf32>
    %26 = vector.multi_reduction <add>, %25, %cst_22 [1] : vector<8x8xf32> to vector<8xf32>
    %27 = vector.shape_cast %26 : vector<8xf32> to vector<8x1xf32>
    %cst_23 = arith.constant 1.000000e-24 : f32
    %28 = vector.broadcast %cst_23 : f32 to vector<8x1xf32>
    %29 = arith.maximumf %27, %28 : vector<8x1xf32>
    %30 = math.rsqrt %29 : vector<8x1xf32>
    %31 = vector.broadcast %30 : vector<8x1xf32> to vector<8x8xf32>
    %32 = arith.mulf %24, %31 : vector<8x8xf32>
    %c0_24 = arith.constant 0 : index
    %c0_25 = arith.constant 0 : index
    %33 = vector.load %arg5[%c0_24, %c0_25] : memref<32x8xf32, #tpu.memory_space<vmem>>, vector<32x8xf32>
    %cst_26 = arith.constant dense<0.000000e+00> : vector<8x8xf32>
    %34 = tpu.matmul %5, %33, %cst_26 {dimension_numbers = #tpu.dot_dimension_numbers<[1], [0], [0], [1], [0, 0, 1, 1], [], []>} : vector<8x32xf32>, vector<32x8xf32>, vector<8x8xf32> -> vector<8x8xf32>
    %35 = arith.mulf %34, %34 : vector<8x8xf32>
    %cst_27 = arith.constant dense<0.000000e+00> : vector<8xf32>
    %36 = vector.multi_reduction <add>, %35, %cst_27 [1] : vector<8x8xf32> to vector<8xf32>
    %37 = vector.shape_cast %36 : vector<8xf32> to vector<8x1xf32>
    %cst_28 = arith.constant 1.000000e-24 : f32
    %38 = vector.broadcast %cst_28 : f32 to vector<8x1xf32>
    %39 = arith.maximumf %37, %38 : vector<8x1xf32>
    %40 = math.rsqrt %39 : vector<8x1xf32>
    %41 = vector.broadcast %40 : vector<8x1xf32> to vector<8x8xf32>
    %42 = arith.mulf %34, %41 : vector<8x8xf32>
    %c0_29 = arith.constant 0 : index
    %c0_30 = arith.constant 0 : index
    %43 = vector.load %arg6[%c0_29, %c0_30] : memref<8x16xf32, #tpu.memory_space<vmem>>, vector<8x8xf32>
    tpu.vector_store %arg6[%c0_29, %c0_30], %32 {strides = array<i32>} : memref<8x16xf32, #tpu.memory_space<vmem>>, vector<8x8xf32>,
    %c0_31 = arith.constant 0 : index
    %c8 = arith.constant 8 : index
    %44 = vector.load %arg6[%c0_31, %c8] : memref<8x16xf32, #tpu.memory_space<vmem>>, vector<8x8xf32>
    tpu.vector_store %arg6[%c0_31, %c8], %42 {strides = array<i32>} : memref<8x16xf32, #tpu.memory_space<vmem>>, vector<8x8xf32>,
    %c0_32 = arith.constant 0 : index
    %c0_33 = arith.constant 0 : index
    %45 = vector.load %arg7[%c0_32, %c0_33] : memref<8x16xf32, #tpu.memory_space<vmem>>, vector<8x16xf32>
    tpu.vector_store %arg7[%c0_32, %c0_33], %22 {strides = array<i32>} : memref<8x16xf32, #tpu.memory_space<vmem>>, vector<8x16xf32>,
    return
  }
  func.func @transform_0(%arg0: i32) -> (i32, i32, i32) {
    %c0_i32 = arith.constant 0 : i32
    %c0_i32_0 = arith.constant 0 : i32
    %c0_i32_1 = arith.constant 0 : i32
    return %arg0, %c0_i32, %c0_i32_0 : i32, i32, i32
  }
  func.func @transform_1(%arg0: i32) -> (i32, i32) {
    %c0_i32 = arith.constant 0 : i32
    %c0_i32_0 = arith.constant 0 : i32
    %c0_i32_1 = arith.constant 0 : i32
    return %c0_i32, %c0_i32_0 : i32, i32
  }
  func.func @transform_2(%arg0: i32) -> (i32, i32) {
    %c0_i32 = arith.constant 0 : i32
    %c0_i32_0 = arith.constant 0 : i32
    %c0_i32_1 = arith.constant 0 : i32
    return %c0_i32, %c0_i32_0 : i32, i32
  }
  func.func @transform_3(%arg0: i32) -> (i32, i32) {
    %c0_i32 = arith.constant 0 : i32
    %c0_i32_0 = arith.constant 0 : i32
    %c0_i32_1 = arith.constant 0 : i32
    return %c0_i32, %c0_i32_0 : i32, i32
  }
  func.func @transform_4(%arg0: i32) -> (i32, i32) {
    %c0_i32 = arith.constant 0 : i32
    %c0_i32_0 = arith.constant 0 : i32
    %c0_i32_1 = arith.constant 0 : i32
    return %c0_i32, %c0_i32_0 : i32, i32
  }
  func.func @transform_5(%arg0: i32) -> (i32, i32) {
    %c0_i32 = arith.constant 0 : i32
    %c0_i32_0 = arith.constant 0 : i32
    return %arg0, %c0_i32 : i32, i32
  }
  func.func @transform_6(%arg0: i32) -> (i32, i32) {
    %c0_i32 = arith.constant 0 : i32
    %c0_i32_0 = arith.constant 0 : i32
    return %arg0, %c0_i32 : i32, i32
  }
}

</mosaic_0001>

<llo_original>
// kernel: tpu_custom_call.1
$region0: #{tpu_custom_call.1}
  #allocation0 [shape = 'u32[]', space=smem, size = 0x4, offset = 0x4, fixed_abs, tag = 'smem constant byte address 0x4 - core index']
  #allocation1 [shape = 'u32[144,128]{1,0:T(1,128)}', space=vmem, size = 0x12000, scoped, tag = 'internal scratch']
  %s0 = inlined_call_operand.hbm [shape: f32[16,32,64], index: 0, kind: input, shape index: {}]
  %s1 = inlined_call_operand.vmem [shape: f32[32,16], index: 1, kind: input, shape index: {}]
  %s2 = inlined_call_operand.vmem [shape: f32[1,16], index: 2, kind: input, shape index: {}]
  %s3 = inlined_call_operand.vmem [shape: f32[32,8], index: 3, kind: input, shape index: {}]
  %s4 = inlined_call_operand.vmem [shape: f32[32,8], index: 4, kind: input, shape index: {}]
  %s5 = inlined_call_operand.hbm [shape: f32[16,16], index: 5, kind: output, shape index: {0}]
  %s6 = inlined_call_operand.hbm [shape: f32[16,16], index: 6, kind: output, shape index: {1}]
  %7 = xla_tuple %s5, %s6
  %s8 = sld [smem:[#allocation0]]
  $region65: #{tpu_custom_call.1} parent=0
    _
  %s10 = ssub.s32 1, %s8
  %s11 = scalar_select 0, %s10, %s8
  $region1: #{tpu_custom_call.1} parent=0
    #allocation2 [shape = 'u8[262144]{0}', space=vmem, size = 0x40000, scoped, tag = 'input window, operand 0']
    #allocation3 [shape = 's32[2]{0}', space=sflag, size = 0x8, scoped, tag = 'scoped memory for tpu_custom_call.1']
    #allocation4 [shape = 's32[2]{0}', space=sflag, size = 0x8, scoped, tag = 'scoped memory for tpu_custom_call.1']
    #allocation5 [shape = 'u8[8192]{0}', space=vmem, size = 0x2000, scoped, tag = 'output window, operand 0']
    #allocation6 [shape = 'u8[8192]{0}', space=vmem, size = 0x2000, scoped, tag = 'output window, operand 1']
    #allocation7 [shape = 's32[2]{0}', space=sflag, size = 0x8, scoped, tag = 'scoped memory for tpu_custom_call.1']
    %12 = vsyncpa [#allocation3], 0
    %s13 = scalar_lea.sflag [#allocation3], 1
    %14 = vsyncpa %s13, 0
    %15 = vsyncpa [#allocation4], 0
    %s16 = scalar_lea.sflag [#allocation4], 1
    %17 = vsyncpa %s16, 0
    %18 = vsyncpa [#allocation7], 0
    %s19 = scalar_lea.sflag [#allocation7], 1
    %20 = vsyncpa %s19, 0
    loop: start=0, step=1, limit=4
    $region2: #{tpu_custom_call.1} parent=1 // loop_pre_header
      _
    $region3: #{tpu_custom_call.1} parent=1 // loop_header
      %s22 = sphi 0, %s26
      %p23 = scmp.ge.s32.totalorder %s22, 4
      %s32 = sphi 0, %s34
      %s35 = sphi 0, %s32
      %s36 = sphi 0, %s35
      %s52 = sphi 0, %s36
      %s56 = sphi 0, %s56
      %s58 = sphi 0, %s56
      %s59 = sphi 0, %s58
      %s73 = sphi 0, %s59
      %s77 = sphi 0, %s77
      %s79 = sphi 0, %s77
      %s80 = sphi 0, %s79
      %s94 = sphi 0, %s80
      %s98 = sphi 0, %s98
      %s100 = sphi 0, %s98
      %s101 = sphi 0, %s100
      %s115 = sphi 0, %s101
      %s119 = sphi 0, %s119
      %s121 = sphi 0, %s119
      %s122 = sphi 0, %s121
      %s136 = sphi 0, %s122
      %s142 = sphi 0, %s144
      %s145 = sphi 0, %s142
      %s146 = sphi 0, %s145
      %s162 = sphi 0, %s146
      %s168 = sphi 0, %s170
      %s171 = sphi 0, %s168
      %s172 = sphi 0, %s171
      %s188 = sphi 0, %s172
    $region4: #{tpu_custom_call.1} parent=1 // loop_header_branch
      %25 = sbr.rel (%p23) target = $region8
    $region5: #{tpu_custom_call.1} parent=1 // loop_body
      %s27 = ssub.s32 %s22, 1
      %s28 = ssub.s32 %s22, 2
      %s29 = sadd.s32 %s22, 1
      %s30 = ssub.s32 %s22, %s29
      %p31 = scmp.eq.s32.totalorder %s30, 0
      %s33 = sadd.s32 %s32, 1
      %s34 = scalar_select %p31, %s32, %s33
      %p37 = pneg %p31
      %p38 = scmp.eq.s32.totalorder %s22, 1
      %p39 = por %p37, %p38
      %p40 = scmp.ne.s32.totalorder %s32, %s35
      %p41 = scmp.eq.s32.totalorder %s22, 0
      %p42 = por %p40, %p41
      %p43 = scmp.ne.s32.totalorder %s32, %s35
      %p44 = scmp.eq.s32.totalorder %s27, 1
      %p45 = por %p43, %p44
      %p46 = scmp.ne.s32.totalorder %s35, %s36
      %p47 = scmp.eq.s32.totalorder %s27, 0
      %p48 = por %p46, %p47
      %p49 = scmp.ne.s32.totalorder %s35, %s36
      %p50 = scmp.eq.s32.totalorder %s28, 1
      %p51 = por %p49, %p50
      %p53 = scmp.ne.s32.totalorder %s36, %s52
      %p54 = scmp.eq.s32.totalorder %s28, 0
      %p55 = por %p53, %p54
      %s57 = sadd.s32 %s56, 1
      %p60 = scmp.eq.s32.totalorder %s22, 1
      %p61 = scmp.ne.s32.totalorder %s56, %s58
      %p62 = scmp.eq.s32.totalorder %s22, 0
      %p63 = por %p61, %p62
      %p64 = scmp.ne.s32.totalorder %s56, %s58
      %p65 = scmp.eq.s32.totalorder %s27, 1
      %p66 = por %p64, %p65
      %p67 = scmp.ne.s32.totalorder %s58, %s59
      %p68 = scmp.eq.s32.totalorder %s27, 0
      %p69 = por %p67, %p68
      %p70 = scmp.ne.s32.totalorder %s58, %s59
      %p71 = scmp.eq.s32.totalorder %s28, 1
      %p72 = por %p70, %p71
      %p74 = scmp.ne.s32.totalorder %s59, %s73
      %p75 = scmp.eq.s32.totalorder %s28, 0
      %p76 = por %p74, %p75
      %s78 = sadd.s32 %s77, 1
      %p81 = scmp.eq.s32.totalorder %s22, 1
      %p82 = scmp.ne.s32.totalorder %s77, %s79
      %p83 = scmp.eq.s32.totalorder %s22, 0
      %p84 = por %p82, %p83
      %p85 = scmp.ne.s32.totalorder %s77, %s79
      %p86 = scmp.eq.s32.totalorder %s27, 1
      %p87 = por %p85, %p86
      %p88 = scmp.ne.s32.totalorder %s79, %s80
      %p89 = scmp.eq.s32.totalorder %s27, 0
      %p90 = por %p88, %p89
      %p91 = scmp.ne.s32.totalorder %s79, %s80
      %p92 = scmp.eq.s32.totalorder %s28, 1
      %p93 = por %p91, %p92
      %p95 = scmp.ne.s32.totalorder %s80, %s94
      %p96 = scmp.eq.s32.totalorder %s28, 0
      %p97 = por %p95, %p96
      %s99 = sadd.s32 %s98, 1
      %p102 = scmp.eq.s32.totalorder %s22, 1
      %p103 = scmp.ne.s32.totalorder %s98, %s100
      %p104 = scmp.eq.s32.totalorder %s22, 0
      %p105 = por %p103, %p104
      %p106 = scmp.ne.s32.totalorder %s98, %s100
      %p107 = scmp.eq.s32.totalorder %s27, 1
      %p108 = por %p106, %p107
      %p109 = scmp.ne.s32.totalorder %s100, %s101
      %p110 = scmp.eq.s32.totalorder %s27, 0
      %p111 = por %p109, %p110
      %p112 = scmp.ne.s32.totalorder %s100, %s101
      %p113 = scmp.eq.s32.totalorder %s28, 1
      %p114 = por %p112, %p113
      %p116 = scmp.ne.s32.totalorder %s101, %s115
      %p117 = scmp.eq.s32.totalorder %s28, 0
      %p118 = por %p116, %p117
      %s120 = sadd.s32 %s119, 1
      %p123 = scmp.eq.s32.totalorder %s22, 1
      %p124 = scmp.ne.s32.totalorder %s119, %s121
      %p125 = scmp.eq.s32.totalorder %s22, 0
      %p126 = por %p124, %p125
      %p127 = scmp.ne.s32.totalorder %s119, %s121
      %p128 = scmp.eq.s32.totalorder %s27, 1
      %p129 = por %p127, %p128
      %p130 = scmp.ne.s32.totalorder %s121, %s122
      %p131 = scmp.eq.s32.totalorder %s27, 0
      %p132 = por %p130, %p131
      %p133 = scmp.ne.s32.totalorder %s121, %s122
      %p134 = scmp.eq.s32.totalorder %s28, 1
      %p135 = por %p133, %p134
      %p137 = scmp.ne.s32.totalorder %s122, %s136
      %p138 = scmp.eq.s32.totalorder %s28, 0
      %p139 = por %p137, %p138
      %s140 = ssub.s32 %s22, %s29
      %p141 = scmp.eq.s32.totalorder %s140, 0
      %s143 = sadd.s32 %s142, 1
      %s144 = scalar_select %p141, %s142, %s143
      %p147 = pneg %p141
      %p148 = scmp.eq.s32.totalorder %s22, 1
      %p149 = por %p147, %p148
      %p150 = scmp.ne.s32.totalorder %s142, %s145
      %p151 = scmp.eq.s32.totalorder %s22, 0
      %p152 = por %p150, %p151
      %p153 = scmp.ne.s32.totalorder %s142, %s145
      %p154 = scmp.eq.s32.totalorder %s27, 1
      %p155 = por %p153, %p154
      %p156 = scmp.ne.s32.totalorder %s145, %s146
      %p157 = scmp.eq.s32.totalorder %s27, 0
      %p158 = por %p156, %p157
      %p159 = scmp.ne.s32.totalorder %s145, %s146
      %p160 = scmp.eq.s32.totalorder %s28, 1
      %p161 = por %p159, %p160
      %p163 = scmp.ne.s32.totalorder %s146, %s162
      %p164 = scmp.eq.s32.totalorder %s28, 0
      %p165 = por %p163, %p164
      %s166 = ssub.s32 %s22, %s29
      %p167 = scmp.eq.s32.totalorder %s166, 0
      %s169 = sadd.s32 %s168, 1
      %s170 = scalar_select %p167, %s168, %s169
      %p173 = pneg %p167
      %p174 = scmp.eq.s32.totalorder %s22, 1
      %p175 = por %p173, %p174
      %p176 = scmp.ne.s32.totalorder %s168, %s171
      %p177 = scmp.eq.s32.totalorder %s22, 0
      %p178 = por %p176, %p177
      %p179 = scmp.ne.s32.totalorder %s168, %s171
      %p180 = scmp.eq.s32.totalorder %s27, 1
      %p181 = por %p179, %p180
      %p182 = scmp.ne.s32.totalorder %s171, %s172
      %p183 = scmp.eq.s32.totalorder %s27, 0
      %p184 = por %p182, %p183
      %p185 = scmp.ne.s32.totalorder %s171, %s172
      %p186 = scmp.eq.s32.totalorder %s28, 1
      %p187 = por %p185, %p186
      %p189 = scmp.ne.s32.totalorder %s172, %s188
      %p190 = scmp.eq.s32.totalorder %s28, 0
      %p191 = por %p189, %p190
      %p192 = scmp.le.s32.totalorder 1, %s22
      %p193 = scmp.lt.s32.totalorder %s22, 3
      %p194 = pnand %p192, %p193
      %p195 = pneg %p194
      // Predicated region
      $region9: #{tpu_custom_call.1} parent=5 // pred_check
        _
      $region10: #{tpu_custom_call.1} parent=5 // pred_check_branch
        %197 = sbr.rel (%p194) target = $region12
      $region11: #{tpu_custom_call.1} parent=5 // pred_region
        %s198 = ssub.s32 %s22, 1
        // Predicated region
        $region13: #{tpu_custom_call.1} parent=11 // pred_check
          %p199 = pneg %p69
        $region14: #{tpu_custom_call.1} parent=11 // pred_check_branch
          %201 = sbr.rel (%p199) target = $region16
        $region15: #{tpu_custom_call.1} parent=11 // pred_region
          _
        $region16: #{tpu_custom_call.1} parent=11 // pred_fallthru
          _
        // Predicated region
        $region17: #{tpu_custom_call.1} parent=11 // pred_check
          %p202 = pneg %p90
        $region18: #{tpu_custom_call.1} parent=11 // pred_check_branch
          %204 = sbr.rel (%p202) target = $region20
        $region19: #{tpu_custom_call.1} parent=11 // pred_region
          _
        $region20: #{tpu_custom_call.1} parent=11 // pred_fallthru
          _
        // Predicated region
        $region21: #{tpu_custom_call.1} parent=11 // pred_check
          %p205 = pneg %p111
        $region22: #{tpu_custom_call.1} parent=11 // pred_check_branch
          %207 = sbr.rel (%p205) target = $region24
        $region23: #{tpu_custom_call.1} parent=11 // pred_region
          _
        $region24: #{tpu_custom_call.1} parent=11 // pred_fallthru
          _
        // Predicated region
        $region25: #{tpu_custom_call.1} parent=11 // pred_check
          %p208 = pneg %p132
        $region26: #{tpu_custom_call.1} parent=11 // pred_check_branch
          %210 = sbr.rel (%p208) target = $region28
        $region27: #{tpu_custom_call.1} parent=11 // pred_region
          _
        $region28: #{tpu_custom_call.1} parent=11 // pred_fallthru
          _
      $region12: #{tpu_custom_call.1} parent=5 // pred_fallthru
        _
      %p211 = scmp.lt.s32.totalorder %s22, 2
      // Predicated region
      $region29: #{tpu_custom_call.1} parent=5 // pred_check
        %p212 = pneg %p211
      $region30: #{tpu_custom_call.1} parent=5 // pred_check_branch
        %214 = sbr.rel (%p212) target = $region32
      $region31: #{tpu_custom_call.1} parent=5 // pred_region
        // Predicated region
        $region33: #{tpu_custom_call.1} parent=31 // pred_check
          %p215 = pneg %p42
        $region34: #{tpu_custom_call.1} parent=31 // pred_check_branch
          %217 = sbr.rel (%p215) target = $region36
        $region35: #{tpu_custom_call.1} parent=31 // pred_region
          %s218 = sand.u32 %s32, 1
          %s219 = scalar_lea.sflag [#allocation3], %s218
          %s220 = sand.u32 %s32, 1
          %s221 = smul.addr %s220, 256
          %s222 = scalar_lea.vmem [#allocation2], %s221
          %s223 = smul.u32 8, %s22
          %s225 = ssub.s32 4096, 4096
          %226 = vsyncadd %s219, %s225
          %s227 = smul.addr %s223, 4
          %s228 = smul.addr %s227, 128
          %s229 = scalar_lea.hbm %s0, %s228
          %s230 = sshll.u32 %s222, 4
          %s231 = int_to_ptr.vmem [resolvable:$true] %s230
          %236 = dma.hbm_to_vmem [thread:$0]  %s229, 4096, %s231, %s219, 128, 128, 8
        $region36: #{tpu_custom_call.1} parent=31 // pred_fallthru
          _
      $region32: #{tpu_custom_call.1} parent=5 // pred_fallthru
        _
      %p237 = scmp.le.s32.totalorder 1, %s22
      %p238 = scmp.lt.s32.totalorder %s22, 3
      %p239 = pnand %p237, %p238
      %p240 = pneg %p239
      // Predicated region
      $region37: #{tpu_custom_call.1} parent=5 // pred_check
        _
      $region38: #{tpu_custom_call.1} parent=5 // pred_check_branch
        %242 = sbr.rel (%p239) target = $region40
      $region39: #{tpu_custom_call.1} parent=5 // pred_region
        %s243 = ssub.s32 %s22, 1
        %s244 = sand.u32 %s35, 1
        %s245 = scalar_lea.sflag [#allocation3], %s244
        %s246 = sand.u32 %s35, 1
        %s247 = smul.addr %s246, 256
        %s248 = scalar_lea.vmem [#allocation2], %s247
        // Predicated region
        $region41: #{tpu_custom_call.1} parent=39 // pred_check
          %p249 = pneg %p48
        $region42: #{tpu_custom_call.1} parent=39 // pred_check_branch
          %251 = sbr.rel (%p249) target = $region44
        $region43: #{tpu_custom_call.1} parent=39 // pred_region
          %252 = dma.done %s245, 4096
        $region44: #{tpu_custom_call.1} parent=39 // pred_fallthru
          _
        %s253 = sand.u32 %s35, 1
        %s254 = scalar_lea.sflag [#allocation3], %s253
        %s255 = sand.u32 %s35, 1
        %s256 = smul.addr %s255, 256
        %s257 = scalar_lea.vmem [#allocation2], %s256
        %p258 = pneg %p48
        %p259 = pneg %p45
        %p260 = pneg %p69
        %p261 = pneg %p66
        %p262 = pneg %p90
        %p263 = pneg %p87
        %p264 = pneg %p111
        %p265 = pneg %p108
        %p266 = pneg %p132
        %p267 = pneg %p129
        %p268 = pneg %p158
        %p269 = pneg %p155
        %s270 = sand.u32 %s145, 1
        %s271 = scalar_lea.sflag [#allocation4], %s270
        %s272 = sand.u32 %s145, 1
        %s273 = smul.addr %s272, 8
        %s274 = scalar_lea.vmem [#allocation5], %s273
        %p275 = pneg %p184
        %p276 = pneg %p181
        %s277 = sand.u32 %s171, 1
        %s278 = scalar_lea.sflag [#allocation7], %s277
        %s279 = sand.u32 %s171, 1
        %s280 = smul.addr %s279, 8
        %s281 = scalar_lea.vmem [#allocation6], %s280
        %s282 = smul.u32 8, %s27
        %v283 = vld [vmem:[%s248] sm:$0xff]
        %v284 = vld [vmem:[%s248 + $0x8] sm:$0xff]
        %v285 = vld [vmem:[%s248 + $0x10] sm:$0xff]
        %v286 = vld [vmem:[%s248 + $0x18] sm:$0xff]
        %v287 = vld [vmem:[%s248 + $0x20] sm:$0xff]
        %v288 = vld [vmem:[%s248 + $0x28] sm:$0xff]
        %v289 = vld [vmem:[%s248 + $0x30] sm:$0xff]
        %v290 = vld [vmem:[%s248 + $0x38] sm:$0xff]
        %v291 = vld [vmem:[%s248 + $0x40] sm:$0xff]
        %v292 = vld [vmem:[%s248 + $0x48] sm:$0xff]
        %v293 = vld [vmem:[%s248 + $0x50] sm:$0xff]
        %v294 = vld [vmem:[%s248 + $0x58] sm:$0xff]
        %v295 = vld [vmem:[%s248 + $0x60] sm:$0xff]
        %v296 = vld [vmem:[%s248 + $0x68] sm:$0xff]
        %v297 = vld [vmem:[%s248 + $0x70] sm:$0xff]
        %v298 = vld [vmem:[%s248 + $0x78] sm:$0xff]
        %v299 = vld [vmem:[%s248 + $0x80] sm:$0xff]
        %v300 = vld [vmem:[%s248 + $0x88] sm:$0xff]
        %v301 = vld [vmem:[%s248 + $0x90] sm:$0xff]
        %v302 = vld [vmem:[%s248 + $0x98] sm:$0xff]
        %v303 = vld [vmem:[%s248 + $0xa0] sm:$0xff]
        %v304 = vld [vmem:[%s248 + $0xa8] sm:$0xff]
        %v305 = vld [vmem:[%s248 + $0xb0] sm:$0xff]
        %v306 = vld [vmem:[%s248 + $0xb8] sm:$0xff]
        %v307 = vld [vmem:[%s248 + $0xc0] sm:$0xff]
        %v308 = vld [vmem:[%s248 + $0xc8] sm:$0xff]
        %v309 = vld [vmem:[%s248 + $0xd0] sm:$0xff]
        %v310 = vld [vmem:[%s248 + $0xd8] sm:$0xff]
        %v311 = vld [vmem:[%s248 + $0xe0] sm:$0xff]
        %v312 = vld [vmem:[%s248 + $0xe8] sm:$0xff]
        %v313 = vld [vmem:[%s248 + $0xf0] sm:$0xff]
        %v314 = vld [vmem:[%s248 + $0xf8] sm:$0xff]
        %vm315 = vcmask 523264
        %v316 = vsel %vm315, %v283, 0.0
        %317 = vadd.xlane.f32.xlu0 %v316
        %v318 = vpop.xlane.xlu0 %317
        %v319 = vsel %vm315, %v284, 0.0
        %320 = vadd.xlane.f32.xlu0 %v319
        %v321 = vpop.xlane.xlu0 %320
        %v322 = vsel %vm315, %v285, 0.0
        %323 = vadd.xlane.f32.xlu0 %v322
        %v324 = vpop.xlane.xlu0 %323
        %v325 = vsel %vm315, %v286, 0.0
        %326 = vadd.xlane.f32.xlu0 %v325
        %v327 = vpop.xlane.xlu0 %326
        %v328 = vsel %vm315, %v287, 0.0
        %329 = vadd.xlane.f32.xlu0 %v328
        %v330 = vpop.xlane.xlu0 %329
        %v331 = vsel %vm315, %v288, 0.0
        %332 = vadd.xlane.f32.xlu0 %v331
        %v333 = vpop.xlane.xlu0 %332
        %v334 = vsel %vm315, %v289, 0.0
        %335 = vadd.xlane.f32.xlu0 %v334
        %v336 = vpop.xlane.xlu0 %335
        %v337 = vsel %vm315, %v290, 0.0
        %338 = vadd.xlane.f32.xlu0 %v337
        %v339 = vpop.xlane.xlu0 %338
        %v340 = vsel %vm315, %v291, 0.0
        %341 = vadd.xlane.f32.xlu0 %v340
        %v342 = vpop.xlane.xlu0 %341
        %v343 = vsel %vm315, %v292, 0.0
        %344 = vadd.xlane.f32.xlu0 %v343
        %v345 = vpop.xlane.xlu0 %344
        %v346 = vsel %vm315, %v293, 0.0
        %347 = vadd.xlane.f32.xlu0 %v346
        %v348 = vpop.xlane.xlu0 %347
        %v349 = vsel %vm315, %v294, 0.0
        %350 = vadd.xlane.f32.xlu0 %v349
        %v351 = vpop.xlane.xlu0 %350
        %v352 = vsel %vm315, %v295, 0.0
        %353 = vadd.xlane.f32.xlu0 %v352
        %v354 = vpop.xlane.xlu0 %353
        %v355 = vsel %vm315, %v296, 0.0
        %356 = vadd.xlane.f32.xlu0 %v355
        %v357 = vpop.xlane.xlu0 %356
        %v358 = vsel %vm315, %v297, 0.0
        %359 = vadd.xlane.f32.xlu0 %v358
        %v360 = vpop.xlane.xlu0 %359
        %v361 = vsel %vm315, %v298, 0.0
        %362 = vadd.xlane.f32.xlu0 %v361
        %v363 = vpop.xlane.xlu0 %362
        %v364 = vsel %vm315, %v299, 0.0
        %365 = vadd.xlane.f32.xlu0 %v364
        %v366 = vpop.xlane.xlu0 %365
        %v367 = vsel %vm315, %v300, 0.0
        %368 = vadd.xlane.f32.xlu0 %v367
        %v369 = vpop.xlane.xlu0 %368
        %v370 = vsel %vm315, %v301, 0.0
        %371 = vadd.xlane.f32.xlu0 %v370
        %v372 = vpop.xlane.xlu0 %371
        %v373 = vsel %vm315, %v302, 0.0
        %374 = vadd.xlane.f32.xlu0 %v373
        %v375 = vpop.xlane.xlu0 %374
        %v376 = vsel %vm315, %v303, 0.0
        %377 = vadd.xlane.f32.xlu0 %v376
        %v378 = vpop.xlane.xlu0 %377
        %v379 = vsel %vm315, %v304, 0.0
        %380 = vadd.xlane.f32.xlu0 %v379
        %v381 = vpop.xlane.xlu0 %380
        %v382 = vsel %vm315, %v305, 0.0
        %383 = vadd.xlane.f32.xlu0 %v382
        %v384 = vpop.xlane.xlu0 %383
        %v385 = vsel %vm315, %v306, 0.0
        %386 = vadd.xlane.f32.xlu0 %v385
        %v387 = vpop.xlane.xlu0 %386
        %v388 = vsel %vm315, %v307, 0.0
        %389 = vadd.xlane.f32.xlu0 %v388
        %v390 = vpop.xlane.xlu0 %389
        %v391 = vsel %vm315, %v308, 0.0
        %392 = vadd.xlane.f32.xlu0 %v391
        %v393 = vpop.xlane.xlu0 %392
        %v394 = vsel %vm315, %v309, 0.0
        %395 = vadd.xlane.f32.xlu0 %v394
        %v396 = vpop.xlane.xlu0 %395
        %v397 = vsel %vm315, %v310, 0.0
        %398 = vadd.xlane.f32.xlu0 %v397
        %v399 = vpop.xlane.xlu0 %398
        %v400 = vsel %vm315, %v311, 0.0
        %401 = vadd.xlane.f32.xlu0 %v400
        %v402 = vpop.xlane.xlu0 %401
        %v403 = vsel %vm315, %v312, 0.0
        %404 = vadd.xlane.f32.xlu0 %v403
        %v405 = vpop.xlane.xlu0 %404
        %v406 = vsel %vm315, %v313, 0.0
        %407 = vadd.xlane.f32.xlu0 %v406
        %v408 = vpop.xlane.xlu0 %407
        %v409 = vsel %vm315, %v314, 0.0
        %410 = vadd.xlane.f32.xlu0 %v409
        %v411 = vpop.xlane.xlu0 %410
        %v412 = vmul.f32 %v318, 0.015625
        %v413 = vmul.f32 %v321, 0.015625
        %v414 = vmul.f32 %v324, 0.015625
        %v415 = vmul.f32 %v327, 0.015625
        %v416 = vmul.f32 %v330, 0.015625
        %v417 = vmul.f32 %v333, 0.015625
        %v418 = vmul.f32 %v336, 0.015625
        %v419 = vmul.f32 %v339, 0.015625
        %v420 = vmul.f32 %v342, 0.015625
        %v421 = vmul.f32 %v345, 0.015625
        %v422 = vmul.f32 %v348, 0.015625
        %v423 = vmul.f32 %v351, 0.015625
        %v424 = vmul.f32 %v354, 0.015625
        %v425 = vmul.f32 %v357, 0.015625
        %v426 = vmul.f32 %v360, 0.015625
        %v427 = vmul.f32 %v363, 0.015625
        %v428 = vmul.f32 %v366, 0.015625
        %v429 = vmul.f32 %v369, 0.015625
        %v430 = vmul.f32 %v372, 0.015625
        %v431 = vmul.f32 %v375, 0.015625
        %v432 = vmul.f32 %v378, 0.015625
        %v433 = vmul.f32 %v381, 0.015625
        %v434 = vmul.f32 %v384, 0.015625
        %v435 = vmul.f32 %v387, 0.015625
        %v436 = vmul.f32 %v390, 0.015625
        %v437 = vmul.f32 %v393, 0.015625
        %v438 = vmul.f32 %v396, 0.015625
        %v439 = vmul.f32 %v399, 0.015625
        %v440 = vmul.f32 %v402, 0.015625
        %v441 = vmul.f32 %v405, 0.015625
        %v442 = vmul.f32 %v408, 0.015625
        %v443 = vmul.f32 %v411, 0.015625
        %v444 = vsel %vm315, %v283, -inf
        %445 = vmax.xlane.f32.xlu0 %v444
        %v446 = vpop.xlane.xlu0 %445
        %v447 = vsel %vm315, %v284, -inf
        %448 = vmax.xlane.f32.xlu0 %v447
        %v449 = vpop.xlane.xlu0 %448
        %v450 = vsel %vm315, %v285, -inf
        %451 = vmax.xlane.f32.xlu0 %v450
        %v452 = vpop.xlane.xlu0 %451
        %v453 = vsel %vm315, %v286, -inf
        %454 = vmax.xlane.f32.xlu0 %v453
        %v455 = vpop.xlane.xlu0 %454
        %v456 = vsel %vm315, %v287, -inf
        %457 = vmax.xlane.f32.xlu0 %v456
        %v458 = vpop.xlane.xlu0 %457
        %v459 = vsel %vm315, %v288, -inf
        %460 = vmax.xlane.f32.xlu0 %v459
        %v461 = vpop.xlane.xlu0 %460
        %v462 = vsel %vm315, %v289, -inf
        %463 = vmax.xlane.f32.xlu0 %v462
        %v464 = vpop.xlane.xlu0 %463
        %v465 = vsel %vm315, %v290, -inf
        %466 = vmax.xlane.f32.xlu0 %v465
        %v467 = vpop.xlane.xlu0 %466
        %v468 = vsel %vm315, %v291, -inf
        %469 = vmax.xlane.f32.xlu0 %v468
        %v470 = vpop.xlane.xlu0 %469
        %v471 = vsel %vm315, %v292, -inf
        %472 = vmax.xlane.f32.xlu0 %v471
        %v473 = vpop.xlane.xlu0 %472
        %v474 = vsel %vm315, %v293, -inf
        %475 = vmax.xlane.f32.xlu0 %v474
        %v476 = vpop.xlane.xlu0 %475
        %v477 = vsel %vm315, %v294, -inf
        %478 = vmax.xlane.f32.xlu0 %v477
        %v479 = vpop.xlane.xlu0 %478
        %v480 = vsel %vm315, %v295, -inf
        %481 = vmax.xlane.f32.xlu0 %v480
        %v482 = vpop.xlane.xlu0 %481
        %v483 = vsel %vm315, %v296, -inf
        %484 = vmax.xlane.f32.xlu0 %v483
        %v485 = vpop.xlane.xlu0 %484
        %v486 = vsel %vm315, %v297, -inf
        %487 = vmax.xlane.f32.xlu0 %v486
        %v488 = vpop.xlane.xlu0 %487
        %v489 = vsel %vm315, %v298, -inf
        %490 = vmax.xlane.f32.xlu0 %v489
        %v491 = vpop.xlane.xlu0 %490
        %v492 = vsel %vm315, %v299, -inf
        %493 = vmax.xlane.f32.xlu0 %v492
        %v494 = vpop.xlane.xlu0 %493
        %v495 = vsel %vm315, %v300, -inf
        %496 = vmax.xlane.f32.xlu0 %v495
        %v497 = vpop.xlane.xlu0 %496
        %v498 = vsel %vm315, %v301, -inf
        %499 = vmax.xlane.f32.xlu0 %v498
        %v500 = vpop.xlane.xlu0 %499
        %v501 = vsel %vm315, %v302, -inf
        %502 = vmax.xlane.f32.xlu0 %v501
        %v503 = vpop.xlane.xlu0 %502
        %v504 = vsel %vm315, %v303, -inf
        %505 = vmax.xlane.f32.xlu0 %v504
        %v506 = vpop.xlane.xlu0 %505
        %v507 = vsel %vm315, %v304, -inf
        %508 = vmax.xlane.f32.xlu0 %v507
        %v509 = vpop.xlane.xlu0 %508
        %v510 = vsel %vm315, %v305, -inf
        %511 = vmax.xlane.f32.xlu0 %v510
        %v512 = vpop.xlane.xlu0 %511
        %v513 = vsel %vm315, %v306, -inf
        %514 = vmax.xlane.f32.xlu0 %v513
        %v515 = vpop.xlane.xlu0 %514
        %v516 = vsel %vm315, %v307, -inf
        %517 = vmax.xlane.f32.xlu0 %v516
        %v518 = vpop.xlane.xlu0 %517
        %v519 = vsel %vm315, %v308, -inf
        %520 = vmax.xlane.f32.xlu0 %v519
        %v521 = vpop.xlane.xlu0 %520
        %v522 = vsel %vm315, %v309, -inf
        %523 = vmax.xlane.f32.xlu0 %v522
        %v524 = vpop.xlane.xlu0 %523
        %v525 = vsel %vm315, %v310, -inf
        %526 = vmax.xlane.f32.xlu0 %v525
        %v527 = vpop.xlane.xlu0 %526
        %v528 = vsel %vm315, %v311, -inf
        %529 = vmax.xlane.f32.xlu0 %v528
        %v530 = vpop.xlane.xlu0 %529
        %v531 = vsel %vm315, %v312, -inf
        %532 = vmax.xlane.f32.xlu0 %v531
        %v533 = vpop.xlane.xlu0 %532
        %v534 = vsel %vm315, %v313, -inf
        %535 = vmax.xlane.f32.xlu0 %v534
        %v536 = vpop.xlane.xlu0 %535
        %v537 = vsel %vm315, %v314, -inf
        %538 = vmax.xlane.f32.xlu0 %v537
        %v539 = vpop.xlane.xlu0 %538
        %v540 = vmax.f32 %v283, 1e-06
        %v541 = vmax.f32 %v284, 1e-06
        %v542 = vmax.f32 %v285, 1e-06
        %v543 = vmax.f32 %v286, 1e-06
        %v544 = vmax.f32 %v287, 1e-06
        %v545 = vmax.f32 %v288, 1e-06
        %v546 = vmax.f32 %v289, 1e-06
        %v547 = vmax.f32 %v290, 1e-06
        %v548 = vmax.f32 %v291, 1e-06
        %v549 = vmax.f32 %v292, 1e-06
        %v550 = vmax.f32 %v293, 1e-06
        %v551 = vmax.f32 %v294, 1e-06
        %v552 = vmax.f32 %v295, 1e-06
        %v553 = vmax.f32 %v296, 1e-06
        %v554 = vmax.f32 %v297, 1e-06
        %v555 = vmax.f32 %v298, 1e-06
        %v556 = vmax.f32 %v299, 1e-06
        %v557 = vmax.f32 %v300, 1e-06
        %v558 = vmax.f32 %v301, 1e-06
        %v559 = vmax.f32 %v302, 1e-06
        %v560 = vmax.f32 %v303, 1e-06
        %v561 = vmax.f32 %v304, 1e-06
        %v562 = vmax.f32 %v305, 1e-06
        %v563 = vmax.f32 %v306, 1e-06
        %v564 = vmax.f32 %v307, 1e-06
        %v565 = vmax.f32 %v308, 1e-06
        %v566 = vmax.f32 %v309, 1e-06
        %v567 = vmax.f32 %v310, 1e-06
        %v568 = vmax.f32 %v311, 1e-06
        %v569 = vmax.f32 %v312, 1e-06
        %v570 = vmax.f32 %v313, 1e-06
        %v571 = vmax.f32 %v314, 1e-06
        %v572 = vmul.f32 %v540, %v540
        %v573 = vmul.f32 %v541, %v541
        %v574 = vmul.f32 %v542, %v542
        %v575 = vmul.f32 %v543, %v543
        %v576 = vmul.f32 %v544, %v544
        %v577 = vmul.f32 %v545, %v545
        %v578 = vmul.f32 %v546, %v546
        %v579 = vmul.f32 %v547, %v547
        %v580 = vmul.f32 %v548, %v548
        %v581 = vmul.f32 %v549, %v549
        %v582 = vmul.f32 %v550, %v550
        %v583 = vmul.f32 %v551, %v551
        %v584 = vmul.f32 %v552, %v552
        %v585 = vmul.f32 %v553, %v553
        %v586 = vmul.f32 %v554, %v554
        %v587 = vmul.f32 %v555, %v555
        %v588 = vmul.f32 %v556, %v556
        %v589 = vmul.f32 %v557, %v557
        %v590 = vmul.f32 %v558, %v558
        %v591 = vmul.f32 %v559, %v559
        %v592 = vmul.f32 %v560, %v560
        %v593 = vmul.f32 %v561, %v561
        %v594 = vmul.f32 %v562, %v562
        %v595 = vmul.f32 %v563, %v563
        %v596 = vmul.f32 %v564, %v564
        %v597 = vmul.f32 %v565, %v565
        %v598 = vmul.f32 %v566, %v566
        %v599 = vmul.f32 %v567, %v567
        %v600 = vmul.f32 %v568, %v568
        %v601 = vmul.f32 %v569, %v569
        %v602 = vmul.f32 %v570, %v570
        %v603 = vmul.f32 %v571, %v571
        %v604 = vmul.f32 %v572, %v540
        %v605 = vmul.f32 %v573, %v541
        %v606 = vmul.f32 %v574, %v542
        %v607 = vmul.f32 %v575, %v543
        %v608 = vmul.f32 %v576, %v544
        %v609 = vmul.f32 %v577, %v545
        %v610 = vmul.f32 %v578, %v546
        %v611 = vmul.f32 %v579, %v547
        %v612 = vmul.f32 %v580, %v548
        %v613 = vmul.f32 %v581, %v549
        %v614 = vmul.f32 %v582, %v550
        %v615 = vmul.f32 %v583, %v551
        %v616 = vmul.f32 %v584, %v552
        %v617 = vmul.f32 %v585, %v553
        %v618 = vmul.f32 %v586, %v554
        %v619 = vmul.f32 %v587, %v555
        %v620 = vmul.f32 %v588, %v556
        %v621 = vmul.f32 %v589, %v557
        %v622 = vmul.f32 %v590, %v558
        %v623 = vmul.f32 %v591, %v559
        %v624 = vmul.f32 %v592, %v560
        %v625 = vmul.f32 %v593, %v561
        %v626 = vmul.f32 %v594, %v562
        %v627 = vmul.f32 %v595, %v563
        %v628 = vmul.f32 %v596, %v564
        %v629 = vmul.f32 %v597, %v565
        %v630 = vmul.f32 %v598, %v566
        %v631 = vmul.f32 %v599, %v567
        %v632 = vmul.f32 %v600, %v568
        %v633 = vmul.f32 %v601, %v569
        %v634 = vmul.f32 %v602, %v570
        %v635 = vmul.f32 %v603, %v571
        %v636 = vsel %vm315, %v604, 0.0
        %637 = vadd.xlane.f32.xlu0 %v636
        %v638 = vpop.xlane.xlu0 %637
        %v639 = vsel %vm315, %v605, 0.0
        %640 = vadd.xlane.f32.xlu0 %v639
        %v641 = vpop.xlane.xlu0 %640
        %v642 = vsel %vm315, %v606, 0.0
        %643 = vadd.xlane.f32.xlu0 %v642
        %v644 = vpop.xlane.xlu0 %643
        %v645 = vsel %vm315, %v607, 0.0
        %646 = vadd.xlane.f32.xlu0 %v645
        %v647 = vpop.xlane.xlu0 %646
        %v648 = vsel %vm315, %v608, 0.0
        %649 = vadd.xlane.f32.xlu0 %v648
        %v650 = vpop.xlane.xlu0 %649
        %v651 = vsel %vm315, %v609, 0.0
        %652 = vadd.xlane.f32.xlu0 %v651
        %v653 = vpop.xlane.xlu0 %652
        %v654 = vsel %vm315, %v610, 0.0
        %655 = vadd.xlane.f32.xlu0 %v654
        %v656 = vpop.xlane.xlu0 %655
        %v657 = vsel %vm315, %v611, 0.0
        %658 = vadd.xlane.f32.xlu0 %v657
        %v659 = vpop.xlane.xlu0 %658
        %v660 = vsel %vm315, %v612, 0.0
        %661 = vadd.xlane.f32.xlu0 %v660
        %v662 = vpop.xlane.xlu0 %661
        %v663 = vsel %vm315, %v613, 0.0
        %664 = vadd.xlane.f32.xlu0 %v663
        %v665 = vpop.xlane.xlu0 %664
        %v666 = vsel %vm315, %v614, 0.0
        %667 = vadd.xlane.f32.xlu0 %v666
        %v668 = vpop.xlane.xlu0 %667
        %v669 = vsel %vm315, %v615, 0.0
        %670 = vadd.xlane.f32.xlu0 %v669
        %v671 = vpop.xlane.xlu0 %670
        %v672 = vsel %vm315, %v616, 0.0
        %673 = vadd.xlane.f32.xlu0 %v672
        %v674 = vpop.xlane.xlu0 %673
        %v675 = vsel %vm315, %v617, 0.0
        %676 = vadd.xlane.f32.xlu0 %v675
        %v677 = vpop.xlane.xlu0 %676
        %v678 = vsel %vm315, %v618, 0.0
        %679 = vadd.xlane.f32.xlu0 %v678
        %v680 = vpop.xlane.xlu0 %679
        %v681 = vsel %vm315, %v619, 0.0
        %682 = vadd.xlane.f32.xlu0 %v681
        %v683 = vpop.xlane.xlu0 %682
        %v684 = vsel %vm315, %v620, 0.0
        %685 = vadd.xlane.f32.xlu0 %v684
        %v686 = vpop.xlane.xlu0 %685
        %v687 = vsel %vm315, %v621, 0.0
        %688 = vadd.xlane.f32.xlu0 %v687
        %v689 = vpop.xlane.xlu0 %688
        %v690 = vsel %vm315, %v622, 0.0
        %691 = vadd.xlane.f32.xlu0 %v690
        %v692 = vpop.xlane.xlu0 %691
        %v693 = vsel %vm315, %v623, 0.0
        %694 = vadd.xlane.f32.xlu0 %v693
        %v695 = vpop.xlane.xlu0 %694
        %v696 = vsel %vm315, %v624, 0.0
        %697 = vadd.xlane.f32.xlu0 %v696
        %v698 = vpop.xlane.xlu0 %697
        %v699 = vsel %vm315, %v625, 0.0
        %700 = vadd.xlane.f32.xlu0 %v699
        %v701 = vpop.xlane.xlu0 %700
        %v702 = vsel %vm315, %v626, 0.0
        %703 = vadd.xlane.f32.xlu0 %v702
        %v704 = vpop.xlane.xlu0 %703
        %v705 = vsel %vm315, %v627, 0.0
        %706 = vadd.xlane.f32.xlu0 %v705
        %v707 = vpop.xlane.xlu0 %706
        %v708 = vsel %vm315, %v628, 0.0
        %709 = vadd.xlane.f32.xlu0 %v708
        %v710 = vpop.xlane.xlu0 %709
        %v711 = vsel %vm315, %v629, 0.0
        %712 = vadd.xlane.f32.xlu0 %v711
        %v713 = vpop.xlane.xlu0 %712
        %v714 = vsel %vm315, %v630, 0.0
        %715 = vadd.xlane.f32.xlu0 %v714
        %v716 = vpop.xlane.xlu0 %715
        %v717 = vsel %vm315, %v631, 0.0
        %718 = vadd.xlane.f32.xlu0 %v717
        %v719 = vpop.xlane.xlu0 %718
        %v720 = vsel %vm315, %v632, 0.0
        %721 = vadd.xlane.f32.xlu0 %v720
        %v722 = vpop.xlane.xlu0 %721
        %v723 = vsel %vm315, %v633, 0.0
        %724 = vadd.xlane.f32.xlu0 %v723
        %v725 = vpop.xlane.xlu0 %724
        %v726 = vsel %vm315, %v634, 0.0
        %727 = vadd.xlane.f32.xlu0 %v726
        %v728 = vpop.xlane.xlu0 %727
        %v729 = vsel %vm315, %v635, 0.0
        %730 = vadd.xlane.f32.xlu0 %v729
        %v731 = vpop.xlane.xlu0 %730
        %v732 = vmul.f32 %v638, 0.015625
        %v733 = vmul.f32 %v641, 0.015625
        %v734 = vmul.f32 %v644, 0.015625
        %v735 = vmul.f32 %v647, 0.015625
        %v736 = vmul.f32 %v650, 0.015625
        %v737 = vmul.f32 %v653, 0.015625
        %v738 = vmul.f32 %v656, 0.015625
        %v739 = vmul.f32 %v659, 0.015625
        %v740 = vmul.f32 %v662, 0.015625
        %v741 = vmul.f32 %v665, 0.015625
        %v742 = vmul.f32 %v668, 0.015625
        %v743 = vmul.f32 %v671, 0.015625
        %v744 = vmul.f32 %v674, 0.015625
        %v745 = vmul.f32 %v677, 0.015625
        %v746 = vmul.f32 %v680, 0.015625
        %v747 = vmul.f32 %v683, 0.015625
        %v748 = vmul.f32 %v686, 0.015625
        %v749 = vmul.f32 %v689, 0.015625
        %v750 = vmul.f32 %v692, 0.015625
        %v751 = vmul.f32 %v695, 0.015625
        %v752 = vmul.f32 %v698, 0.015625
        %v753 = vmul.f32 %v701, 0.015625
        %v754 = vmul.f32 %v704, 0.015625
        %v755 = vmul.f32 %v707, 0.015625
        %v756 = vmul.f32 %v710, 0.015625
        %v757 = vmul.f32 %v713, 0.015625
        %v758 = vmul.f32 %v716, 0.015625
        %v759 = vmul.f32 %v719, 0.015625
        %v760 = vmul.f32 %v722, 0.015625
        %v761 = vmul.f32 %v725, 0.015625
        %v762 = vmul.f32 %v728, 0.015625
        %v763 = vmul.f32 %v731, 0.015625
        %v764 = vlog2.pop %v732
        %v765 = vmul.f32 %v764, 0.6931472
        %v766 = vlog2.pop %v733
        %v767 = vmul.f32 %v766, 0.6931472
        %v768 = vlog2.pop %v734
        %v769 = vmul.f32 %v768, 0.6931472
        %v770 = vlog2.pop %v735
        %v771 = vmul.f32 %v770, 0.6931472
        %v772 = vlog2.pop %v736
        %v773 = vmul.f32 %v772, 0.6931472
        %v774 = vlog2.pop %v737
        %v775 = vmul.f32 %v774, 0.6931472
        %v776 = vlog2.pop %v738
        %v777 = vmul.f32 %v776, 0.6931472
        %v778 = vlog2.pop %v739
        %v779 = vmul.f32 %v778, 0.6931472
        %v780 = vlog2.pop %v740
        %v781 = vmul.f32 %v780, 0.6931472
        %v782 = vlog2.pop %v741
        %v783 = vmul.f32 %v782, 0.6931472
        %v784 = vlog2.pop %v742
        %v785 = vmul.f32 %v784, 0.6931472
        %v786 = vlog2.pop %v743
        %v787 = vmul.f32 %v786, 0.6931472
        %v788 = vlog2.pop %v744
        %v789 = vmul.f32 %v788, 0.6931472
        %v790 = vlog2.pop %v745
        %v791 = vmul.f32 %v790, 0.6931472
        %v792 = vlog2.pop %v746
        %v793 = vmul.f32 %v792, 0.6931472
        %v794 = vlog2.pop %v747
        %v795 = vmul.f32 %v794, 0.6931472
        %v796 = vlog2.pop %v748
        %v797 = vmul.f32 %v796, 0.6931472
        %v798 = vlog2.pop %v749
        %v799 = vmul.f32 %v798, 0.6931472
        %v800 = vlog2.pop %v750
        %v801 = vmul.f32 %v800, 0.6931472
        %v802 = vlog2.pop %v751
        %v803 = vmul.f32 %v802, 0.6931472
        %v804 = vlog2.pop %v752
        %v805 = vmul.f32 %v804, 0.6931472
        %v806 = vlog2.pop %v753
        %v807 = vmul.f32 %v806, 0.6931472
        %v808 = vlog2.pop %v754
        %v809 = vmul.f32 %v808, 0.6931472
        %v810 = vlog2.pop %v755
        %v811 = vmul.f32 %v810, 0.6931472
        %v812 = vlog2.pop %v756
        %v813 = vmul.f32 %v812, 0.6931472
        %v814 = vlog2.pop %v757
        %v815 = vmul.f32 %v814, 0.6931472
        %v816 = vlog2.pop %v758
        %v817 = vmul.f32 %v816, 0.6931472
        %v818 = vlog2.pop %v759
        %v819 = vmul.f32 %v818, 0.6931472
        %v820 = vlog2.pop %v760
        %v821 = vmul.f32 %v820, 0.6931472
        %v822 = vlog2.pop %v761
        %v823 = vmul.f32 %v822, 0.6931472
        %v824 = vlog2.pop %v762
        %v825 = vmul.f32 %v824, 0.6931472
        %v826 = vlog2.pop %v763
        %v827 = vmul.f32 %v826, 0.6931472
        %v828 = vmul.f32 %v765, 0.33333334
        %v829 = vmul.f32 %v767, 0.33333334
        %v830 = vmul.f32 %v769, 0.33333334
        %v831 = vmul.f32 %v771, 0.33333334
        %v832 = vmul.f32 %v773, 0.33333334
        %v833 = vmul.f32 %v775, 0.33333334
        %v834 = vmul.f32 %v777, 0.33333334
        %v835 = vmul.f32 %v779, 0.33333334
        %v836 = vmul.f32 %v781, 0.33333334
        %v837 = vmul.f32 %v783, 0.33333334
        %v838 = vmul.f32 %v785, 0.33333334
        %v839 = vmul.f32 %v787, 0.33333334
        %v840 = vmul.f32 %v789, 0.33333334
        %v841 = vmul.f32 %v791, 0.33333334
        %v842 = vmul.f32 %v793, 0.33333334
        %v843 = vmul.f32 %v795, 0.33333334
        %v844 = vmul.f32 %v797, 0.33333334
        %v845 = vmul.f32 %v799, 0.33333334
        %v846 = vmul.f32 %v801, 0.33333334
        %v847 = vmul.f32 %v803, 0.33333334
        %v848 = vmul.f32 %v805, 0.33333334
        %v849 = vmul.f32 %v807, 0.33333334
        %v850 = vmul.f32 %v809, 0.33333334
        %v851 = vmul.f32 %v811, 0.33333334
        %v852 = vmul.f32 %v813, 0.33333334
        %v853 = vmul.f32 %v815, 0.33333334
        %v854 = vmul.f32 %v817, 0.33333334
        %v855 = vmul.f32 %v819, 0.33333334
        %v856 = vmul.f32 %v821, 0.33333334
        %v857 = vmul.f32 %v823, 0.33333334
        %v858 = vmul.f32 %v825, 0.33333334
        %v859 = vmul.f32 %v827, 0.33333334
        %v860 = vmul.f32 %v828, 1.442695
        %v861 = vpow.pop %v860
        %v862 = vmul.f32 %v829, 1.442695
        %v863 = vpow.pop %v862
        %v864 = vmul.f32 %v830, 1.442695
        %v865 = vpow.pop %v864
        %v866 = vmul.f32 %v831, 1.442695
        %v867 = vpow.pop %v866
        %v868 = vmul.f32 %v832, 1.442695
        %v869 = vpow.pop %v868
        %v870 = vmul.f32 %v833, 1.442695
        %v871 = vpow.pop %v870
        %v872 = vmul.f32 %v834, 1.442695
        %v873 = vpow.pop %v872
        %v874 = vmul.f32 %v835, 1.442695
        %v875 = vpow.pop %v874
        %v876 = vmul.f32 %v836, 1.442695
        %v877 = vpow.pop %v876
        %v878 = vmul.f32 %v837, 1.442695
        %v879 = vpow.pop %v878
        %v880 = vmul.f32 %v838, 1.442695
        %v881 = vpow.pop %v880
        %v882 = vmul.f32 %v839, 1.442695
        %v883 = vpow.pop %v882
        %v884 = vmul.f32 %v840, 1.442695
        %v885 = vpow.pop %v884
        %v886 = vmul.f32 %v841, 1.442695
        %v887 = vpow.pop %v886
        %v888 = vmul.f32 %v842, 1.442695
        %v889 = vpow.pop %v888
        %v890 = vmul.f32 %v843, 1.442695
        %v891 = vpow.pop %v890
        %v892 = vmul.f32 %v844, 1.442695
        %v893 = vpow.pop %v892
        %v894 = vmul.f32 %v845, 1.442695
        %v895 = vpow.pop %v894
        %v896 = vmul.f32 %v846, 1.442695
        %v897 = vpow.pop %v896
        %v898 = vmul.f32 %v847, 1.442695
        %v899 = vpow.pop %v898
        %v900 = vmul.f32 %v848, 1.442695
        %v901 = vpow.pop %v900
        %v902 = vmul.f32 %v849, 1.442695
        %v903 = vpow.pop %v902
        %v904 = vmul.f32 %v850, 1.442695
        %v905 = vpow.pop %v904
        %v906 = vmul.f32 %v851, 1.442695
        %v907 = vpow.pop %v906
        %v908 = vmul.f32 %v852, 1.442695
        %v909 = vpow.pop %v908
        %v910 = vmul.f32 %v853, 1.442695
        %v911 = vpow.pop %v910
        %v912 = vmul.f32 %v854, 1.442695
        %v913 = vpow.pop %v912
        %v914 = vmul.f32 %v855, 1.442695
        %v915 = vpow.pop %v914
        %v916 = vmul.f32 %v856, 1.442695
        %v917 = vpow.pop %v916
        %v918 = vmul.f32 %v857, 1.442695
        %v919 = vpow.pop %v918
        %v920 = vmul.f32 %v858, 1.442695
        %v921 = vpow.pop %v920
        %v922 = vmul.f32 %v859, 1.442695
        %v923 = vpow.pop %v922
        %v924 = vld [vmem:[%s1] sm:$0xff]
        %v925 = vld [vmem:[%s1 + $0x8] sm:$0xff]
        %v926 = vld [vmem:[%s1 + $0x10] sm:$0xff]
        %v927 = vld [vmem:[%s1 + $0x18] sm:$0xff]
        %v928 = vld [vmem:[%s2] sm:$0x1]
        %v930 = vlaneseq
        %v931 = vshrl.u32 %v930, 7
        %v932 = vsub.s32 0, %v931
        %v933 = vrot.slane %v928, %v932
        %v967 = vlaneseq
        %v968 = vand.u32 %v967, 127
        %v969 = vlaneseq
        %v970 = vshrl.u32 %v969, 7
        %v971 = vsub.s32 %v968, %v970
        %v972 = vrot.slane %v412, %v971
        %v973 = vadd.s32 %v968, 4294967288
        %v974 = vlaneseq
        %v975 = vshrl.u32 %v974, 7
        %v976 = vsub.s32 %v973, %v975
        %v977 = vrot.slane %v413, %v976
        %vm978 = vcmask 130112
        %v979 = vsel %vm978, %v977, %v972
        %v980 = vadd.s32 %v968, 4294967280
        %v981 = vlaneseq
        %v982 = vshrl.u32 %v981, 7
        %v983 = vsub.s32 %v980, %v982
        %v984 = vrot.slane %v414, %v983
        %vm985 = vcmask 195712
        %v986 = vsel %vm985, %v984, %v979
        %v987 = vadd.s32 %v968, 4294967272
        %v988 = vlaneseq
        %v989 = vshrl.u32 %v988, 7
        %v990 = vsub.s32 %v987, %v989
        %v991 = vrot.slane %v415, %v990
        %vm992 = vcmask 261312
        %v993 = vsel %vm992, %v991, %v986
        %v994 = vlaneseq
        %v995 = vshrl.u32 %v994, 7
        %v996 = vsub.s32 %v968, %v995
        %v997 = vrot.slane %v416, %v996
        %v998 = vlaneseq
        %v999 = vshrl.u32 %v998, 7
        %v1000 = vsub.s32 %v973, %v999
        %v1001 = vrot.slane %v417, %v1000
        %v1002 = vsel %vm978, %v1001, %v997
        %v1003 = vlaneseq
        %v1004 = vshrl.u32 %v1003, 7
        %v1005 = vsub.s32 %v980, %v1004
        %v1006 = vrot.slane %v418, %v1005
        %v1007 = vsel %vm985, %v1006, %v1002
        %v1008 = vlaneseq
        %v1009 = vshrl.u32 %v1008, 7
        %v1010 = vsub.s32 %v987, %v1009
        %v1011 = vrot.slane %v419, %v1010
        %v1012 = vsel %vm992, %v1011, %v1007
        %v1013 = vlaneseq
        %v1014 = vshrl.u32 %v1013, 7
        %v1015 = vsub.s32 %v968, %v1014
        %v1016 = vrot.slane %v420, %v1015
        %v1017 = vlaneseq
        %v1018 = vshrl.u32 %v1017, 7
        %v1019 = vsub.s32 %v973, %v1018
        %v1020 = vrot.slane %v421, %v1019
        %v1021 = vsel %vm978, %v1020, %v1016
        %v1022 = vlaneseq
        %v1023 = vshrl.u32 %v1022, 7
        %v1024 = vsub.s32 %v980, %v1023
        %v1025 = vrot.slane %v422, %v1024
        %v1026 = vsel %vm985, %v1025, %v1021
        %v1027 = vlaneseq
        %v1028 = vshrl.u32 %v1027, 7
        %v1029 = vsub.s32 %v987, %v1028
        %v1030 = vrot.slane %v423, %v1029
        %v1031 = vsel %vm992, %v1030, %v1026
        %v1032 = vlaneseq
        %v1033 = vshrl.u32 %v1032, 7
        %v1034 = vsub.s32 %v968, %v1033
        %v1035 = vrot.slane %v424, %v1034
        %v1036 = vlaneseq
        %v1037 = vshrl.u32 %v1036, 7
        %v1038 = vsub.s32 %v973, %v1037
        %v1039 = vrot.slane %v425, %v1038
        %v1040 = vsel %vm978, %v1039, %v1035
        %v1041 = vlaneseq
        %v1042 = vshrl.u32 %v1041, 7
        %v1043 = vsub.s32 %v980, %v1042
        %v1044 = vrot.slane %v426, %v1043
        %v1045 = vsel %vm985, %v1044, %v1040
        %v1046 = vlaneseq
        %v1047 = vshrl.u32 %v1046, 7
        %v1048 = vsub.s32 %v987, %v1047
        %v1049 = vrot.slane %v427, %v1048
        %v1050 = vsel %vm992, %v1049, %v1045
        %v1051 = vlaneseq
        %v1052 = vshrl.u32 %v1051, 7
        %v1053 = vsub.s32 %v968, %v1052
        %v1054 = vrot.slane %v428, %v1053
        %v1055 = vlaneseq
        %v1056 = vshrl.u32 %v1055, 7
        %v1057 = vsub.s32 %v973, %v1056
        %v1058 = vrot.slane %v429, %v1057
        %v1059 = vsel %vm978, %v1058, %v1054
        %v1060 = vlaneseq
        %v1061 = vshrl.u32 %v1060, 7
        %v1062 = vsub.s32 %v980, %v1061
        %v1063 = vrot.slane %v430, %v1062
        %v1064 = vsel %vm985, %v1063, %v1059
        %v1065 = vlaneseq
        %v1066 = vshrl.u32 %v1065, 7
        %v1067 = vsub.s32 %v987, %v1066
        %v1068 = vrot.slane %v431, %v1067
        %v1069 = vsel %vm992, %v1068, %v1064
        %v1070 = vlaneseq
        %v1071 = vshrl.u32 %v1070, 7
        %v1072 = vsub.s32 %v968, %v1071
        %v1073 = vrot.slane %v432, %v1072
        %v1074 = vlaneseq
        %v1075 = vshrl.u32 %v1074, 7
        %v1076 = vsub.s32 %v973, %v1075
        %v1077 = vrot.slane %v433, %v1076
        %v1078 = vsel %vm978, %v1077, %v1073
        %v1079 = vlaneseq
        %v1080 = vshrl.u32 %v1079, 7
        %v1081 = vsub.s32 %v980, %v1080
        %v1082 = vrot.slane %v434, %v1081
        %v1083 = vsel %vm985, %v1082, %v1078
        %v1084 = vlaneseq
        %v1085 = vshrl.u32 %v1084, 7
        %v1086 = vsub.s32 %v987, %v1085
        %v1087 = vrot.slane %v435, %v1086
        %v1088 = vsel %vm992, %v1087, %v1083
        %v1089 = vlaneseq
        %v1090 = vshrl.u32 %v1089, 7
        %v1091 = vsub.s32 %v968, %v1090
        %v1092 = vrot.slane %v436, %v1091
        %v1093 = vlaneseq
        %v1094 = vshrl.u32 %v1093, 7
        %v1095 = vsub.s32 %v973, %v1094
        %v1096 = vrot.slane %v437, %v1095
        %v1097 = vsel %vm978, %v1096, %v1092
        %v1098 = vlaneseq
        %v1099 = vshrl.u32 %v1098, 7
        %v1100 = vsub.s32 %v980, %v1099
        %v1101 = vrot.slane %v438, %v1100
        %v1102 = vsel %vm985, %v1101, %v1097
        %v1103 = vlaneseq
        %v1104 = vshrl.u32 %v1103, 7
        %v1105 = vsub.s32 %v987, %v1104
        %v1106 = vrot.slane %v439, %v1105
        %v1107 = vsel %vm992, %v1106, %v1102
        %v1108 = vlaneseq
        %v1109 = vshrl.u32 %v1108, 7
        %v1110 = vsub.s32 %v968, %v1109
        %v1111 = vrot.slane %v440, %v1110
        %v1112 = vlaneseq
        %v1113 = vshrl.u32 %v1112, 7
        %v1114 = vsub.s32 %v973, %v1113
        %v1115 = vrot.slane %v441, %v1114
        %v1116 = vsel %vm978, %v1115, %v1111
        %v1117 = vlaneseq
        %v1118 = vshrl.u32 %v1117, 7
        %v1119 = vsub.s32 %v980, %v1118
        %v1120 = vrot.slane %v442, %v1119
        %v1121 = vsel %vm985, %v1120, %v1116
        %v1122 = vlaneseq
        %v1123 = vshrl.u32 %v1122, 7
        %v1124 = vsub.s32 %v987, %v1123
        %v1125 = vrot.slane %v443, %v1124
        %v1126 = vsel %vm992, %v1125, %v1121
        %vm1127 = vcmask 1041409
        %v1128 = vsel %vm1127, %v1012, %v993
        %vm1129 = vcmask 1042434
        %v1130 = vsel %vm1129, %v1031, %v1128
        %vm1131 = vcmask 1043459
        %v1132 = vsel %vm1131, %v1050, %v1130
        %vm1133 = vcmask 1044484
        %v1134 = vsel %vm1133, %v1069, %v1132
        %vm1135 = vcmask 1045509
        %v1136 = vsel %vm1135, %v1088, %v1134
        %vm1137 = vcmask 1046534
        %v1138 = vsel %vm1137, %v1107, %v1136
        %vm1139 = vcmask 1047559
        %v1140 = vsel %vm1139, %v1126, %v1138
        %vm1141 = vcmask 261120
        %v1142 = vsel %vm1141, %v1140, 0
        %1144 = vmatprep.subr.mxu0 0.0
        %1145 = vmatpush1.msra.mxu0 0.0
        %1146 = vmatprep.subr.mxu0 0.0
        %1147 = vmatpush1.msra.mxu0 0.0
        %1148 = vmatprep.subr.mxu0 0.0
        %1149 = vmatpush1.msra.mxu0 0.0
        %1150 = vmatprep.subr.mxu0 0.0
        %1151 = vmatpush1.msra.mxu0 0.0
        %1152 = vmatprep.subr.mxu0 0.0
        %1153 = vmatpush1.msra.mxu0 0.0
        %1154 = vmatprep.subr.mxu0 0.0
        %1155 = vmatpush1.msra.mxu0 0.0
        %1156 = vmatprep.subr.mxu0 0.0
        %1157 = vmatpush1.msra.mxu0 0.0
        %1158 = vmatprep.subr.mxu0 0.0
        %1159 = vmatpush1.msra.mxu0 0.0
        %1160 = vmatprep.subr.mxu0 0.0
        %1161 = vmatpush1.msra.mxu0 0.0
        %1162 = vmatprep.subr.mxu0 0.0
        %1163 = vmatpush1.msra.mxu0 0.0
        %1164 = vmatprep.subr.mxu0 0.0
        %1165 = vmatpush1.msra.mxu0 0.0
        %1166 = vmatprep.subr.mxu0 0.0
        %1167 = vmatpush1.msra.mxu0 0.0
        %1168 = vmatprep.subr.mxu0 0.0
        %1169 = vmatpush1.msra.mxu0 %v927
        %1170 = vmatprep.subr.mxu0 0.0
        %1171 = vmatpush1.msra.mxu0 %v926
        %1172 = vmatprep.subr.mxu0 0.0
        %1173 = vmatpush1.msra.mxu0 %v925
        %1174 = vmatprep.subr.mxu0 0.0
        %1175 = vmatpush1.msra.mxu0 %v924
        %1176 = vmatprep.subr.mxu0 0.0
        %1177 = vmatpush2.msra.mxu0 0.0
        %1178 = vmatprep.subr.mxu0 0.0
        %1179 = vmatpush2.msra.mxu0 0.0
        %1180 = vmatprep.subr.mxu0 0.0
        %1181 = vmatpush2.msra.mxu0 0.0
        %1182 = vmatprep.subr.mxu0 0.0
        %1183 = vmatpush2.msra.mxu0 0.0
        %1184 = vmatprep.subr.mxu0 0.0
        %1185 = vmatpush2.msra.mxu0 0.0
        %1186 = vmatprep.subr.mxu0 0.0
        %1187 = vmatpush2.msra.mxu0 0.0
        %1188 = vmatprep.subr.mxu0 0.0
        %1189 = vmatpush2.msra.mxu0 0.0
        %1190 = vmatprep.subr.mxu0 0.0
        %1191 = vmatpush2.msra.mxu0 0.0
        %1192 = vmatprep.subr.mxu0 0.0
        %1193 = vmatpush2.msra.mxu0 0.0
        %1194 = vmatprep.subr.mxu0 0.0
        %1195 = vmatpush2.msra.mxu0 0.0
        %1196 = vmatprep.subr.mxu0 0.0
        %1197 = vmatpush2.msra.mxu0 0.0
        %1198 = vmatprep.subr.mxu0 0.0
        %1199 = vmatpush2.msra.mxu0 0.0
        %1200 = vmatprep.subr.mxu0 0.0
        %1201 = vmatpush2.msra.mxu0 0.0
        %1202 = vmatprep.subr.mxu0 0.0
        %1203 = vmatpush2.msra.mxu0 0.0
        %1204 = vmatprep.subr.mxu0 0.0
        %1205 = vmatpush2.msra.mxu0 0.0
        %1206 = vmatprep.subr.mxu0 0.0
        %1207 = vmatpush2.msra.mxu0 0.0
        %1208 = vmatprep.mubr.f32.mxu0 0.0
        %1209 = vmatmul.mubr.f32.gmra.mxu0 %v1142
        %v1210 = vpop.f32.mrf.mxu0
        %v1211 = vadd.f32 %v933, %v1210
        %v1212 = vpop.f32.mrf.mxu0
        %1213 = vdwg.mxu0
        %v1214 = vld [vmem:[%s3] sm:$0xff]
        %v1215 = vld [vmem:[%s3 + $0x8] sm:$0xff]
        %v1216 = vld [vmem:[%s3 + $0x10] sm:$0xff]
        %v1217 = vld [vmem:[%s3 + $0x18] sm:$0xff]
        %v1250 = vlaneseq
        %v1251 = vshrl.u32 %v1250, 7
        %v1252 = vsub.s32 %v968, %v1251
        %v1253 = vrot.slane %v861, %v1252
        %v1254 = vlaneseq
        %v1255 = vshrl.u32 %v1254, 7
        %v1256 = vsub.s32 %v973, %v1255
        %v1257 = vrot.slane %v863, %v1256
        %v1258 = vsel %vm978, %v1257, %v1253
        %v1259 = vlaneseq
        %v1260 = vshrl.u32 %v1259, 7
        %v1261 = vsub.s32 %v980, %v1260
        %v1262 = vrot.slane %v865, %v1261
        %v1263 = vsel %vm985, %v1262, %v1258
        %v1264 = vlaneseq
        %v1265 = vshrl.u32 %v1264, 7
        %v1266 = vsub.s32 %v987, %v1265
        %v1267 = vrot.slane %v867, %v1266
        %v1268 = vsel %vm992, %v1267, %v1263
        %v1269 = vlaneseq
        %v1270 = vshrl.u32 %v1269, 7
        %v1271 = vsub.s32 %v968, %v1270
        %v1272 = vrot.slane %v869, %v1271
        %v1273 = vlaneseq
        %v1274 = vshrl.u32 %v1273, 7
        %v1275 = vsub.s32 %v973, %v1274
        %v1276 = vrot.slane %v871, %v1275
        %v1277 = vsel %vm978, %v1276, %v1272
        %v1278 = vlaneseq
        %v1279 = vshrl.u32 %v1278, 7
        %v1280 = vsub.s32 %v980, %v1279
        %v1281 = vrot.slane %v873, %v1280
        %v1282 = vsel %vm985, %v1281, %v1277
        %v1283 = vlaneseq
        %v1284 = vshrl.u32 %v1283, 7
        %v1285 = vsub.s32 %v987, %v1284
        %v1286 = vrot.slane %v875, %v1285
        %v1287 = vsel %vm992, %v1286, %v1282
        %v1288 = vlaneseq
        %v1289 = vshrl.u32 %v1288, 7
        %v1290 = vsub.s32 %v968, %v1289
        %v1291 = vrot.slane %v877, %v1290
        %v1292 = vlaneseq
        %v1293 = vshrl.u32 %v1292, 7
        %v1294 = vsub.s32 %v973, %v1293
        %v1295 = vrot.slane %v879, %v1294
        %v1296 = vsel %vm978, %v1295, %v1291
        %v1297 = vlaneseq
        %v1298 = vshrl.u32 %v1297, 7
        %v1299 = vsub.s32 %v980, %v1298
        %v1300 = vrot.slane %v881, %v1299
        %v1301 = vsel %vm985, %v1300, %v1296
        %v1302 = vlaneseq
        %v1303 = vshrl.u32 %v1302, 7
        %v1304 = vsub.s32 %v987, %v1303
        %v1305 = vrot.slane %v883, %v1304
        %v1306 = vsel %vm992, %v1305, %v1301
        %v1307 = vlaneseq
        %v1308 = vshrl.u32 %v1307, 7
        %v1309 = vsub.s32 %v968, %v1308
        %v1310 = vrot.slane %v885, %v1309
        %v1311 = vlaneseq
        %v1312 = vshrl.u32 %v1311, 7
        %v1313 = vsub.s32 %v973, %v1312
        %v1314 = vrot.slane %v887, %v1313
        %v1315 = vsel %vm978, %v1314, %v1310
        %v1316 = vlaneseq
        %v1317 = vshrl.u32 %v1316, 7
        %v1318 = vsub.s32 %v980, %v1317
        %v1319 = vrot.slane %v889, %v1318
        %v1320 = vsel %vm985, %v1319, %v1315
        %v1321 = vlaneseq
        %v1322 = vshrl.u32 %v1321, 7
        %v1323 = vsub.s32 %v987, %v1322
        %v1324 = vrot.slane %v891, %v1323
        %v1325 = vsel %vm992, %v1324, %v1320
        %v1326 = vlaneseq
        %v1327 = vshrl.u32 %v1326, 7
        %v1328 = vsub.s32 %v968, %v1327
        %v1329 = vrot.slane %v893, %v1328
        %v1330 = vlaneseq
        %v1331 = vshrl.u32 %v1330, 7
        %v1332 = vsub.s32 %v973, %v1331
        %v1333 = vrot.slane %v895, %v1332
        %v1334 = vsel %vm978, %v1333, %v1329
        %v1335 = vlaneseq
        %v1336 = vshrl.u32 %v1335, 7
        %v1337 = vsub.s32 %v980, %v1336
        %v1338 = vrot.slane %v897, %v1337
        %v1339 = vsel %vm985, %v1338, %v1334
        %v1340 = vlaneseq
        %v1341 = vshrl.u32 %v1340, 7
        %v1342 = vsub.s32 %v987, %v1341
        %v1343 = vrot.slane %v899, %v1342
        %v1344 = vsel %vm992, %v1343, %v1339
        %v1345 = vlaneseq
        %v1346 = vshrl.u32 %v1345, 7
        %v1347 = vsub.s32 %v968, %v1346
        %v1348 = vrot.slane %v901, %v1347
        %v1349 = vlaneseq
        %v1350 = vshrl.u32 %v1349, 7
        %v1351 = vsub.s32 %v973, %v1350
        %v1352 = vrot.slane %v903, %v1351
        %v1353 = vsel %vm978, %v1352, %v1348
        %v1354 = vlaneseq
        %v1355 = vshrl.u32 %v1354, 7
        %v1356 = vsub.s32 %v980, %v1355
        %v1357 = vrot.slane %v905, %v1356
        %v1358 = vsel %vm985, %v1357, %v1353
        %v1359 = vlaneseq
        %v1360 = vshrl.u32 %v1359, 7
        %v1361 = vsub.s32 %v987, %v1360
        %v1362 = vrot.slane %v907, %v1361
        %v1363 = vsel %vm992, %v1362, %v1358
        %v1364 = vlaneseq
        %v1365 = vshrl.u32 %v1364, 7
        %v1366 = vsub.s32 %v968, %v1365
        %v1367 = vrot.slane %v909, %v1366
        %v1368 = vlaneseq
        %v1369 = vshrl.u32 %v1368, 7
        %v1370 = vsub.s32 %v973, %v1369
        %v1371 = vrot.slane %v911, %v1370
        %v1372 = vsel %vm978, %v1371, %v1367
        %v1373 = vlaneseq
        %v1374 = vshrl.u32 %v1373, 7
        %v1375 = vsub.s32 %v980, %v1374
        %v1376 = vrot.slane %v913, %v1375
        %v1377 = vsel %vm985, %v1376, %v1372
        %v1378 = vlaneseq
        %v1379 = vshrl.u32 %v1378, 7
        %v1380 = vsub.s32 %v987, %v1379
        %v1381 = vrot.slane %v915, %v1380
        %v1382 = vsel %vm992, %v1381, %v1377
        %v1383 = vlaneseq
        %v1384 = vshrl.u32 %v1383, 7
        %v1385 = vsub.s32 %v968, %v1384
        %v1386 = vrot.slane %v917, %v1385
        %v1387 = vlaneseq
        %v1388 = vshrl.u32 %v1387, 7
        %v1389 = vsub.s32 %v973, %v1388
        %v1390 = vrot.slane %v919, %v1389
        %v1391 = vsel %vm978, %v1390, %v1386
        %v1392 = vlaneseq
        %v1393 = vshrl.u32 %v1392, 7
        %v1394 = vsub.s32 %v980, %v1393
        %v1395 = vrot.slane %v921, %v1394
        %v1396 = vsel %vm985, %v1395, %v1391
        %v1397 = vlaneseq
        %v1398 = vshrl.u32 %v1397, 7
        %v1399 = vsub.s32 %v987, %v1398
        %v1400 = vrot.slane %v923, %v1399
        %v1401 = vsel %vm992, %v1400, %v1396
        %v1402 = vsel %vm1127, %v1287, %v1268
        %v1403 = vsel %vm1129, %v1306, %v1402
        %v1404 = vsel %vm1131, %v1325, %v1403
        %v1405 = vsel %vm1133, %v1344, %v1404
        %v1406 = vsel %vm1135, %v1363, %v1405
        %v1407 = vsel %vm1137, %v1382, %v1406
        %v1408 = vsel %vm1139, %v1401, %v1407
        %v1409 = vsel %vm1141, %v1408, 0
        %1411 = vmatprep.subr.mxu0 0.0
        %1412 = vmatpush1.msra.mxu0 0.0
        %1413 = vmatprep.subr.mxu0 0.0
        %1414 = vmatpush1.msra.mxu0 0.0
        %1415 = vmatprep.subr.mxu0 0.0
        %1416 = vmatpush1.msra.mxu0 0.0
        %1417 = vmatprep.subr.mxu0 0.0
        %1418 = vmatpush1.msra.mxu0 0.0
        %1419 = vmatprep.subr.mxu0 0.0
        %1420 = vmatpush1.msra.mxu0 0.0
        %1421 = vmatprep.subr.mxu0 0.0
        %1422 = vmatpush1.msra.mxu0 0.0
        %1423 = vmatprep.subr.mxu0 0.0
        %1424 = vmatpush1.msra.mxu0 0.0
        %1425 = vmatprep.subr.mxu0 0.0
        %1426 = vmatpush1.msra.mxu0 0.0
        %1427 = vmatprep.subr.mxu0 0.0
        %1428 = vmatpush1.msra.mxu0 0.0
        %1429 = vmatprep.subr.mxu0 0.0
        %1430 = vmatpush1.msra.mxu0 0.0
        %1431 = vmatprep.subr.mxu0 0.0
        %1432 = vmatpush1.msra.mxu0 0.0
        %1433 = vmatprep.subr.mxu0 0.0
        %1434 = vmatpush1.msra.mxu0 0.0
        %1435 = vmatprep.subr.mxu0 0.0
        %1436 = vmatpush1.msra.mxu0 %v1217
        %1437 = vmatprep.subr.mxu0 0.0
        %1438 = vmatpush1.msra.mxu0 %v1216
        %1439 = vmatprep.subr.mxu0 0.0
        %1440 = vmatpush1.msra.mxu0 %v1215
        %1441 = vmatprep.subr.mxu0 0.0
        %1442 = vmatpush1.msra.mxu0 %v1214
        %1443 = vmatprep.subr.mxu0 0.0
        %1444 = vmatpush2.msra.mxu0 0.0
        %1445 = vmatprep.subr.mxu0 0.0
        %1446 = vmatpush2.msra.mxu0 0.0
        %1447 = vmatprep.subr.mxu0 0.0
        %1448 = vmatpush2.msra.mxu0 0.0
        %1449 = vmatprep.subr.mxu0 0.0
        %1450 = vmatpush2.msra.mxu0 0.0
        %1451 = vmatprep.subr.mxu0 0.0
        %1452 = vmatpush2.msra.mxu0 0.0
        %1453 = vmatprep.subr.mxu0 0.0
        %1454 = vmatpush2.msra.mxu0 0.0
        %1455 = vmatprep.subr.mxu0 0.0
        %1456 = vmatpush2.msra.mxu0 0.0
        %1457 = vmatprep.subr.mxu0 0.0
        %1458 = vmatpush2.msra.mxu0 0.0
        %1459 = vmatprep.subr.mxu0 0.0
        %1460 = vmatpush2.msra.mxu0 0.0
        %1461 = vmatprep.subr.mxu0 0.0
        %1462 = vmatpush2.msra.mxu0 0.0
        %1463 = vmatprep.subr.mxu0 0.0
        %1464 = vmatpush2.msra.mxu0 0.0
        %1465 = vmatprep.subr.mxu0 0.0
        %1466 = vmatpush2.msra.mxu0 0.0
        %1467 = vmatprep.subr.mxu0 0.0
        %1468 = vmatpush2.msra.mxu0 0.0
        %1469 = vmatprep.subr.mxu0 0.0
        %1470 = vmatpush2.msra.mxu0 0.0
        %1471 = vmatprep.subr.mxu0 0.0
        %1472 = vmatpush2.msra.mxu0 0.0
        %1473 = vmatprep.subr.mxu0 0.0
        %1474 = vmatpush2.msra.mxu0 0.0
        %1475 = vmatprep.mubr.f32.mxu0 0.0
        %1476 = vmatmul.mubr.f32.gmra.mxu0 %v1409
        %v1477 = vpop.f32.mrf.mxu0
        %v1478 = vadd.f32 0.0, %v1477
        %v1479 = vpop.f32.mrf.mxu0
        %1480 = vdwg.mxu0
        %v1481 = vmul.f32 %v1478, %v1478
        %vm1482 = vcmask 64512
        %v1483 = vsel %vm1482, %v1481, 0.0
        %1484 = vadd.xlane.f32.xlu0 %v1483
        %v1485 = vpop.xlane.xlu0 %1484
        %v1486 = vmax.f32 %v1485, 1e-24
        %v1487 = vrsqrt.pop %v1486
        %v1488 = vmul.f32 %v1478, %v1487
        %v1489 = vld [vmem:[%s4] sm:$0xff]
        %v1490 = vld [vmem:[%s4 + $0x8] sm:$0xff]
        %v1491 = vld [vmem:[%s4 + $0x10] sm:$0xff]
        %v1492 = vld [vmem:[%s4 + $0x18] sm:$0xff]
        %v1525 = vlaneseq
        %v1526 = vshrl.u32 %v1525, 7
        %v1527 = vsub.s32 %v968, %v1526
        %v1528 = vrot.slane %v446, %v1527
        %v1529 = vlaneseq
        %v1530 = vshrl.u32 %v1529, 7
        %v1531 = vsub.s32 %v973, %v1530
        %v1532 = vrot.slane %v449, %v1531
        %v1533 = vsel %vm978, %v1532, %v1528
        %v1534 = vlaneseq
        %v1535 = vshrl.u32 %v1534, 7
        %v1536 = vsub.s32 %v980, %v1535
        %v1537 = vrot.slane %v452, %v1536
        %v1538 = vsel %vm985, %v1537, %v1533
        %v1539 = vlaneseq
        %v1540 = vshrl.u32 %v1539, 7
        %v1541 = vsub.s32 %v987, %v1540
        %v1542 = vrot.slane %v455, %v1541
        %v1543 = vsel %vm992, %v1542, %v1538
        %v1544 = vlaneseq
        %v1545 = vshrl.u32 %v1544, 7
        %v1546 = vsub.s32 %v968, %v1545
        %v1547 = vrot.slane %v458, %v1546
        %v1548 = vlaneseq
        %v1549 = vshrl.u32 %v1548, 7
        %v1550 = vsub.s32 %v973, %v1549
        %v1551 = vrot.slane %v461, %v1550
        %v1552 = vsel %vm978, %v1551, %v1547
        %v1553 = vlaneseq
        %v1554 = vshrl.u32 %v1553, 7
        %v1555 = vsub.s32 %v980, %v1554
        %v1556 = vrot.slane %v464, %v1555
        %v1557 = vsel %vm985, %v1556, %v1552
        %v1558 = vlaneseq
        %v1559 = vshrl.u32 %v1558, 7
        %v1560 = vsub.s32 %v987, %v1559
        %v1561 = vrot.slane %v467, %v1560
        %v1562 = vsel %vm992, %v1561, %v1557
        %v1563 = vlaneseq
        %v1564 = vshrl.u32 %v1563, 7
        %v1565 = vsub.s32 %v968, %v1564
        %v1566 = vrot.slane %v470, %v1565
        %v1567 = vlaneseq
        %v1568 = vshrl.u32 %v1567, 7
        %v1569 = vsub.s32 %v973, %v1568
        %v1570 = vrot.slane %v473, %v1569
        %v1571 = vsel %vm978, %v1570, %v1566
        %v1572 = vlaneseq
        %v1573 = vshrl.u32 %v1572, 7
        %v1574 = vsub.s32 %v980, %v1573
        %v1575 = vrot.slane %v476, %v1574
        %v1576 = vsel %vm985, %v1575, %v1571
        %v1577 = vlaneseq
        %v1578 = vshrl.u32 %v1577, 7
        %v1579 = vsub.s32 %v987, %v1578
        %v1580 = vrot.slane %v479, %v1579
        %v1581 = vsel %vm992, %v1580, %v1576
        %v1582 = vlaneseq
        %v1583 = vshrl.u32 %v1582, 7
        %v1584 = vsub.s32 %v968, %v1583
        %v1585 = vrot.slane %v482, %v1584
        %v1586 = vlaneseq
        %v1587 = vshrl.u32 %v1586, 7
        %v1588 = vsub.s32 %v973, %v1587
        %v1589 = vrot.slane %v485, %v1588
        %v1590 = vsel %vm978, %v1589, %v1585
        %v1591 = vlaneseq
        %v1592 = vshrl.u32 %v1591, 7
        %v1593 = vsub.s32 %v980, %v1592
        %v1594 = vrot.slane %v488, %v1593
        %v1595 = vsel %vm985, %v1594, %v1590
        %v1596 = vlaneseq
        %v1597 = vshrl.u32 %v1596, 7
        %v1598 = vsub.s32 %v987, %v1597
        %v1599 = vrot.slane %v491, %v1598
        %v1600 = vsel %vm992, %v1599, %v1595
        %v1601 = vlaneseq
        %v1602 = vshrl.u32 %v1601, 7
        %v1603 = vsub.s32 %v968, %v1602
        %v1604 = vrot.slane %v494, %v1603
        %v1605 = vlaneseq
        %v1606 = vshrl.u32 %v1605, 7
        %v1607 = vsub.s32 %v973, %v1606
        %v1608 = vrot.slane %v497, %v1607
        %v1609 = vsel %vm978, %v1608, %v1604
        %v1610 = vlaneseq
        %v1611 = vshrl.u32 %v1610, 7
        %v1612 = vsub.s32 %v980, %v1611
        %v1613 = vrot.slane %v500, %v1612
        %v1614 = vsel %vm985, %v1613, %v1609
        %v1615 = vlaneseq
        %v1616 = vshrl.u32 %v1615, 7
        %v1617 = vsub.s32 %v987, %v1616
        %v1618 = vrot.slane %v503, %v1617
        %v1619 = vsel %vm992, %v1618, %v1614
        %v1620 = vlaneseq
        %v1621 = vshrl.u32 %v1620, 7
        %v1622 = vsub.s32 %v968, %v1621
        %v1623 = vrot.slane %v506, %v1622
        %v1624 = vlaneseq
        %v1625 = vshrl.u32 %v1624, 7
        %v1626 = vsub.s32 %v973, %v1625
        %v1627 = vrot.slane %v509, %v1626
        %v1628 = vsel %vm978, %v1627, %v1623
        %v1629 = vlaneseq
        %v1630 = vshrl.u32 %v1629, 7
        %v1631 = vsub.s32 %v980, %v1630
        %v1632 = vrot.slane %v512, %v1631
        %v1633 = vsel %vm985, %v1632, %v1628
        %v1634 = vlaneseq
        %v1635 = vshrl.u32 %v1634, 7
        %v1636 = vsub.s32 %v987, %v1635
        %v1637 = vrot.slane %v515, %v1636
        %v1638 = vsel %vm992, %v1637, %v1633
        %v1639 = vlaneseq
        %v1640 = vshrl.u32 %v1639, 7
        %v1641 = vsub.s32 %v968, %v1640
        %v1642 = vrot.slane %v518, %v1641
        %v1643 = vlaneseq
        %v1644 = vshrl.u32 %v1643, 7
        %v1645 = vsub.s32 %v973, %v1644
        %v1646 = vrot.slane %v521, %v1645
        %v1647 = vsel %vm978, %v1646, %v1642
        %v1648 = vlaneseq
        %v1649 = vshrl.u32 %v1648, 7
        %v1650 = vsub.s32 %v980, %v1649
        %v1651 = vrot.slane %v524, %v1650
        %v1652 = vsel %vm985, %v1651, %v1647
        %v1653 = vlaneseq
        %v1654 = vshrl.u32 %v1653, 7
        %v1655 = vsub.s32 %v987, %v1654
        %v1656 = vrot.slane %v527, %v1655
        %v1657 = vsel %vm992, %v1656, %v1652
        %v1658 = vlaneseq
        %v1659 = vshrl.u32 %v1658, 7
        %v1660 = vsub.s32 %v968, %v1659
        %v1661 = vrot.slane %v530, %v1660
        %v1662 = vlaneseq
        %v1663 = vshrl.u32 %v1662, 7
        %v1664 = vsub.s32 %v973, %v1663
        %v1665 = vrot.slane %v533, %v1664
        %v1666 = vsel %vm978, %v1665, %v1661
        %v1667 = vlaneseq
        %v1668 = vshrl.u32 %v1667, 7
        %v1669 = vsub.s32 %v980, %v1668
        %v1670 = vrot.slane %v536, %v1669
        %v1671 = vsel %vm985, %v1670, %v1666
        %v1672 = vlaneseq
        %v1673 = vshrl.u32 %v1672, 7
        %v1674 = vsub.s32 %v987, %v1673
        %v1675 = vrot.slane %v539, %v1674
        %v1676 = vsel %vm992, %v1675, %v1671
        %v1677 = vsel %vm1127, %v1562, %v1543
        %v1678 = vsel %vm1129, %v1581, %v1677
        %v1679 = vsel %vm1131, %v1600, %v1678
        %v1680 = vsel %vm1133, %v1619, %v1679
        %v1681 = vsel %vm1135, %v1638, %v1680
        %v1682 = vsel %vm1137, %v1657, %v1681
        %v1683 = vsel %vm1139, %v1676, %v1682
        %v1684 = vsel %vm1141, %v1683, 0
        %1686 = vmatprep.subr.mxu0 0.0
        %1687 = vmatpush1.msra.mxu0 0.0
        %1688 = vmatprep.subr.mxu0 0.0
        %1689 = vmatpush1.msra.mxu0 0.0
        %1690 = vmatprep.subr.mxu0 0.0
        %1691 = vmatpush1.msra.mxu0 0.0
        %1692 = vmatprep.subr.mxu0 0.0
        %1693 = vmatpush1.msra.mxu0 0.0
        %1694 = vmatprep.subr.mxu0 0.0
        %1695 = vmatpush1.msra.mxu0 0.0
        %1696 = vmatprep.subr.mxu0 0.0
        %1697 = vmatpush1.msra.mxu0 0.0
        %1698 = vmatprep.subr.mxu0 0.0
        %1699 = vmatpush1.msra.mxu0 0.0
        %1700 = vmatprep.subr.mxu0 0.0
        %1701 = vmatpush1.msra.mxu0 0.0
        %1702 = vmatprep.subr.mxu0 0.0
        %1703 = vmatpush1.msra.mxu0 0.0
        %1704 = vmatprep.subr.mxu0 0.0
        %1705 = vmatpush1.msra.mxu0 0.0
        %1706 = vmatprep.subr.mxu0 0.0
        %1707 = vmatpush1.msra.mxu0 0.0
        %1708 = vmatprep.subr.mxu0 0.0
        %1709 = vmatpush1.msra.mxu0 0.0
        %1710 = vmatprep.subr.mxu0 0.0
        %1711 = vmatpush1.msra.mxu0 %v1492
        %1712 = vmatprep.subr.mxu0 0.0
        %1713 = vmatpush1.msra.mxu0 %v1491
        %1714 = vmatprep.subr.mxu0 0.0
        %1715 = vmatpush1.msra.mxu0 %v1490
        %1716 = vmatprep.subr.mxu0 0.0
        %1717 = vmatpush1.msra.mxu0 %v1489
        %1718 = vmatprep.subr.mxu0 0.0
        %1719 = vmatpush2.msra.mxu0 0.0
        %1720 = vmatprep.subr.mxu0 0.0
        %1721 = vmatpush2.msra.mxu0 0.0
        %1722 = vmatprep.subr.mxu0 0.0
        %1723 = vmatpush2.msra.mxu0 0.0
        %1724 = vmatprep.subr.mxu0 0.0
        %1725 = vmatpush2.msra.mxu0 0.0
        %1726 = vmatprep.subr.mxu0 0.0
        %1727 = vmatpush2.msra.mxu0 0.0
        %1728 = vmatprep.subr.mxu0 0.0
        %1729 = vmatpush2.msra.mxu0 0.0
        %1730 = vmatprep.subr.mxu0 0.0
        %1731 = vmatpush2.msra.mxu0 0.0
        %1732 = vmatprep.subr.mxu0 0.0
        %1733 = vmatpush2.msra.mxu0 0.0
        %1734 = vmatprep.subr.mxu0 0.0
        %1735 = vmatpush2.msra.mxu0 0.0
        %1736 = vmatprep.subr.mxu0 0.0
        %1737 = vmatpush2.msra.mxu0 0.0
        %1738 = vmatprep.subr.mxu0 0.0
        %1739 = vmatpush2.msra.mxu0 0.0
        %1740 = vmatprep.subr.mxu0 0.0
        %1741 = vmatpush2.msra.mxu0 0.0
        %1742 = vmatprep.subr.mxu0 0.0
        %1743 = vmatpush2.msra.mxu0 0.0
        %1744 = vmatprep.subr.mxu0 0.0
        %1745 = vmatpush2.msra.mxu0 0.0
        %1746 = vmatprep.subr.mxu0 0.0
        %1747 = vmatpush2.msra.mxu0 0.0
        %1748 = vmatprep.subr.mxu0 0.0
        %1749 = vmatpush2.msra.mxu0 0.0
        %1750 = vmatprep.mubr.f32.mxu0 0.0
        %1751 = vmatmul.mubr.f32.gmra.mxu0 %v1684
        %v1752 = vpop.f32.mrf.mxu0
        %v1753 = vadd.f32 0.0, %v1752
        %v1754 = vpop.f32.mrf.mxu0
        %1755 = vdwg.mxu0
        %v1756 = vmul.f32 %v1753, %v1753
        %v1757 = vsel %vm1482, %v1756, 0.0
        %1758 = vadd.xlane.f32.xlu0 %v1757
        %v1759 = vpop.xlane.xlu0 %1758
        %v1760 = vmax.f32 %v1759, 1e-24
        %v1761 = vrsqrt.pop %v1760
        %v1762 = vmul.f32 %v1753, %v1761
        %1763 = vst.msk [vmem:[%s274] sm:$0xff] %vm1482, %v1488
        %1765 = vrot.lane.b32.xlu0 %v1762, 8
        %v1766 = vpop.permute.xlu0 %1765
        %1768 = vst.msk [vmem:[%s274] sm:$0xff] %vm978, %v1766
        %vm1769 = vcmask 130048
        %1770 = vst.msk [vmem:[%s281] sm:$0xff] %vm1769, %v1211
        %s1771 = sand.u32 %s145, 1
        %s1772 = scalar_lea.sflag [#allocation4], %s1771
        %s1773 = sand.u32 %s145, 1
        %s1774 = smul.addr %s1773, 8
        %s1775 = scalar_lea.vmem [#allocation5], %s1774
        %s1776 = sand.u32 %s171, 1
        %s1777 = scalar_lea.sflag [#allocation7], %s1776
        %s1778 = sand.u32 %s171, 1
        %s1779 = smul.addr %s1778, 8
        %s1780 = scalar_lea.vmem [#allocation6], %s1779
        // Predicated region
        $region45: #{tpu_custom_call.1} parent=39 // pred_check
          %p1781 = pneg %p155
        $region46: #{tpu_custom_call.1} parent=39 // pred_check_branch
          %1783 = sbr.rel (%p1781) target = $region48
        $region47: #{tpu_custom_call.1} parent=39 // pred_region
          %s1785 = ssub.s32 128, 128
          %1786 = vsyncadd %s1772, %s1785
          %s1787 = smul.addr %s27, 128
          %s1788 = scalar_lea.hbm %s5, %s1787
          %s1790 = sshll.u32 %s1775, 4
          %s1791 = int_to_ptr.vmem [resolvable:$true] %s1790
          %1793 = dma.vmem_to_hbm [thread:$0]  %s1791, 128, %s1788, %s1772
        $region48: #{tpu_custom_call.1} parent=39 // pred_fallthru
          _
        // Predicated region
        $region49: #{tpu_custom_call.1} parent=39 // pred_check
          %p1794 = pneg %p181
        $region50: #{tpu_custom_call.1} parent=39 // pred_check_branch
          %1796 = sbr.rel (%p1794) target = $region52
        $region51: #{tpu_custom_call.1} parent=39 // pred_region
          %s1798 = ssub.s32 128, 128
          %1799 = vsyncadd %s1777, %s1798
          %s1800 = smul.addr %s27, 128
          %s1801 = scalar_lea.hbm %s6, %s1800
          %s1803 = sshll.u32 %s1780, 4
          %s1804 = int_to_ptr.vmem [resolvable:$true] %s1803
          %1806 = dma.vmem_to_hbm [thread:$0]  %s1804, 128, %s1801, %s1777
        $region52: #{tpu_custom_call.1} parent=39 // pred_fallthru
          _
      $region40: #{tpu_custom_call.1} parent=5 // pred_fallthru
        _
      %p1807 = scmp.le.s32.totalorder 2, %s22
      // Predicated region
      $region53: #{tpu_custom_call.1} parent=5 // pred_check
        %p1808 = pneg %p1807
      $region54: #{tpu_custom_call.1} parent=5 // pred_check_branch
        %1810 = sbr.rel (%p1808) target = $region56
      $region55: #{tpu_custom_call.1} parent=5 // pred_region
        %s1811 = ssub.s32 %s22, 2
        // Predicated region
        $region57: #{tpu_custom_call.1} parent=55 // pred_check
          %p1812 = pneg %p161
        $region58: #{tpu_custom_call.1} parent=55 // pred_check_branch
          %1814 = sbr.rel (%p1812) target = $region60
        $region59: #{tpu_custom_call.1} parent=55 // pred_region
          %s1815 = sand.u32 %s146, 1
          %s1816 = scalar_lea.sflag [#allocation4], %s1815
          %s1817 = sand.u32 %s146, 1
          %s1818 = smul.addr %s1817, 8
          %s1819 = scalar_lea.vmem [#allocation5], %s1818
          %1820 = dma.done %s1816, 128
        $region60: #{tpu_custom_call.1} parent=55 // pred_fallthru
          _
        // Predicated region
        $region61: #{tpu_custom_call.1} parent=55 // pred_check
          %p1821 = pneg %p187
        $region62: #{tpu_custom_call.1} parent=55 // pred_check_branch
          %1823 = sbr.rel (%p1821) target = $region64
        $region63: #{tpu_custom_call.1} parent=55 // pred_region
          %s1824 = sand.u32 %s172, 1
          %s1825 = scalar_lea.sflag [#allocation7], %s1824
          %s1826 = sand.u32 %s172, 1
          %s1827 = smul.addr %s1826, 8
          %s1828 = scalar_lea.vmem [#allocation6], %s1827
          %1829 = dma.done %s1825, 128
        $region64: #{tpu_custom_call.1} parent=55 // pred_fallthru
          _
      $region56: #{tpu_custom_call.1} parent=5 // pred_fallthru
        _
    $region6: #{tpu_custom_call.1} parent=1 // loop_footer
      %s26 = sadd.s32 1, %s22
    $region7: #{tpu_custom_call.1} parent=1 // loop_footer_branch
      %21 = sbr.rel target = $region3
    $region8: #{tpu_custom_call.1} parent=1 // loop_exit
      _
    %1830 = vsyncpa [#allocation3], 1
    %s1831 = scalar_lea.sflag [#allocation3], 1
    %1832 = vsyncpa %s1831, 1
    %1833 = vsyncpa [#allocation4], 1
    %s1834 = scalar_lea.sflag [#allocation4], 1
    %1835 = vsyncpa %s1834, 1
    %1836 = vsyncpa [#allocation7], 1
    %s1837 = scalar_lea.sflag [#allocation7], 1
    %1838 = vsyncpa %s1837, 1

// kernel: tpu_custom_call.1
$region0: #{tpu_custom_call.1}
  #allocation0 [shape = 'u32[]', space=smem, size = 0x4, offset = 0x4, fixed_abs, tag = 'smem constant byte address 0x4 - core index']
  #allocation1 [shape = 'u32[144,128]{1,0:T(1,128)}', space=vmem, size = 0x12000, scoped, tag = 'internal scratch']
  %s0 = inlined_call_operand.hbm [shape: f32[16,32,64], index: 0, kind: input, shape index: {}]
  %s1 = inlined_call_operand.vmem [shape: f32[32,16], index: 1, kind: input, shape index: {}]
  %s2 = inlined_call_operand.vmem [shape: f32[1,16], index: 2, kind: input, shape index: {}]
  %s3 = inlined_call_operand.vmem [shape: f32[32,8], index: 3, kind: input, shape index: {}]
  %s4 = inlined_call_operand.vmem [shape: f32[32,8], index: 4, kind: input, shape index: {}]
  %s5 = inlined_call_operand.hbm [shape: f32[16,16], index: 5, kind: output, shape index: {0}]
  %s6 = inlined_call_operand.hbm [shape: f32[16,16], index: 6, kind: output, shape index: {1}]
  %7 = xla_tuple %s5, %s6
  %s8 = sld [smem:[#allocation0]]
  $region65: #{tpu_custom_call.1} parent=0
    _
  %s10 = ssub.s32 1, %s8
  %s11 = scalar_select 0, %s10, %s8
  $region1: #{tpu_custom_call.1} parent=0
    #allocation2 [shape = 'u8[262144]{0}', space=vmem, size = 0x40000, scoped, tag = 'input window, operand 0']
    #allocation3 [shape = 's32[2]{0}', space=sflag, size = 0x8, scoped, tag = 'scoped memory for tpu_custom_call.1']
    #allocation4 [shape = 's32[2]{0}', space=sflag, size = 0x8, scoped, tag = 'scoped memory for tpu_custom_call.1']
    #allocation5 [shape = 'u8[8192]{0}', space=vmem, size = 0x2000, scoped, tag = 'output window, operand 0']
    #allocation6 [shape = 'u8[8192]{0}', space=vmem, size = 0x2000, scoped, tag = 'output window, operand 1']
    #allocation7 [shape = 's32[2]{0}', space=sflag, size = 0x8, scoped, tag = 'scoped memory for tpu_custom_call.1']
    %12 = vsyncpa [#allocation3], 0
    %s13 = scalar_lea.sflag [#allocation3], 1
    %14 = vsyncpa %s13, 0
    %15 = vsyncpa [#allocation4], 0
    %s16 = scalar_lea.sflag [#allocation4], 1
    %17 = vsyncpa %s16, 0
    %18 = vsyncpa [#allocation7], 0
    %s19 = scalar_lea.sflag [#allocation7], 1
    %20 = vsyncpa %s19, 0
    loop: start=0, step=1, limit=4
    $region2: #{tpu_custom_call.1} parent=1 // loop_pre_header
      _
    $region3: #{tpu_custom_call.1} parent=1 // loop_header
      %s22 = sphi 0, %s26
      %p23 = scmp.ge.s32.totalorder %s22, 4
      %s32 = sphi 0, %s34
      %s35 = sphi 0, %s32
      %s36 = sphi 0, %s35
      %s52 = sphi 0, %s36
      %s56 = sphi 0, %s56
      %s58 = sphi 0, %s56
      %s59 = sphi 0, %s58
      %s73 = sphi 0, %s59
      %s77 = sphi 0, %s77
      %s79 = sphi 0, %s77
      %s80 = sphi 0, %s79
      %s94 = sphi 0, %s80
      %s98 = sphi 0, %s98
      %s100 = sphi 0, %s98
      %s101 = sphi 0, %s100
      %s115 = sphi 0, %s101
      %s119 = sphi 0, %s119
      %s121 = sphi 0, %s119
      %s122 = sphi 0, %s121
      %s136 = sphi 0, %s122
      %s142 = sphi 0, %s144
      %s145 = sphi 0, %s142
      %s146 = sphi 0, %s145
      %s162 = sphi 0, %s146
      %s168 = sphi 0, %s170
      %s171 = sphi 0, %s168
      %s172 = sphi 0, %s171
      %s188 = sphi 0, %s172
    $region4: #{tpu_custom_call.1} parent=1 // loop_header_branch
      %25 = sbr.rel (%p23) target = $region8
    $region5: #{tpu_custom_call.1} parent=1 // loop_body
      %s27 = ssub.s32 %s22, 1
      %s28 = ssub.s32 %s22, 2
      %s29 = sadd.s32 %s22, 1
      %s30 = ssub.s32 %s22, %s29
      %p31 = scmp.eq.s32.totalorder %s30, 0
      %s33 = sadd.s32 %s32, 1
      %s34 = scalar_select %p31, %s32, %s33
      %p37 = pneg %p31
      %p38 = scmp.eq.s32.totalorder %s22, 1
      %p39 = por %p37, %p38
      %p40 = scmp.ne.s32.totalorder %s32, %s35
      %p41 = scmp.eq.s32.totalorder %s22, 0
      %p42 = por %p40, %p41
      %p43 = scmp.ne.s32.totalorder %s32, %s35
      %p44 = scmp.eq.s32.totalorder %s27, 1
      %p45 = por %p43, %p44
      %p46 = scmp.ne.s32.totalorder %s35, %s36
      %p47 = scmp.eq.s32.totalorder %s27, 0
      %p48 = por %p46, %p47
      %p49 = scmp.ne.s32.totalorder %s35, %s36
      %p50 = scmp.eq.s32.totalorder %s28, 1
      %p51 = por %p49, %p50
      %p53 = scmp.ne.s32.totalorder %s36, %s52
      %p54 = scmp.eq.s32.totalorder %s28, 0
      %p55 = por %p53, %p54
      %s57 = sadd.s32 %s56, 1
      %p60 = scmp.eq.s32.totalorder %s22, 1
      %p61 = scmp.ne.s32.totalorder %s56, %s58
      %p62 = scmp.eq.s32.totalorder %s22, 0
      %p63 = por %p61, %p62
      %p64 = scmp.ne.s32.totalorder %s56, %s58
      %p65 = scmp.eq.s32.totalorder %s27, 1
      %p66 = por %p64, %p65
      %p67 = scmp.ne.s32.totalorder %s58, %s59
      %p68 = scmp.eq.s32.totalorder %s27, 0
      %p69 = por %p67, %p68
      %p70 = scmp.ne.s32.totalorder %s58, %s59
      %p71 = scmp.eq.s32.totalorder %s28, 1
      %p72 = por %p70, %p71
      %p74 = scmp.ne.s32.totalorder %s59, %s73
      %p75 = scmp.eq.s32.totalorder %s28, 0
      %p76 = por %p74, %p75
      %s78 = sadd.s32 %s77, 1
      %p81 = scmp.eq.s32.totalorder %s22, 1
      %p82 = scmp.ne.s32.totalorder %s77, %s79
      %p83 = scmp.eq.s32.totalorder %s22, 0
      %p84 = por %p82, %p83
      %p85 = scmp.ne.s32.totalorder %s77, %s79
      %p86 = scmp.eq.s32.totalorder %s27, 1
      %p87 = por %p85, %p86
      %p88 = scmp.ne.s32.totalorder %s79, %s80
      %p89 = scmp.eq.s32.totalorder %s27, 0
      %p90 = por %p88, %p89
      %p91 = scmp.ne.s32.totalorder %s79, %s80
      %p92 = scmp.eq.s32.totalorder %s28, 1
      %p93 = por %p91, %p92
      %p95 = scmp.ne.s32.totalorder %s80, %s94
      %p96 = scmp.eq.s32.totalorder %s28, 0
      %p97 = por %p95, %p96
      %s99 = sadd.s32 %s98, 1
      %p102 = scmp.eq.s32.totalorder %s22, 1
      %p103 = scmp.ne.s32.totalorder %s98, %s100
      %p104 = scmp.eq.s32.totalorder %s22, 0
      %p105 = por %p103, %p104
      %p106 = scmp.ne.s32.totalorder %s98, %s100
      %p107 = scmp.eq.s32.totalorder %s27, 1
      %p108 = por %p106, %p107
      %p109 = scmp.ne.s32.totalorder %s100, %s101
      %p110 = scmp.eq.s32.totalorder %s27, 0
      %p111 = por %p109, %p110
      %p112 = scmp.ne.s32.totalorder %s100, %s101
      %p113 = scmp.eq.s32.totalorder %s28, 1
      %p114 = por %p112, %p113
      %p116 = scmp.ne.s32.totalorder %s101, %s115
      %p117 = scmp.eq.s32.totalorder %s28, 0
      %p118 = por %p116, %p117
      %s120 = sadd.s32 %s119, 1
      %p123 = scmp.eq.s32.totalorder %s22, 1
      %p124 = scmp.ne.s32.totalorder %s119, %s121
      %p125 = scmp.eq.s32.totalorder %s22, 0
      %p126 = por %p124, %p125
      %p127 = scmp.ne.s32.totalorder %s119, %s121
      %p128 = scmp.eq.s32.totalorder %s27, 1
      %p129 = por %p127, %p128
      %p130 = scmp.ne.s32.totalorder %s121, %s122
      %p131 = scmp.eq.s32.totalorder %s27, 0
      %p132 = por %p130, %p131
      %p133 = scmp.ne.s32.totalorder %s121, %s122
      %p134 = scmp.eq.s32.totalorder %s28, 1
      %p135 = por %p133, %p134
      %p137 = scmp.ne.s32.totalorder %s122, %s136
      %p138 = scmp.eq.s32.totalorder %s28, 0
      %p139 = por %p137, %p138
      %s140 = ssub.s32 %s22, %s29
      %p141 = scmp.eq.s32.totalorder %s140, 0
      %s143 = sadd.s32 %s142, 1
      %s144 = scalar_select %p141, %s142, %s143
      %p147 = pneg %p141
      %p148 = scmp.eq.s32.totalorder %s22, 1
      %p149 = por %p147, %p148
      %p150 = scmp.ne.s32.totalorder %s142, %s145
      %p151 = scmp.eq.s32.totalorder %s22, 0
      %p152 = por %p150, %p151
      %p153 = scmp.ne.s32.totalorder %s142, %s145
      %p154 = scmp.eq.s32.totalorder %s27, 1
      %p155 = por %p153, %p154
      %p156 = scmp.ne.s32.totalorder %s145, %s146
      %p157 = scmp.eq.s32.totalorder %s27, 0
      %p158 = por %p156, %p157
      %p159 = scmp.ne.s32.totalorder %s145, %s146
      %p160 = scmp.eq.s32.totalorder %s28, 1
      %p161 = por %p159, %p160
      %p163 = scmp.ne.s32.totalorder %s146, %s162
      %p164 = scmp.eq.s32.totalorder %s28, 0
      %p165 = por %p163, %p164
      %s166 = ssub.s32 %s22, %s29
      %p167 = scmp.eq.s32.totalorder %s166, 0
      %s169 = sadd.s32 %s168, 1
      %s170 = scalar_select %p167, %s168, %s169
      %p173 = pneg %p167
      %p174 = scmp.eq.s32.totalorder %s22, 1
      %p175 = por %p173, %p174
      %p176 = scmp.ne.s32.totalorder %s168, %s171
      %p177 = scmp.eq.s32.totalorder %s22, 0
      %p178 = por %p176, %p177
      %p179 = scmp.ne.s32.totalorder %s168, %s171
      %p180 = scmp.eq.s32.totalorder %s27, 1
      %p181 = por %p179, %p180
      %p182 = scmp.ne.s32.totalorder %s171, %s172
      %p183 = scmp.eq.s32.totalorder %s27, 0
      %p184 = por %p182, %p183
      %p185 = scmp.ne.s32.totalorder %s171, %s172
      %p186 = scmp.eq.s32.totalorder %s28, 1
      %p187 = por %p185, %p186
      %p189 = scmp.ne.s32.totalorder %s172, %s188
      %p190 = scmp.eq.s32.totalorder %s28, 0
      %p191 = por %p189, %p190
      %p192 = scmp.le.s32.totalorder 1, %s22
      %p193 = scmp.lt.s32.totalorder %s22, 3
      %p194 = pnand %p192, %p193
      %p195 = pneg %p194
      // Predicated region
      $region9: #{tpu_custom_call.1} parent=5 // pred_check
        _
      $region10: #{tpu_custom_call.1} parent=5 // pred_check_branch
        %197 = sbr.rel (%p194) target = $region12
      $region11: #{tpu_custom_call.1} parent=5 // pred_region
        %s198 = ssub.s32 %s22, 1
        // Predicated region
        $region13: #{tpu_custom_call.1} parent=11 // pred_check
          %p199 = pneg %p69
        $region14: #{tpu_custom_call.1} parent=11 // pred_check_branch
          %201 = sbr.rel (%p199) target = $region16
        $region15: #{tpu_custom_call.1} parent=11 // pred_region
          _
        $region16: #{tpu_custom_call.1} parent=11 // pred_fallthru
          _
        // Predicated region
        $region17: #{tpu_custom_call.1} parent=11 // pred_check
          %p202 = pneg %p90
        $region18: #{tpu_custom_call.1} parent=11 // pred_check_branch
          %204 = sbr.rel (%p202) target = $region20
        $region19: #{tpu_custom_call.1} parent=11 // pred_region
          _
        $region20: #{tpu_custom_call.1} parent=11 // pred_fallthru
          _
        // Predicated region
        $region21: #{tpu_custom_call.1} parent=11 // pred_check
          %p205 = pneg %p111
        $region22: #{tpu_custom_call.1} parent=11 // pred_check_branch
          %207 = sbr.rel (%p205) target = $region24
        $region23: #{tpu_custom_call.1} parent=11 // pred_region
          _
        $region24: #{tpu_custom_call.1} parent=11 // pred_fallthru
          _
        // Predicated region
        $region25: #{tpu_custom_call.1} parent=11 // pred_check
          %p208 = pneg %p132
        $region26: #{tpu_custom_call.1} parent=11 // pred_check_branch
          %210 = sbr.rel (%p208) target = $region28
        $region27: #{tpu_custom_call.1} parent=11 // pred_region
          _
        $region28: #{tpu_custom_call.1} parent=11 // pred_fallthru
          _
      $region12: #{tpu_custom_call.1} parent=5 // pred_fallthru
        _
      %p211 = scmp.lt.s32.totalorder %s22, 2
      // Predicated region
      $region29: #{tpu_custom_call.1} parent=5 // pred_check
        %p212 = pneg %p211
      $region30: #{tpu_custom_call.1} parent=5 // pred_check_branch
        %214 = sbr.rel (%p212) target = $region32
      $region31: #{tpu_custom_call.1} parent=5 // pred_region
        // Predicated region
        $region33: #{tpu_custom_call.1} parent=31 // pred_check
          %p215 = pneg %p42
        $region34: #{tpu_custom_call.1} parent=31 // pred_check_branch
          %217 = sbr.rel (%p215) target = $region36
        $region35: #{tpu_custom_call.1} parent=31 // pred_region
          %s218 = sand.u32 %s32, 1
          %s219 = scalar_lea.sflag [#allocation3], %s218
          %s220 = sand.u32 %s32, 1
          %s221 = smul.addr %s220, 256
          %s222 = scalar_lea.vmem [#allocation2], %s221
          %s223 = smul.u32 8, %s22
          %s225 = ssub.s32 4096, 4096
          %226 = vsyncadd %s219, %s225
          %s227 = smul.addr %s223, 4
          %s228 = smul.addr %s227, 128
          %s229 = scalar_lea.hbm %s0, %s228
          %s230 = sshll.u32 %s222, 4
          %s231 = int_to_ptr.vmem [resolvable:$true] %s230
          %236 = dma.hbm_to_vmem [thread:$0]  %s229, 4096, %s231, %s219, 128, 128, 8
        $region36: #{tpu_custom_call.1} parent=31 // pred_fallthru
          _
      $region32: #{tpu_custom_call.1} parent=5 // pred_fallthru
        _
      %p237 = scmp.le.s32.totalorder 1, %s22
      %p238 = scmp.lt.s32.totalorder %s22, 3
      %p239 = pnand %p237, %p238
      %p240 = pneg %p239
      // Predicated region
      $region37: #{tpu_custom_call.1} parent=5 // pred_check
        _
      $region38: #{tpu_custom_call.1} parent=5 // pred_check_branch
        %242 = sbr.rel (%p239) target = $region40
      $region39: #{tpu_custom_call.1} parent=5 // pred_region
        %s243 = ssub.s32 %s22, 1
        %s244 = sand.u32 %s35, 1
        %s245 = scalar_lea.sflag [#allocation3], %s244
        %s246 = sand.u32 %s35, 1
        %s247 = smul.addr %s246, 256
        %s248 = scalar_lea.vmem [#allocation2], %s247
        // Predicated region
        $region41: #{tpu_custom_call.1} parent=39 // pred_check
          %p249 = pneg %p48
        $region42: #{tpu_custom_call.1} parent=39 // pred_check_branch
          %251 = sbr.rel (%p249) target = $region44
        $region43: #{tpu_custom_call.1} parent=39 // pred_region
          %252 = dma.done %s245, 4096
        $region44: #{tpu_custom_call.1} parent=39 // pred_fallthru
          _
        %s253 = sand.u32 %s35, 1
        %s254 = scalar_lea.sflag [#allocation3], %s253
        %s255 = sand.u32 %s35, 1
        %s256 = smul.addr %s255, 256
        %s257 = scalar_lea.vmem [#allocation2], %s256
        %p258 = pneg %p48
        %p259 = pneg %p45
        %p260 = pneg %p69
        %p261 = pneg %p66
        %p262 = pneg %p90
        %p263 = pneg %p87
        %p264 = pneg %p111
        %p265 = pneg %p108
        %p266 = pneg %p132
        %p267 = pneg %p129
        %p268 = pneg %p158
        %p269 = pneg %p155
        %s270 = sand.u32 %s145, 1
        %s271 = scalar_lea.sflag [#allocation4], %s270
        %s272 = sand.u32 %s145, 1
        %s273 = smul.addr %s272, 8
        %s274 = scalar_lea.vmem [#allocation5], %s273
        %p275 = pneg %p184
        %p276 = pneg %p181
        %s277 = sand.u32 %s171, 1
        %s278 = scalar_lea.sflag [#allocation7], %s277
        %s279 = sand.u32 %s171, 1
        %s280 = smul.addr %s279, 8
        %s281 = scalar_lea.vmem [#allocation6], %s280
        %s282 = smul.u32 8, %s27
        %v283 = vld [vmem:[%s248] sm:$0xff]
        %v284 = vld [vmem:[%s248 + $0x8] sm:$0xff]
        %v285 = vld [vmem:[%s248 + $0x10] sm:$0xff]
        %v286 = vld [vmem:[%s248 + $0x18] sm:$0xff]
        %v287 = vld [vmem:[%s248 + $0x20] sm:$0xff]
        %v288 = vld [vmem:[%s248 + $0x28] sm:$0xff]
        %v289 = vld [vmem:[%s248 + $0x30] sm:$0xff]
        %v290 = vld [vmem:[%s248 + $0x38] sm:$0xff]
        %v291 = vld [vmem:[%s248 + $0x40] sm:$0xff]
        %v292 = vld [vmem:[%s248 + $0x48] sm:$0xff]
        %v293 = vld [vmem:[%s248 + $0x50] sm:$0xff]
        %v294 = vld [vmem:[%s248 + $0x58] sm:$0xff]
        %v295 = vld [vmem:[%s248 + $0x60] sm:$0xff]
        %v296 = vld [vmem:[%s248 + $0x68] sm:$0xff]
        %v297 = vld [vmem:[%s248 + $0x70] sm:$0xff]
        %v298 = vld [vmem:[%s248 + $0x78] sm:$0xff]
        %v299 = vld [vmem:[%s248 + $0x80] sm:$0xff]
        %v300 = vld [vmem:[%s248 + $0x88] sm:$0xff]
        %v301 = vld [vmem:[%s248 + $0x90] sm:$0xff]
        %v302 = vld [vmem:[%s248 + $0x98] sm:$0xff]
        %v303 = vld [vmem:[%s248 + $0xa0] sm:$0xff]
        %v304 = vld [vmem:[%s248 + $0xa8] sm:$0xff]
        %v305 = vld [vmem:[%s248 + $0xb0] sm:$0xff]
        %v306 = vld [vmem:[%s248 + $0xb8] sm:$0xff]
        %v307 = vld [vmem:[%s248 + $0xc0] sm:$0xff]
        %v308 = vld [vmem:[%s248 + $0xc8] sm:$0xff]
        %v309 = vld [vmem:[%s248 + $0xd0] sm:$0xff]
        %v310 = vld [vmem:[%s248 + $0xd8] sm:$0xff]
        %v311 = vld [vmem:[%s248 + $0xe0] sm:$0xff]
        %v312 = vld [vmem:[%s248 + $0xe8] sm:$0xff]
        %v313 = vld [vmem:[%s248 + $0xf0] sm:$0xff]
        %v314 = vld [vmem:[%s248 + $0xf8] sm:$0xff]
        %vm315 = vcmask 523264
        %v316 = vsel %vm315, %v283, 0.0
        %317 = vadd.xlane.f32.xlu0 %v316
        %v318 = vpop.xlane.xlu0 %317
        %v319 = vsel %vm315, %v284, 0.0
        %320 = vadd.xlane.f32.xlu0 %v319
        %v321 = vpop.xlane.xlu0 %320
        %v322 = vsel %vm315, %v285, 0.0
        %323 = vadd.xlane.f32.xlu0 %v322
        %v324 = vpop.xlane.xlu0 %323
        %v325 = vsel %vm315, %v286, 0.0
        %326 = vadd.xlane.f32.xlu0 %v325
        %v327 = vpop.xlane.xlu0 %326
        %v328 = vsel %vm315, %v287, 0.0
        %329 = vadd.xlane.f32.xlu0 %v328
        %v330 = vpop.xlane.xlu0 %329
        %v331 = vsel %vm315, %v288, 0.0
        %332 = vadd.xlane.f32.xlu0 %v331
        %v333 = vpop.xlane.xlu0 %332
        %v334 = vsel %vm315, %v289, 0.0
        %335 = vadd.xlane.f32.xlu0 %v334
        %v336 = vpop.xlane.xlu0 %335
        %v337 = vsel %vm315, %v290, 0.0
        %338 = vadd.xlane.f32.xlu0 %v337
        %v339 = vpop.xlane.xlu0 %338
        %v340 = vsel %vm315, %v291, 0.0
        %341 = vadd.xlane.f32.xlu0 %v340
        %v342 = vpop.xlane.xlu0 %341
        %v343 = vsel %vm315, %v292, 0.0
        %344 = vadd.xlane.f32.xlu0 %v343
        %v345 = vpop.xlane.xlu0 %344
        %v346 = vsel %vm315, %v293, 0.0
        %347 = vadd.xlane.f32.xlu0 %v346
        %v348 = vpop.xlane.xlu0 %347
        %v349 = vsel %vm315, %v294, 0.0
        %350 = vadd.xlane.f32.xlu0 %v349
        %v351 = vpop.xlane.xlu0 %350
        %v352 = vsel %vm315, %v295, 0.0
        %353 = vadd.xlane.f32.xlu0 %v352
        %v354 = vpop.xlane.xlu0 %353
        %v355 = vsel %vm315, %v296, 0.0
        %356 = vadd.xlane.f32.xlu0 %v355
        %v357 = vpop.xlane.xlu0 %356
        %v358 = vsel %vm315, %v297, 0.0
        %359 = vadd.xlane.f32.xlu0 %v358
        %v360 = vpop.xlane.xlu0 %359
        %v361 = vsel %vm315, %v298, 0.0
        %362 = vadd.xlane.f32.xlu0 %v361
        %v363 = vpop.xlane.xlu0 %362
        %v364 = vsel %vm315, %v299, 0.0
        %365 = vadd.xlane.f32.xlu0 %v364
        %v366 = vpop.xlane.xlu0 %365
        %v367 = vsel %vm315, %v300, 0.0
        %368 = vadd.xlane.f32.xlu0 %v367
        %v369 = vpop.xlane.xlu0 %368
        %v370 = vsel %vm315, %v301, 0.0
        %371 = vadd.xlane.f32.xlu0 %v370
        %v372 = vpop.xlane.xlu0 %371
        %v373 = vsel %vm315, %v302, 0.0
        %374 = vadd.xlane.f32.xlu0 %v373
        %v375 = vpop.xlane.xlu0 %374
        %v376 = vsel %vm315, %v303, 0.0
        %377 = vadd.xlane.f32.xlu0 %v376
        %v378 = vpop.xlane.xlu0 %377
        %v379 = vsel %vm315, %v304, 0.0
        %380 = vadd.xlane.f32.xlu0 %v379
        %v381 = vpop.xlane.xlu0 %380
        %v382 = vsel %vm315, %v305, 0.0
        %383 = vadd.xlane.f32.xlu0 %v382
        %v384 = vpop.xlane.xlu0 %383
        %v385 = vsel %vm315, %v306, 0.0
        %386 = vadd.xlane.f32.xlu0 %v385
        %v387 = vpop.xlane.xlu0 %386
        %v388 = vsel %vm315, %v307, 0.0
        %389 = vadd.xlane.f32.xlu0 %v388
        %v390 = vpop.xlane.xlu0 %389
        %v391 = vsel %vm315, %v308, 0.0
        %392 = vadd.xlane.f32.xlu0 %v391
        %v393 = vpop.xlane.xlu0 %392
        %v394 = vsel %vm315, %v309, 0.0
        %395 = vadd.xlane.f32.xlu0 %v394
        %v396 = vpop.xlane.xlu0 %395
        %v397 = vsel %vm315, %v310, 0.0
        %398 = vadd.xlane.f32.xlu0 %v397
        %v399 = vpop.xlane.xlu0 %398
        %v400 = vsel %vm315, %v311, 0.0
        %401 = vadd.xlane.f32.xlu0 %v400
        %v402 = vpop.xlane.xlu0 %401
        %v403 = vsel %vm315, %v312, 0.0
        %404 = vadd.xlane.f32.xlu0 %v403
        %v405 = vpop.xlane.xlu0 %404
        %v406 = vsel %vm315, %v313, 0.0
        %407 = vadd.xlane.f32.xlu0 %v406
        %v408 = vpop.xlane.xlu0 %407
        %v409 = vsel %vm315, %v314, 0.0
        %410 = vadd.xlane.f32.xlu0 %v409
        %v411 = vpop.xlane.xlu0 %410
        %v412 = vmul.f32 %v318, 0.015625
        %v413 = vmul.f32 %v321, 0.015625
        %v414 = vmul.f32 %v324, 0.015625
        %v415 = vmul.f32 %v327, 0.015625
        %v416 = vmul.f32 %v330, 0.015625
        %v417 = vmul.f32 %v333, 0.015625
        %v418 = vmul.f32 %v336, 0.015625
        %v419 = vmul.f32 %v339, 0.015625
        %v420 = vmul.f32 %v342, 0.015625
        %v421 = vmul.f32 %v345, 0.015625
        %v422 = vmul.f32 %v348, 0.015625
        %v423 = vmul.f32 %v351, 0.015625
        %v424 = vmul.f32 %v354, 0.015625
        %v425 = vmul.f32 %v357, 0.015625
        %v426 = vmul.f32 %v360, 0.015625
        %v427 = vmul.f32 %v363, 0.015625
        %v428 = vmul.f32 %v366, 0.015625
        %v429 = vmul.f32 %v369, 0.015625
        %v430 = vmul.f32 %v372, 0.015625
        %v431 = vmul.f32 %v375, 0.015625
        %v432 = vmul.f32 %v378, 0.015625
        %v433 = vmul.f32 %v381, 0.015625
        %v434 = vmul.f32 %v384, 0.015625
        %v435 = vmul.f32 %v387, 0.015625
        %v436 = vmul.f32 %v390, 0.015625
        %v437 = vmul.f32 %v393, 0.015625
        %v438 = vmul.f32 %v396, 0.015625
        %v439 = vmul.f32 %v399, 0.015625
        %v440 = vmul.f32 %v402, 0.015625
        %v441 = vmul.f32 %v405, 0.015625
        %v442 = vmul.f32 %v408, 0.015625
        %v443 = vmul.f32 %v411, 0.015625
        %v444 = vsel %vm315, %v283, -inf
        %445 = vmax.xlane.f32.xlu0 %v444
        %v446 = vpop.xlane.xlu0 %445
        %v447 = vsel %vm315, %v284, -inf
        %448 = vmax.xlane.f32.xlu0 %v447
        %v449 = vpop.xlane.xlu0 %448
        %v450 = vsel %vm315, %v285, -inf
        %451 = vmax.xlane.f32.xlu0 %v450
        %v452 = vpop.xlane.xlu0 %451
        %v453 = vsel %vm315, %v286, -inf
        %454 = vmax.xlane.f32.xlu0 %v453
        %v455 = vpop.xlane.xlu0 %454
        %v456 = vsel %vm315, %v287, -inf
        %457 = vmax.xlane.f32.xlu0 %v456
        %v458 = vpop.xlane.xlu0 %457
        %v459 = vsel %vm315, %v288, -inf
        %460 = vmax.xlane.f32.xlu0 %v459
        %v461 = vpop.xlane.xlu0 %460
        %v462 = vsel %vm315, %v289, -inf
        %463 = vmax.xlane.f32.xlu0 %v462
        %v464 = vpop.xlane.xlu0 %463
        %v465 = vsel %vm315, %v290, -inf
        %466 = vmax.xlane.f32.xlu0 %v465
        %v467 = vpop.xlane.xlu0 %466
        %v468 = vsel %vm315, %v291, -inf
        %469 = vmax.xlane.f32.xlu0 %v468
        %v470 = vpop.xlane.xlu0 %469
        %v471 = vsel %vm315, %v292, -inf
        %472 = vmax.xlane.f32.xlu0 %v471
        %v473 = vpop.xlane.xlu0 %472
        %v474 = vsel %vm315, %v293, -inf
        %475 = vmax.xlane.f32.xlu0 %v474
        %v476 = vpop.xlane.xlu0 %475
        %v477 = vsel %vm315, %v294, -inf
        %478 = vmax.xlane.f32.xlu0 %v477
        %v479 = vpop.xlane.xlu0 %478
        %v480 = vsel %vm315, %v295, -inf
        %481 = vmax.xlane.f32.xlu0 %v480
        %v482 = vpop.xlane.xlu0 %481
        %v483 = vsel %vm315, %v296, -inf
        %484 = vmax.xlane.f32.xlu0 %v483
        %v485 = vpop.xlane.xlu0 %484
        %v486 = vsel %vm315, %v297, -inf
        %487 = vmax.xlane.f32.xlu0 %v486
        %v488 = vpop.xlane.xlu0 %487
        %v489 = vsel %vm315, %v298, -inf
        %490 = vmax.xlane.f32.xlu0 %v489
        %v491 = vpop.xlane.xlu0 %490
        %v492 = vsel %vm315, %v299, -inf
        %493 = vmax.xlane.f32.xlu0 %v492
        %v494 = vpop.xlane.xlu0 %493
        %v495 = vsel %vm315, %v300, -inf
        %496 = vmax.xlane.f32.xlu0 %v495
        %v497 = vpop.xlane.xlu0 %496
        %v498 = vsel %vm315, %v301, -inf
        %499 = vmax.xlane.f32.xlu0 %v498
        %v500 = vpop.xlane.xlu0 %499
        %v501 = vsel %vm315, %v302, -inf
        %502 = vmax.xlane.f32.xlu0 %v501
        %v503 = vpop.xlane.xlu0 %502
        %v504 = vsel %vm315, %v303, -inf
        %505 = vmax.xlane.f32.xlu0 %v504
        %v506 = vpop.xlane.xlu0 %505
        %v507 = vsel %vm315, %v304, -inf
        %508 = vmax.xlane.f32.xlu0 %v507
        %v509 = vpop.xlane.xlu0 %508
        %v510 = vsel %vm315, %v305, -inf
        %511 = vmax.xlane.f32.xlu0 %v510
        %v512 = vpop.xlane.xlu0 %511
        %v513 = vsel %vm315, %v306, -inf
        %514 = vmax.xlane.f32.xlu0 %v513
        %v515 = vpop.xlane.xlu0 %514
        %v516 = vsel %vm315, %v307, -inf
        %517 = vmax.xlane.f32.xlu0 %v516
        %v518 = vpop.xlane.xlu0 %517
        %v519 = vsel %vm315, %v308, -inf
        %520 = vmax.xlane.f32.xlu0 %v519
        %v521 = vpop.xlane.xlu0 %520
        %v522 = vsel %vm315, %v309, -inf
        %523 = vmax.xlane.f32.xlu0 %v522
        %v524 = vpop.xlane.xlu0 %523
        %v525 = vsel %vm315, %v310, -inf
        %526 = vmax.xlane.f32.xlu0 %v525
        %v527 = vpop.xlane.xlu0 %526
        %v528 = vsel %vm315, %v311, -inf
        %529 = vmax.xlane.f32.xlu0 %v528
        %v530 = vpop.xlane.xlu0 %529
        %v531 = vsel %vm315, %v312, -inf
        %532 = vmax.xlane.f32.xlu0 %v531
        %v533 = vpop.xlane.xlu0 %532
        %v534 = vsel %vm315, %v313, -inf
        %535 = vmax.xlane.f32.xlu0 %v534
        %v536 = vpop.xlane.xlu0 %535
        %v537 = vsel %vm315, %v314, -inf
        %538 = vmax.xlane.f32.xlu0 %v537
        %v539 = vpop.xlane.xlu0 %538
        %v540 = vmax.f32 %v283, 1e-06
        %v541 = vmax.f32 %v284, 1e-06
        %v542 = vmax.f32 %v285, 1e-06
        %v543 = vmax.f32 %v286, 1e-06
        %v544 = vmax.f32 %v287, 1e-06
        %v545 = vmax.f32 %v288, 1e-06
        %v546 = vmax.f32 %v289, 1e-06
        %v547 = vmax.f32 %v290, 1e-06
        %v548 = vmax.f32 %v291, 1e-06
        %v549 = vmax.f32 %v292, 1e-06
        %v550 = vmax.f32 %v293, 1e-06
        %v551 = vmax.f32 %v294, 1e-06
        %v552 = vmax.f32 %v295, 1e-06
        %v553 = vmax.f32 %v296, 1e-06
        %v554 = vmax.f32 %v297, 1e-06
        %v555 = vmax.f32 %v298, 1e-06
        %v556 = vmax.f32 %v299, 1e-06
        %v557 = vmax.f32 %v300, 1e-06
        %v558 = vmax.f32 %v301, 1e-06
        %v559 = vmax.f32 %v302, 1e-06
        %v560 = vmax.f32 %v303, 1e-06
        %v561 = vmax.f32 %v304, 1e-06
        %v562 = vmax.f32 %v305, 1e-06
        %v563 = vmax.f32 %v306, 1e-06
        %v564 = vmax.f32 %v307, 1e-06
        %v565 = vmax.f32 %v308, 1e-06
        %v566 = vmax.f32 %v309, 1e-06
        %v567 = vmax.f32 %v310, 1e-06
        %v568 = vmax.f32 %v311, 1e-06
        %v569 = vmax.f32 %v312, 1e-06
        %v570 = vmax.f32 %v313, 1e-06
        %v571 = vmax.f32 %v314, 1e-06
        %v572 = vmul.f32 %v540, %v540
        %v573 = vmul.f32 %v541, %v541
        %v574 = vmul.f32 %v542, %v542
        %v575 = vmul.f32 %v543, %v543
        %v576 = vmul.f32 %v544, %v544
        %v577 = vmul.f32 %v545, %v545
        %v578 = vmul.f32 %v546, %v546
        %v579 = vmul.f32 %v547, %v547
        %v580 = vmul.f32 %v548, %v548
        %v581 = vmul.f32 %v549, %v549
        %v582 = vmul.f32 %v550, %v550
        %v583 = vmul.f32 %v551, %v551
        %v584 = vmul.f32 %v552, %v552
        %v585 = vmul.f32 %v553, %v553
        %v586 = vmul.f32 %v554, %v554
        %v587 = vmul.f32 %v555, %v555
        %v588 = vmul.f32 %v556, %v556
        %v589 = vmul.f32 %v557, %v557
        %v590 = vmul.f32 %v558, %v558
        %v591 = vmul.f32 %v559, %v559
        %v592 = vmul.f32 %v560, %v560
        %v593 = vmul.f32 %v561, %v561
        %v594 = vmul.f32 %v562, %v562
        %v595 = vmul.f32 %v563, %v563
        %v596 = vmul.f32 %v564, %v564
        %v597 = vmul.f32 %v565, %v565
        %v598 = vmul.f32 %v566, %v566
        %v599 = vmul.f32 %v567, %v567
        %v600 = vmul.f32 %v568, %v568
        %v601 = vmul.f32 %v569, %v569
        %v602 = vmul.f32 %v570, %v570
        %v603 = vmul.f32 %v571, %v571
        %v604 = vmul.f32 %v572, %v540
        %v605 = vmul.f32 %v573, %v541
        %v606 = vmul.f32 %v574, %v542
        %v607 = vmul.f32 %v575, %v543
        %v608 = vmul.f32 %v576, %v544
        %v609 = vmul.f32 %v577, %v545
        %v610 = vmul.f32 %v578, %v546
        %v611 = vmul.f32 %v579, %v547
        %v612 = vmul.f32 %v580, %v548
        %v613 = vmul.f32 %v581, %v549
        %v614 = vmul.f32 %v582, %v550
        %v615 = vmul.f32 %v583, %v551
        %v616 = vmul.f32 %v584, %v552
        %v617 = vmul.f32 %v585, %v553
        %v618 = vmul.f32 %v586, %v554
        %v619 = vmul.f32 %v587, %v555
        %v620 = vmul.f32 %v588, %v556
        %v621 = vmul.f32 %v589, %v557
        %v622 = vmul.f32 %v590, %v558
        %v623 = vmul.f32 %v591, %v559
        %v624 = vmul.f32 %v592, %v560
        %v625 = vmul.f32 %v593, %v561
        %v626 = vmul.f32 %v594, %v562
        %v627 = vmul.f32 %v595, %v563
        %v628 = vmul.f32 %v596, %v564
        %v629 = vmul.f32 %v597, %v565
        %v630 = vmul.f32 %v598, %v566
        %v631 = vmul.f32 %v599, %v567
        %v632 = vmul.f32 %v600, %v568
        %v633 = vmul.f32 %v601, %v569
        %v634 = vmul.f32 %v602, %v570
        %v635 = vmul.f32 %v603, %v571
        %v636 = vsel %vm315, %v604, 0.0
        %637 = vadd.xlane.f32.xlu0 %v636
        %v638 = vpop.xlane.xlu0 %637
        %v639 = vsel %vm315, %v605, 0.0
        %640 = vadd.xlane.f32.xlu0 %v639
        %v641 = vpop.xlane.xlu0 %640
        %v642 = vsel %vm315, %v606, 0.0
        %643 = vadd.xlane.f32.xlu0 %v642
        %v644 = vpop.xlane.xlu0 %643
        %v645 = vsel %vm315, %v607, 0.0
        %646 = vadd.xlane.f32.xlu0 %v645
        %v647 = vpop.xlane.xlu0 %646
        %v648 = vsel %vm315, %v608, 0.0
        %649 = vadd.xlane.f32.xlu0 %v648
        %v650 = vpop.xlane.xlu0 %649
        %v651 = vsel %vm315, %v609, 0.0
        %652 = vadd.xlane.f32.xlu0 %v651
        %v653 = vpop.xlane.xlu0 %652
        %v654 = vsel %vm315, %v610, 0.0
        %655 = vadd.xlane.f32.xlu0 %v654
        %v656 = vpop.xlane.xlu0 %655
        %v657 = vsel %vm315, %v611, 0.0
        %658 = vadd.xlane.f32.xlu0 %v657
        %v659 = vpop.xlane.xlu0 %658
        %v660 = vsel %vm315, %v612, 0.0
        %661 = vadd.xlane.f32.xlu0 %v660
        %v662 = vpop.xlane.xlu0 %661
        %v663 = vsel %vm315, %v613, 0.0
        %664 = vadd.xlane.f32.xlu0 %v663
        %v665 = vpop.xlane.xlu0 %664
        %v666 = vsel %vm315, %v614, 0.0
        %667 = vadd.xlane.f32.xlu0 %v666
        %v668 = vpop.xlane.xlu0 %667
        %v669 = vsel %vm315, %v615, 0.0
        %670 = vadd.xlane.f32.xlu0 %v669
        %v671 = vpop.xlane.xlu0 %670
        %v672 = vsel %vm315, %v616, 0.0
        %673 = vadd.xlane.f32.xlu0 %v672
        %v674 = vpop.xlane.xlu0 %673
        %v675 = vsel %vm315, %v617, 0.0
        %676 = vadd.xlane.f32.xlu0 %v675
        %v677 = vpop.xlane.xlu0 %676
        %v678 = vsel %vm315, %v618, 0.0
        %679 = vadd.xlane.f32.xlu0 %v678
        %v680 = vpop.xlane.xlu0 %679
        %v681 = vsel %vm315, %v619, 0.0
        %682 = vadd.xlane.f32.xlu0 %v681
        %v683 = vpop.xlane.xlu0 %682
        %v684 = vsel %vm315, %v620, 0.0
        %685 = vadd.xlane.f32.xlu0 %v684
        %v686 = vpop.xlane.xlu0 %685
        %v687 = vsel %vm315, %v621, 0.0
        %688 = vadd.xlane.f32.xlu0 %v687
        %v689 = vpop.xlane.xlu0 %688
        %v690 = vsel %vm315, %v622, 0.0
        %691 = vadd.xlane.f32.xlu0 %v690
        %v692 = vpop.xlane.xlu0 %691
        %v693 = vsel %vm315, %v623, 0.0
        %694 = vadd.xlane.f32.xlu0 %v693
        %v695 = vpop.xlane.xlu0 %694
        %v696 = vsel %vm315, %v624, 0.0
        %697 = vadd.xlane.f32.xlu0 %v696
        %v698 = vpop.xlane.xlu0 %697
        %v699 = vsel %vm315, %v625, 0.0
        %700 = vadd.xlane.f32.xlu0 %v699
        %v701 = vpop.xlane.xlu0 %700
        %v702 = vsel %vm315, %v626, 0.0
        %703 = vadd.xlane.f32.xlu0 %v702
        %v704 = vpop.xlane.xlu0 %703
        %v705 = vsel %vm315, %v627, 0.0
        %706 = vadd.xlane.f32.xlu0 %v705
        %v707 = vpop.xlane.xlu0 %706
        %v708 = vsel %vm315, %v628, 0.0
        %709 = vadd.xlane.f32.xlu0 %v708
        %v710 = vpop.xlane.xlu0 %709
        %v711 = vsel %vm315, %v629, 0.0
        %712 = vadd.xlane.f32.xlu0 %v711
        %v713 = vpop.xlane.xlu0 %712
        %v714 = vsel %vm315, %v630, 0.0
        %715 = vadd.xlane.f32.xlu0 %v714
        %v716 = vpop.xlane.xlu0 %715
        %v717 = vsel %vm315, %v631, 0.0
        %718 = vadd.xlane.f32.xlu0 %v717
        %v719 = vpop.xlane.xlu0 %718
        %v720 = vsel %vm315, %v632, 0.0
        %721 = vadd.xlane.f32.xlu0 %v720
        %v722 = vpop.xlane.xlu0 %721
        %v723 = vsel %vm315, %v633, 0.0
        %724 = vadd.xlane.f32.xlu0 %v723
        %v725 = vpop.xlane.xlu0 %724
        %v726 = vsel %vm315, %v634, 0.0
        %727 = vadd.xlane.f32.xlu0 %v726
        %v728 = vpop.xlane.xlu0 %727
        %v729 = vsel %vm315, %v635, 0.0
        %730 = vadd.xlane.f32.xlu0 %v729
        %v731 = vpop.xlane.xlu0 %730
        %v732 = vmul.f32 %v638, 0.015625
        %v733 = vmul.f32 %v641, 0.015625
        %v734 = vmul.f32 %v644, 0.015625
        %v735 = vmul.f32 %v647, 0.015625
        %v736 = vmul.f32 %v650, 0.015625
        %v737 = vmul.f32 %v653, 0.015625
        %v738 = vmul.f32 %v656, 0.015625
        %v739 = vmul.f32 %v659, 0.015625
        %v740 = vmul.f32 %v662, 0.015625
        %v741 = vmul.f32 %v665, 0.015625
        %v742 = vmul.f32 %v668, 0.015625
        %v743 = vmul.f32 %v671, 0.015625
        %v744 = vmul.f32 %v674, 0.015625
        %v745 = vmul.f32 %v677, 0.015625
        %v746 = vmul.f32 %v680, 0.015625
        %v747 = vmul.f32 %v683, 0.015625
        %v748 = vmul.f32 %v686, 0.015625
        %v749 = vmul.f32 %v689, 0.015625
        %v750 = vmul.f32 %v692, 0.015625
        %v751 = vmul.f32 %v695, 0.015625
        %v752 = vmul.f32 %v698, 0.015625
        %v753 = vmul.f32 %v701, 0.015625
        %v754 = vmul.f32 %v704, 0.015625
        %v755 = vmul.f32 %v707, 0.015625
        %v756 = vmul.f32 %v710, 0.015625
        %v757 = vmul.f32 %v713, 0.015625
        %v758 = vmul.f32 %v716, 0.015625
        %v759 = vmul.f32 %v719, 0.015625
        %v760 = vmul.f32 %v722, 0.015625
        %v761 = vmul.f32 %v725, 0.015625
        %v762 = vmul.f32 %v728, 0.015625
        %v763 = vmul.f32 %v731, 0.015625
        %v764 = vlog2.pop %v732
        %v765 = vmul.f32 %v764, 0.6931472
        %v766 = vlog2.pop %v733
        %v767 = vmul.f32 %v766, 0.6931472
        %v768 = vlog2.pop %v734
        %v769 = vmul.f32 %v768, 0.6931472
        %v770 = vlog2.pop %v735
        %v771 = vmul.f32 %v770, 0.6931472
        %v772 = vlog2.pop %v736
        %v773 = vmul.f32 %v772, 0.6931472
        %v774 = vlog2.pop %v737
        %v775 = vmul.f32 %v774, 0.6931472
        %v776 = vlog2.pop %v738
        %v777 = vmul.f32 %v776, 0.6931472
        %v778 = vlog2.pop %v739
        %v779 = vmul.f32 %v778, 0.6931472
        %v780 = vlog2.pop %v740
        %v781 = vmul.f32 %v780, 0.6931472
        %v782 = vlog2.pop %v741
        %v783 = vmul.f32 %v782, 0.6931472
        %v784 = vlog2.pop %v742
        %v785 = vmul.f32 %v784, 0.6931472
        %v786 = vlog2.pop %v743
        %v787 = vmul.f32 %v786, 0.6931472
        %v788 = vlog2.pop %v744
        %v789 = vmul.f32 %v788, 0.6931472
        %v790 = vlog2.pop %v745
        %v791 = vmul.f32 %v790, 0.6931472
        %v792 = vlog2.pop %v746
        %v793 = vmul.f32 %v792, 0.6931472
        %v794 = vlog2.pop %v747
        %v795 = vmul.f32 %v794, 0.6931472
        %v796 = vlog2.pop %v748
        %v797 = vmul.f32 %v796, 0.6931472
        %v798 = vlog2.pop %v749
        %v799 = vmul.f32 %v798, 0.6931472
        %v800 = vlog2.pop %v750
        %v801 = vmul.f32 %v800, 0.6931472
        %v802 = vlog2.pop %v751
        %v803 = vmul.f32 %v802, 0.6931472
        %v804 = vlog2.pop %v752
        %v805 = vmul.f32 %v804, 0.6931472
        %v806 = vlog2.pop %v753
        %v807 = vmul.f32 %v806, 0.6931472
        %v808 = vlog2.pop %v754
        %v809 = vmul.f32 %v808, 0.6931472
        %v810 = vlog2.pop %v755
        %v811 = vmul.f32 %v810, 0.6931472
        %v812 = vlog2.pop %v756
        %v813 = vmul.f32 %v812, 0.6931472
        %v814 = vlog2.pop %v757
        %v815 = vmul.f32 %v814, 0.6931472
        %v816 = vlog2.pop %v758
        %v817 = vmul.f32 %v816, 0.6931472
        %v818 = vlog2.pop %v759
        %v819 = vmul.f32 %v818, 0.6931472
        %v820 = vlog2.pop %v760
        %v821 = vmul.f32 %v820, 0.6931472
        %v822 = vlog2.pop %v761
        %v823 = vmul.f32 %v822, 0.6931472
        %v824 = vlog2.pop %v762
        %v825 = vmul.f32 %v824, 0.6931472
        %v826 = vlog2.pop %v763
        %v827 = vmul.f32 %v826, 0.6931472
        %v828 = vmul.f32 %v765, 0.33333334
        %v829 = vmul.f32 %v767, 0.33333334
        %v830 = vmul.f32 %v769, 0.33333334
        %v831 = vmul.f32 %v771, 0.33333334
        %v832 = vmul.f32 %v773, 0.33333334
        %v833 = vmul.f32 %v775, 0.33333334
        %v834 = vmul.f32 %v777, 0.33333334
        %v835 = vmul.f32 %v779, 0.33333334
        %v836 = vmul.f32 %v781, 0.33333334
        %v837 = vmul.f32 %v783, 0.33333334
        %v838 = vmul.f32 %v785, 0.33333334
        %v839 = vmul.f32 %v787, 0.33333334
        %v840 = vmul.f32 %v789, 0.33333334
        %v841 = vmul.f32 %v791, 0.33333334
        %v842 = vmul.f32 %v793, 0.33333334
        %v843 = vmul.f32 %v795, 0.33333334
        %v844 = vmul.f32 %v797, 0.33333334
        %v845 = vmul.f32 %v799, 0.33333334
        %v846 = vmul.f32 %v801, 0.33333334
        %v847 = vmul.f32 %v803, 0.33333334
        %v848 = vmul.f32 %v805, 0.33333334
        %v849 = vmul.f32 %v807, 0.33333334
        %v850 = vmul.f32 %v809, 0.33333334
        %v851 = vmul.f32 %v811, 0.33333334
        %v852 = vmul.f32 %v813, 0.33333334
        %v853 = vmul.f32 %v815, 0.33333334
        %v854 = vmul.f32 %v817, 0.33333334
        %v855 = vmul.f32 %v819, 0.33333334
        %v856 = vmul.f32 %v821, 0.33333334
        %v857 = vmul.f32 %v823, 0.33333334
        %v858 = vmul.f32 %v825, 0.33333334
        %v859 = vmul.f32 %v827, 0.33333334
        %v860 = vmul.f32 %v828, 1.442695
        %v861 = vpow.pop %v860
        %v862 = vmul.f32 %v829, 1.442695
        %v863 = vpow.pop %v862
        %v864 = vmul.f32 %v830, 1.442695
        %v865 = vpow.pop %v864
        %v866 = vmul.f32 %v831, 1.442695
        %v867 = vpow.pop %v866
        %v868 = vmul.f32 %v832, 1.442695
        %v869 = vpow.pop %v868
        %v870 = vmul.f32 %v833, 1.442695
        %v871 = vpow.pop %v870
        %v872 = vmul.f32 %v834, 1.442695
        %v873 = vpow.pop %v872
        %v874 = vmul.f32 %v835, 1.442695
        %v875 = vpow.pop %v874
        %v876 = vmul.f32 %v836, 1.442695
        %v877 = vpow.pop %v876
        %v878 = vmul.f32 %v837, 1.442695
        %v879 = vpow.pop %v878
        %v880 = vmul.f32 %v838, 1.442695
        %v881 = vpow.pop %v880
        %v882 = vmul.f32 %v839, 1.442695
        %v883 = vpow.pop %v882
        %v884 = vmul.f32 %v840, 1.442695
        %v885 = vpow.pop %v884
        %v886 = vmul.f32 %v841, 1.442695
        %v887 = vpow.pop %v886
        %v888 = vmul.f32 %v842, 1.442695
        %v889 = vpow.pop %v888
        %v890 = vmul.f32 %v843, 1.442695
        %v891 = vpow.pop %v890
        %v892 = vmul.f32 %v844, 1.442695
        %v893 = vpow.pop %v892
        %v894 = vmul.f32 %v845, 1.442695
        %v895 = vpow.pop %v894
        %v896 = vmul.f32 %v846, 1.442695
        %v897 = vpow.pop %v896
        %v898 = vmul.f32 %v847, 1.442695
        %v899 = vpow.pop %v898
        %v900 = vmul.f32 %v848, 1.442695
        %v901 = vpow.pop %v900
        %v902 = vmul.f32 %v849, 1.442695
        %v903 = vpow.pop %v902
        %v904 = vmul.f32 %v850, 1.442695
        %v905 = vpow.pop %v904
        %v906 = vmul.f32 %v851, 1.442695
        %v907 = vpow.pop %v906
        %v908 = vmul.f32 %v852, 1.442695
        %v909 = vpow.pop %v908
        %v910 = vmul.f32 %v853, 1.442695
        %v911 = vpow.pop %v910
        %v912 = vmul.f32 %v854, 1.442695
        %v913 = vpow.pop %v912
        %v914 = vmul.f32 %v855, 1.442695
        %v915 = vpow.pop %v914
        %v916 = vmul.f32 %v856, 1.442695
        %v917 = vpow.pop %v916
        %v918 = vmul.f32 %v857, 1.442695
        %v919 = vpow.pop %v918
        %v920 = vmul.f32 %v858, 1.442695
        %v921 = vpow.pop %v920
        %v922 = vmul.f32 %v859, 1.442695
        %v923 = vpow.pop %v922
        %v924 = vld [vmem:[%s1] sm:$0xff]
        %v925 = vld [vmem:[%s1 + $0x8] sm:$0xff]
        %v926 = vld [vmem:[%s1 + $0x10] sm:$0xff]
        %v927 = vld [vmem:[%s1 + $0x18] sm:$0xff]
        %v928 = vld [vmem:[%s2] sm:$0x1]
        %v930 = vlaneseq
        %v931 = vshrl.u32 %v930, 7
        %v932 = vsub.s32 0, %v931
        %v933 = vrot.slane %v928, %v932
        %v967 = vlaneseq
        %v968 = vand.u32 %v967, 127
        %v969 = vlaneseq
        %v970 = vshrl.u32 %v969, 7
        %v971 = vsub.s32 %v968, %v970
        %v972 = vrot.slane %v412, %v971
        %v973 = vadd.s32 %v968, 4294967288
        %v974 = vlaneseq
        %v975 = vshrl.u32 %v974, 7
        %v976 = vsub.s32 %v973, %v975
        %v977 = vrot.slane %v413, %v976
        %vm978 = vcmask 130112
        %v979 = vsel %vm978, %v977, %v972
        %v980 = vadd.s32 %v968, 4294967280
        %v981 = vlaneseq
        %v982 = vshrl.u32 %v981, 7
        %v983 = vsub.s32 %v980, %v982
        %v984 = vrot.slane %v414, %v983
        %vm985 = vcmask 195712
        %v986 = vsel %vm985, %v984, %v979
        %v987 = vadd.s32 %v968, 4294967272
        %v988 = vlaneseq
        %v989 = vshrl.u32 %v988, 7
        %v990 = vsub.s32 %v987, %v989
        %v991 = vrot.slane %v415, %v990
        %vm992 = vcmask 261312
        %v993 = vsel %vm992, %v991, %v986
        %v994 = vlaneseq
        %v995 = vshrl.u32 %v994, 7
        %v996 = vsub.s32 %v968, %v995
        %v997 = vrot.slane %v416, %v996
        %v998 = vlaneseq
        %v999 = vshrl.u32 %v998, 7
        %v1000 = vsub.s32 %v973, %v999
        %v1001 = vrot.slane %v417, %v1000
        %v1002 = vsel %vm978, %v1001, %v997
        %v1003 = vlaneseq
        %v1004 = vshrl.u32 %v1003, 7
        %v1005 = vsub.s32 %v980, %v1004
        %v1006 = vrot.slane %v418, %v1005
        %v1007 = vsel %vm985, %v1006, %v1002
        %v1008 = vlaneseq
        %v1009 = vshrl.u32 %v1008, 7
        %v1010 = vsub.s32 %v987, %v1009
        %v1011 = vrot.slane %v419, %v1010
        %v1012 = vsel %vm992, %v1011, %v1007
        %v1013 = vlaneseq
        %v1014 = vshrl.u32 %v1013, 7
        %v1015 = vsub.s32 %v968, %v1014
        %v1016 = vrot.slane %v420, %v1015
        %v1017 = vlaneseq
        %v1018 = vshrl.u32 %v1017, 7
        %v1019 = vsub.s32 %v973, %v1018
        %v1020 = vrot.slane %v421, %v1019
        %v1021 = vsel %vm978, %v1020, %v1016
        %v1022 = vlaneseq
        %v1023 = vshrl.u32 %v1022, 7
        %v1024 = vsub.s32 %v980, %v1023
        %v1025 = vrot.slane %v422, %v1024
        %v1026 = vsel %vm985, %v1025, %v1021
        %v1027 = vlaneseq
        %v1028 = vshrl.u32 %v1027, 7
        %v1029 = vsub.s32 %v987, %v1028
        %v1030 = vrot.slane %v423, %v1029
        %v1031 = vsel %vm992, %v1030, %v1026
        %v1032 = vlaneseq
        %v1033 = vshrl.u32 %v1032, 7
        %v1034 = vsub.s32 %v968, %v1033
        %v1035 = vrot.slane %v424, %v1034
        %v1036 = vlaneseq
        %v1037 = vshrl.u32 %v1036, 7
        %v1038 = vsub.s32 %v973, %v1037
        %v1039 = vrot.slane %v425, %v1038
        %v1040 = vsel %vm978, %v1039, %v1035
        %v1041 = vlaneseq
        %v1042 = vshrl.u32 %v1041, 7
        %v1043 = vsub.s32 %v980, %v1042
        %v1044 = vrot.slane %v426, %v1043
        %v1045 = vsel %vm985, %v1044, %v1040
        %v1046 = vlaneseq
        %v1047 = vshrl.u32 %v1046, 7
        %v1048 = vsub.s32 %v987, %v1047
        %v1049 = vrot.slane %v427, %v1048
        %v1050 = vsel %vm992, %v1049, %v1045
        %v1051 = vlaneseq
        %v1052 = vshrl.u32 %v1051, 7
        %v1053 = vsub.s32 %v968, %v1052
        %v1054 = vrot.slane %v428, %v1053
        %v1055 = vlaneseq
        %v1056 = vshrl.u32 %v1055, 7
        %v1057 = vsub.s32 %v973, %v1056
        %v1058 = vrot.slane %v429, %v1057
        %v1059 = vsel %vm978, %v1058, %v1054
        %v1060 = vlaneseq
        %v1061 = vshrl.u32 %v1060, 7
        %v1062 = vsub.s32 %v980, %v1061
        %v1063 = vrot.slane %v430, %v1062
        %v1064 = vsel %vm985, %v1063, %v1059
        %v1065 = vlaneseq
        %v1066 = vshrl.u32 %v1065, 7
        %v1067 = vsub.s32 %v987, %v1066
        %v1068 = vrot.slane %v431, %v1067
        %v1069 = vsel %vm992, %v1068, %v1064
        %v1070 = vlaneseq
        %v1071 = vshrl.u32 %v1070, 7
        %v1072 = vsub.s32 %v968, %v1071
        %v1073 = vrot.slane %v432, %v1072
        %v1074 = vlaneseq
        %v1075 = vshrl.u32 %v1074, 7
        %v1076 = vsub.s32 %v973, %v1075
        %v1077 = vrot.slane %v433, %v1076
        %v1078 = vsel %vm978, %v1077, %v1073
        %v1079 = vlaneseq
        %v1080 = vshrl.u32 %v1079, 7
        %v1081 = vsub.s32 %v980, %v1080
        %v1082 = vrot.slane %v434, %v1081
        %v1083 = vsel %vm985, %v1082, %v1078
        %v1084 = vlaneseq
        %v1085 = vshrl.u32 %v1084, 7
        %v1086 = vsub.s32 %v987, %v1085
        %v1087 = vrot.slane %v435, %v1086
        %v1088 = vsel %vm992, %v1087, %v1083
        %v1089 = vlaneseq
        %v1090 = vshrl.u32 %v1089, 7
        %v1091 = vsub.s32 %v968, %v1090
        %v1092 = vrot.slane %v436, %v1091
        %v1093 = vlaneseq
        %v1094 = vshrl.u32 %v1093, 7
        %v1095 = vsub.s32 %v973, %v1094
        %v1096 = vrot.slane %v437, %v1095
        %v1097 = vsel %vm978, %v1096, %v1092
        %v1098 = vlaneseq
        %v1099 = vshrl.u32 %v1098, 7
        %v1100 = vsub.s32 %v980, %v1099
        %v1101 = vrot.slane %v438, %v1100
        %v1102 = vsel %vm985, %v1101, %v1097
        %v1103 = vlaneseq
        %v1104 = vshrl.u32 %v1103, 7
        %v1105 = vsub.s32 %v987, %v1104
        %v1106 = vrot.slane %v439, %v1105
        %v1107 = vsel %vm992, %v1106, %v1102
        %v1108 = vlaneseq
        %v1109 = vshrl.u32 %v1108, 7
        %v1110 = vsub.s32 %v968, %v1109
        %v1111 = vrot.slane %v440, %v1110
        %v1112 = vlaneseq
        %v1113 = vshrl.u32 %v1112, 7
        %v1114 = vsub.s32 %v973, %v1113
        %v1115 = vrot.slane %v441, %v1114
        %v1116 = vsel %vm978, %v1115, %v1111
        %v1117 = vlaneseq
        %v1118 = vshrl.u32 %v1117, 7
        %v1119 = vsub.s32 %v980, %v1118
        %v1120 = vrot.slane %v442, %v1119
        %v1121 = vsel %vm985, %v1120, %v1116
        %v1122 = vlaneseq
        %v1123 = vshrl.u32 %v1122, 7
        %v1124 = vsub.s32 %v987, %v1123
        %v1125 = vrot.slane %v443, %v1124
        %v1126 = vsel %vm992, %v1125, %v1121
        %vm1127 = vcmask 1041409
        %v1128 = vsel %vm1127, %v1012, %v993
        %vm1129 = vcmask 1042434
        %v1130 = vsel %vm1129, %v1031, %v1128
        %vm1131 = vcmask 1043459
        %v1132 = vsel %vm1131, %v1050, %v1130
        %vm1133 = vcmask 1044484
        %v1134 = vsel %vm1133, %v1069, %v1132
        %vm1135 = vcmask 1045509
        %v1136 = vsel %vm1135, %v1088, %v1134
        %vm1137 = vcmask 1046534
        %v1138 = vsel %vm1137, %v1107, %v1136
        %vm1139 = vcmask 1047559
        %v1140 = vsel %vm1139, %v1126, %v1138
        %vm1141 = vcmask 261120
        %v1142 = vsel %vm1141, %v1140, 0
        %1144 = vmatprep.subr.mxu0 0.0
        %1145 = vmatpush1.msra.mxu0 0.0
        %1146 = vmatprep.subr.mxu0 0.0
        %1147 = vmatpush1.msra.mxu0 0.0
        %1148 = vmatprep.subr.mxu0 0.0
        %1149 = vmatpush1.msra.mxu0 0.0
        %1150 = vmatprep.subr.mxu0 0.0
        %1151 = vmatpush1.msra.mxu0 0.0
        %1152 = vmatprep.subr.mxu0 0.0
        %1153 = vmatpush1.msra.mxu0 0.0
        %1154 = vmatprep.subr.mxu0 0.0
        %1155 = vmatpush1.msra.mxu0 0.0
        %1156 = vmatprep.subr.mxu0 0.0
        %1157 = vmatpush1.msra.mxu0 0.0
        %1158 = vmatprep.subr.mxu0 0.0
        %1159 = vmatpush1.msra.mxu0 0.0
        %1160 = vmatprep.subr.mxu0 0.0
        %1161 = vmatpush1.msra.mxu0 0.0
        %1162 = vmatprep.subr.mxu0 0.0
        %1163 = vmatpush1.msra.mxu0 0.0
        %1164 = vmatprep.subr.mxu0 0.0
        %1165 = vmatpush1.msra.mxu0 0.0
        %1166 = vmatprep.subr.mxu0 0.0
        %1167 = vmatpush1.msra.mxu0 0.0
        %1168 = vmatprep.subr.mxu0 0.0
        %1169 = vmatpush1.msra.mxu0 %v927
        %1170 = vmatprep.subr.mxu0 0.0
        %1171 = vmatpush1.msra.mxu0 %v926
        %1172 = vmatprep.subr.mxu0 0.0
        %1173 = vmatpush1.msra.mxu0 %v925
        %1174 = vmatprep.subr.mxu0 0.0
        %1175 = vmatpush1.msra.mxu0 %v924
        %1176 = vmatprep.subr.mxu0 0.0
        %1177 = vmatpush2.msra.mxu0 0.0
        %1178 = vmatprep.subr.mxu0 0.0
        %1179 = vmatpush2.msra.mxu0 0.0
        %1180 = vmatprep.subr.mxu0 0.0
        %1181 = vmatpush2.msra.mxu0 0.0
        %1182 = vmatprep.subr.mxu0 0.0
        %1183 = vmatpush2.msra.mxu0 0.0
        %1184 = vmatprep.subr.mxu0 0.0
        %1185 = vmatpush2.msra.mxu0 0.0
        %1186 = vmatprep.subr.mxu0 0.0
        %1187 = vmatpush2.msra.mxu0 0.0
        %1188 = vmatprep.subr.mxu0 0.0
        %1189 = vmatpush2.msra.mxu0 0.0
        %1190 = vmatprep.subr.mxu0 0.0
        %1191 = vmatpush2.msra.mxu0 0.0
        %1192 = vmatprep.subr.mxu0 0.0
        %1193 = vmatpush2.msra.mxu0 0.0
        %1194 = vmatprep.subr.mxu0 0.0
        %1195 = vmatpush2.msra.mxu0 0.0
        %1196 = vmatprep.subr.mxu0 0.0
        %1197 = vmatpush2.msra.mxu0 0.0
        %1198 = vmatprep.subr.mxu0 0.0
        %1199 = vmatpush2.msra.mxu0 0.0
        %1200 = vmatprep.subr.mxu0 0.0
        %1201 = vmatpush2.msra.mxu0 0.0
        %1202 = vmatprep.subr.mxu0 0.0
        %1203 = vmatpush2.msra.mxu0 0.0
        %1204 = vmatprep.subr.mxu0 0.0
        %1205 = vmatpush2.msra.mxu0 0.0
        %1206 = vmatprep.subr.mxu0 0.0
        %1207 = vmatpush2.msra.mxu0 0.0
        %1208 = vmatprep.mubr.f32.mxu0 0.0
        %1209 = vmatmul.mubr.f32.gmra.mxu0 %v1142
        %v1210 = vpop.f32.mrf.mxu0
        %v1211 = vadd.f32 %v933, %v1210
        %v1212 = vpop.f32.mrf.mxu0
        %1213 = vdwg.mxu0
        %v1214 = vld [vmem:[%s3] sm:$0xff]
        %v1215 = vld [vmem:[%s3 + $0x8] sm:$0xff]
        %v1216 = vld [vmem:[%s3 + $0x10] sm:$0xff]
        %v1217 = vld [vmem:[%s3 + $0x18] sm:$0xff]
        %v1250 = vlaneseq
        %v1251 = vshrl.u32 %v1250, 7
        %v1252 = vsub.s32 %v968, %v1251
        %v1253 = vrot.slane %v861, %v1252
        %v1254 = vlaneseq
        %v1255 = vshrl.u32 %v1254, 7
        %v1256 = vsub.s32 %v973, %v1255
        %v1257 = vrot.slane %v863, %v1256
        %v1258 = vsel %vm978, %v1257, %v1253
        %v1259 = vlaneseq
        %v1260 = vshrl.u32 %v1259, 7
        %v1261 = vsub.s32 %v980, %v1260
        %v1262 = vrot.slane %v865, %v1261
        %v1263 = vsel %vm985, %v1262, %v1258
        %v1264 = vlaneseq
        %v1265 = vshrl.u32 %v1264, 7
        %v1266 = vsub.s32 %v987, %v1265
        %v1267 = vrot.slane %v867, %v1266
        %v1268 = vsel %vm992, %v1267, %v1263
        %v1269 = vlaneseq
        %v1270 = vshrl.u32 %v1269, 7
        %v1271 = vsub.s32 %v968, %v1270
        %v1272 = vrot.slane %v869, %v1271
        %v1273 = vlaneseq
        %v1274 = vshrl.u32 %v1273, 7
        %v1275 = vsub.s32 %v973, %v1274
        %v1276 = vrot.slane %v871, %v1275
        %v1277 = vsel %vm978, %v1276, %v1272
        %v1278 = vlaneseq
        %v1279 = vshrl.u32 %v1278, 7
        %v1280 = vsub.s32 %v980, %v1279
        %v1281 = vrot.slane %v873, %v1280
        %v1282 = vsel %vm985, %v1281, %v1277
        %v1283 = vlaneseq
        %v1284 = vshrl.u32 %v1283, 7
        %v1285 = vsub.s32 %v987, %v1284
        %v1286 = vrot.slane %v875, %v1285
        %v1287 = vsel %vm992, %v1286, %v1282
        %v1288 = vlaneseq
        %v1289 = vshrl.u32 %v1288, 7
        %v1290 = vsub.s32 %v968, %v1289
        %v1291 = vrot.slane %v877, %v1290
        %v1292 = vlaneseq
        %v1293 = vshrl.u32 %v1292, 7
        %v1294 = vsub.s32 %v973, %v1293
        %v1295 = vrot.slane %v879, %v1294
        %v1296 = vsel %vm978, %v1295, %v1291
        %v1297 = vlaneseq
        %v1298 = vshrl.u32 %v1297, 7
        %v1299 = vsub.s32 %v980, %v1298
        %v1300 = vrot.slane %v881, %v1299
        %v1301 = vsel %vm985, %v1300, %v1296
        %v1302 = vlaneseq
        %v1303 = vshrl.u32 %v1302, 7
        %v1304 = vsub.s32 %v987, %v1303
        %v1305 = vrot.slane %v883, %v1304
        %v1306 = vsel %vm992, %v1305, %v1301
        %v1307 = vlaneseq
        %v1308 = vshrl.u32 %v1307, 7
        %v1309 = vsub.s32 %v968, %v1308
        %v1310 = vrot.slane %v885, %v1309
        %v1311 = vlaneseq
        %v1312 = vshrl.u32 %v1311, 7
        %v1313 = vsub.s32 %v973, %v1312
        %v1314 = vrot.slane %v887, %v1313
        %v1315 = vsel %vm978, %v1314, %v1310
        %v1316 = vlaneseq
        %v1317 = vshrl.u32 %v1316, 7
        %v1318 = vsub.s32 %v980, %v1317
        %v1319 = vrot.slane %v889, %v1318
        %v1320 = vsel %vm985, %v1319, %v1315
        %v1321 = vlaneseq
        %v1322 = vshrl.u32 %v1321, 7
        %v1323 = vsub.s32 %v987, %v1322
        %v1324 = vrot.slane %v891, %v1323
        %v1325 = vsel %vm992, %v1324, %v1320
        %v1326 = vlaneseq
        %v1327 = vshrl.u32 %v1326, 7
        %v1328 = vsub.s32 %v968, %v1327
        %v1329 = vrot.slane %v893, %v1328
        %v1330 = vlaneseq
        %v1331 = vshrl.u32 %v1330, 7
        %v1332 = vsub.s32 %v973, %v1331
        %v1333 = vrot.slane %v895, %v1332
        %v1334 = vsel %vm978, %v1333, %v1329
        %v1335 = vlaneseq
        %v1336 = vshrl.u32 %v1335, 7
        %v1337 = vsub.s32 %v980, %v1336
        %v1338 = vrot.slane %v897, %v1337
        %v1339 = vsel %vm985, %v1338, %v1334
        %v1340 = vlaneseq
        %v1341 = vshrl.u32 %v1340, 7
        %v1342 = vsub.s32 %v987, %v1341
        %v1343 = vrot.slane %v899, %v1342
        %v1344 = vsel %vm992, %v1343, %v1339
        %v1345 = vlaneseq
        %v1346 = vshrl.u32 %v1345, 7
        %v1347 = vsub.s32 %v968, %v1346
        %v1348 = vrot.slane %v901, %v1347
        %v1349 = vlaneseq
        %v1350 = vshrl.u32 %v1349, 7
        %v1351 = vsub.s32 %v973, %v1350
        %v1352 = vrot.slane %v903, %v1351
        %v1353 = vsel %vm978, %v1352, %v1348
        %v1354 = vlaneseq
        %v1355 = vshrl.u32 %v1354, 7
        %v1356 = vsub.s32 %v980, %v1355
        %v1357 = vrot.slane %v905, %v1356
        %v1358 = vsel %vm985, %v1357, %v1353
        %v1359 = vlaneseq
        %v1360 = vshrl.u32 %v1359, 7
        %v1361 = vsub.s32 %v987, %v1360
        %v1362 = vrot.slane %v907, %v1361
        %v1363 = vsel %vm992, %v1362, %v1358
        %v1364 = vlaneseq
        %v1365 = vshrl.u32 %v1364, 7
        %v1366 = vsub.s32 %v968, %v1365
        %v1367 = vrot.slane %v909, %v1366
        %v1368 = vlaneseq
        %v1369 = vshrl.u32 %v1368, 7
        %v1370 = vsub.s32 %v973, %v1369
        %v1371 = vrot.slane %v911, %v1370
        %v1372 = vsel %vm978, %v1371, %v1367
        %v1373 = vlaneseq
        %v1374 = vshrl.u32 %v1373, 7
        %v1375 = vsub.s32 %v980, %v1374
        %v1376 = vrot.slane %v913, %v1375
        %v1377 = vsel %vm985, %v1376, %v1372
        %v1378 = vlaneseq
        %v1379 = vshrl.u32 %v1378, 7
        %v1380 = vsub.s32 %v987, %v1379
        %v1381 = vrot.slane %v915, %v1380
        %v1382 = vsel %vm992, %v1381, %v1377
        %v1383 = vlaneseq
        %v1384 = vshrl.u32 %v1383, 7
        %v1385 = vsub.s32 %v968, %v1384
        %v1386 = vrot.slane %v917, %v1385
        %v1387 = vlaneseq
        %v1388 = vshrl.u32 %v1387, 7
        %v1389 = vsub.s32 %v973, %v1388
        %v1390 = vrot.slane %v919, %v1389
        %v1391 = vsel %vm978, %v1390, %v1386
        %v1392 = vlaneseq
        %v1393 = vshrl.u32 %v1392, 7
        %v1394 = vsub.s32 %v980, %v1393
        %v1395 = vrot.slane %v921, %v1394
        %v1396 = vsel %vm985, %v1395, %v1391
        %v1397 = vlaneseq
        %v1398 = vshrl.u32 %v1397, 7
        %v1399 = vsub.s32 %v987, %v1398
        %v1400 = vrot.slane %v923, %v1399
        %v1401 = vsel %vm992, %v1400, %v1396
        %v1402 = vsel %vm1127, %v1287, %v1268
        %v1403 = vsel %vm1129, %v1306, %v1402
        %v1404 = vsel %vm1131, %v1325, %v1403
        %v1405 = vsel %vm1133, %v1344, %v1404
        %v1406 = vsel %vm1135, %v1363, %v1405
        %v1407 = vsel %vm1137, %v1382, %v1406
        %v1408 = vsel %vm1139, %v1401, %v1407
        %v1409 = vsel %vm1141, %v1408, 0
        %1411 = vmatprep.subr.mxu0 0.0
        %1412 = vmatpush1.msra.mxu0 0.0
        %1413 = vmatprep.subr.mxu0 0.0
        %1414 = vmatpush1.msra.mxu0 0.0
        %1415 = vmatprep.subr.mxu0 0.0
        %1416 = vmatpush1.msra.mxu0 0.0
        %1417 = vmatprep.subr.mxu0 0.0
        %1418 = vmatpush1.msra.mxu0 0.0
        %1419 = vmatprep.subr.mxu0 0.0
        %1420 = vmatpush1.msra.mxu0 0.0
        %1421 = vmatprep.subr.mxu0 0.0
        %1422 = vmatpush1.msra.mxu0 0.0
        %1423 = vmatprep.subr.mxu0 0.0
        %1424 = vmatpush1.msra.mxu0 0.0
        %1425 = vmatprep.subr.mxu0 0.0
        %1426 = vmatpush1.msra.mxu0 0.0
        %1427 = vmatprep.subr.mxu0 0.0
        %1428 = vmatpush1.msra.mxu0 0.0
        %1429 = vmatprep.subr.mxu0 0.0
        %1430 = vmatpush1.msra.mxu0 0.0
        %1431 = vmatprep.subr.mxu0 0.0
        %1432 = vmatpush1.msra.mxu0 0.0
        %1433 = vmatprep.subr.mxu0 0.0
        %1434 = vmatpush1.msra.mxu0 0.0
        %1435 = vmatprep.subr.mxu0 0.0
        %1436 = vmatpush1.msra.mxu0 %v1217
        %1437 = vmatprep.subr.mxu0 0.0
        %1438 = vmatpush1.msra.mxu0 %v1216
        %1439 = vmatprep.subr.mxu0 0.0
        %1440 = vmatpush1.msra.mxu0 %v1215
        %1441 = vmatprep.subr.mxu0 0.0
        %1442 = vmatpush1.msra.mxu0 %v1214
        %1443 = vmatprep.subr.mxu0 0.0
        %1444 = vmatpush2.msra.mxu0 0.0
        %1445 = vmatprep.subr.mxu0 0.0
        %1446 = vmatpush2.msra.mxu0 0.0
        %1447 = vmatprep.subr.mxu0 0.0
        %1448 = vmatpush2.msra.mxu0 0.0
        %1449 = vmatprep.subr.mxu0 0.0
        %1450 = vmatpush2.msra.mxu0 0.0
        %1451 = vmatprep.subr.mxu0 0.0
        %1452 = vmatpush2.msra.mxu0 0.0
        %1453 = vmatprep.subr.mxu0 0.0
        %1454 = vmatpush2.msra.mxu0 0.0
        %1455 = vmatprep.subr.mxu0 0.0
        %1456 = vmatpush2.msra.mxu0 0.0
        %1457 = vmatprep.subr.mxu0 0.0
        %1458 = vmatpush2.msra.mxu0 0.0
        %1459 = vmatprep.subr.mxu0 0.0
        %1460 = vmatpush2.msra.mxu0 0.0
        %1461 = vmatprep.subr.mxu0 0.0
        %1462 = vmatpush2.msra.mxu0 0.0
        %1463 = vmatprep.subr.mxu0 0.0
        %1464 = vmatpush2.msra.mxu0 0.0
        %1465 = vmatprep.subr.mxu0 0.0
        %1466 = vmatpush2.msra.mxu0 0.0
        %1467 = vmatprep.subr.mxu0 0.0
        %1468 = vmatpush2.msra.mxu0 0.0
        %1469 = vmatprep.subr.mxu0 0.0
        %1470 = vmatpush2.msra.mxu0 0.0
        %1471 = vmatprep.subr.mxu0 0.0
        %1472 = vmatpush2.msra.mxu0 0.0
        %1473 = vmatprep.subr.mxu0 0.0
        %1474 = vmatpush2.msra.mxu0 0.0
        %1475 = vmatprep.mubr.f32.mxu0 0.0
        %1476 = vmatmul.mubr.f32.gmra.mxu0 %v1409
        %v1477 = vpop.f32.mrf.mxu0
        %v1478 = vadd.f32 0.0, %v1477
        %v1479 = vpop.f32.mrf.mxu0
        %1480 = vdwg.mxu0
        %v1481 = vmul.f32 %v1478, %v1478
        %vm1482 = vcmask 64512
        %v1483 = vsel %vm1482, %v1481, 0.0
        %1484 = vadd.xlane.f32.xlu0 %v1483
        %v1485 = vpop.xlane.xlu0 %1484
        %v1486 = vmax.f32 %v1485, 1e-24
        %v1487 = vrsqrt.pop %v1486
        %v1488 = vmul.f32 %v1478, %v1487
        %v1489 = vld [vmem:[%s4] sm:$0xff]
        %v1490 = vld [vmem:[%s4 + $0x8] sm:$0xff]
        %v1491 = vld [vmem:[%s4 + $0x10] sm:$0xff]
        %v1492 = vld [vmem:[%s4 + $0x18] sm:$0xff]
        %v1525 = vlaneseq
        %v1526 = vshrl.u32 %v1525, 7
        %v1527 = vsub.s32 %v968, %v1526
        %v1528 = vrot.slane %v446, %v1527
        %v1529 = vlaneseq
        %v1530 = vshrl.u32 %v1529, 7
        %v1531 = vsub.s32 %v973, %v1530
        %v1532 = vrot.slane %v449, %v1531
        %v1533 = vsel %vm978, %v1532, %v1528
        %v1534 = vlaneseq
        %v1535 = vshrl.u32 %v1534, 7
        %v1536 = vsub.s32 %v980, %v1535
        %v1537 = vrot.slane %v452, %v1536
        %v1538 = vsel %vm985, %v1537, %v1533
        %v1539 = vlaneseq
        %v1540 = vshrl.u32 %v1539, 7
        %v1541 = vsub.s32 %v987, %v1540
        %v1542 = vrot.slane %v455, %v1541
        %v1543 = vsel %vm992, %v1542, %v1538
        %v1544 = vlaneseq
        %v1545 = vshrl.u32 %v1544, 7
        %v1546 = vsub.s32 %v968, %v1545
        %v1547 = vrot.slane %v458, %v1546
        %v1548 = vlaneseq
        %v1549 = vshrl.u32 %v1548, 7
        %v1550 = vsub.s32 %v973, %v1549
        %v1551 = vrot.slane %v461, %v1550
        %v1552 = vsel %vm978, %v1551, %v1547
        %v1553 = vlaneseq
        %v1554 = vshrl.u32 %v1553, 7
        %v1555 = vsub.s32 %v980, %v1554
        %v1556 = vrot.slane %v464, %v1555
        %v1557 = vsel %vm985, %v1556, %v1552
        %v1558 = vlaneseq
        %v1559 = vshrl.u32 %v1558, 7
        %v1560 = vsub.s32 %v987, %v1559
        %v1561 = vrot.slane %v467, %v1560
        %v1562 = vsel %vm992, %v1561, %v1557
        %v1563 = vlaneseq
        %v1564 = vshrl.u32 %v1563, 7
        %v1565 = vsub.s32 %v968, %v1564
        %v1566 = vrot.slane %v470, %v1565
        %v1567 = vlaneseq
        %v1568 = vshrl.u32 %v1567, 7
        %v1569 = vsub.s32 %v973, %v1568
        %v1570 = vrot.slane %v473, %v1569
        %v1571 = vsel %vm978, %v1570, %v1566
        %v1572 = vlaneseq
        %v1573 = vshrl.u32 %v1572, 7
        %v1574 = vsub.s32 %v980, %v1573
        %v1575 = vrot.slane %v476, %v1574
        %v1576 = vsel %vm985, %v1575, %v1571
        %v1577 = vlaneseq
        %v1578 = vshrl.u32 %v1577, 7
        %v1579 = vsub.s32 %v987, %v1578
        %v1580 = vrot.slane %v479, %v1579
        %v1581 = vsel %vm992, %v1580, %v1576
        %v1582 = vlaneseq
        %v1583 = vshrl.u32 %v1582, 7
        %v1584 = vsub.s32 %v968, %v1583
        %v1585 = vrot.slane %v482, %v1584
        %v1586 = vlaneseq
        %v1587 = vshrl.u32 %v1586, 7
        %v1588 = vsub.s32 %v973, %v1587
        %v1589 = vrot.slane %v485, %v1588
        %v1590 = vsel %vm978, %v1589, %v1585
        %v1591 = vlaneseq
        %v1592 = vshrl.u32 %v1591, 7
        %v1593 = vsub.s32 %v980, %v1592
        %v1594 = vrot.slane %v488, %v1593
        %v1595 = vsel %vm985, %v1594, %v1590
        %v1596 = vlaneseq
        %v1597 = vshrl.u32 %v1596, 7
        %v1598 = vsub.s32 %v987, %v1597
        %v1599 = vrot.slane %v491, %v1598
        %v1600 = vsel %vm992, %v1599, %v1595
        %v1601 = vlaneseq
        %v1602 = vshrl.u32 %v1601, 7
        %v1603 = vsub.s32 %v968, %v1602
        %v1604 = vrot.slane %v494, %v1603
        %v1605 = vlaneseq
        %v1606 = vshrl.u32 %v1605, 7
        %v1607 = vsub.s32 %v973, %v1606
        %v1608 = vrot.slane %v497, %v1607
        %v1609 = vsel %vm978, %v1608, %v1604
        %v1610 = vlaneseq
        %v1611 = vshrl.u32 %v1610, 7
        %v1612 = vsub.s32 %v980, %v1611
        %v1613 = vrot.slane %v500, %v1612
        %v1614 = vsel %vm985, %v1613, %v1609
        %v1615 = vlaneseq
        %v1616 = vshrl.u32 %v1615, 7
        %v1617 = vsub.s32 %v987, %v1616
        %v1618 = vrot.slane %v503, %v1617
        %v1619 = vsel %vm992, %v1618, %v1614
        %v1620 = vlaneseq
        %v1621 = vshrl.u32 %v1620, 7
        %v1622 = vsub.s32 %v968, %v1621
        %v1623 = vrot.slane %v506, %v1622
        %v1624 = vlaneseq
        %v1625 = vshrl.u32 %v1624, 7
        %v1626 = vsub.s32 %v973, %v1625
        %v1627 = vrot.slane %v509, %v1626
        %v1628 = vsel %vm978, %v1627, %v1623
        %v1629 = vlaneseq
        %v1630 = vshrl.u32 %v1629, 7
        %v1631 = vsub.s32 %v980, %v1630
        %v1632 = vrot.slane %v512, %v1631
        %v1633 = vsel %vm985, %v1632, %v1628
        %v1634 = vlaneseq
        %v1635 = vshrl.u32 %v1634, 7
        %v1636 = vsub.s32 %v987, %v1635
        %v1637 = vrot.slane %v515, %v1636
        %v1638 = vsel %vm992, %v1637, %v1633
        %v1639 = vlaneseq
        %v1640 = vshrl.u32 %v1639, 7
        %v1641 = vsub.s32 %v968, %v1640
        %v1642 = vrot.slane %v518, %v1641
        %v1643 = vlaneseq
        %v1644 = vshrl.u32 %v1643, 7
        %v1645 = vsub.s32 %v973, %v1644
        %v1646 = vrot.slane %v521, %v1645
        %v1647 = vsel %vm978, %v1646, %v1642
        %v1648 = vlaneseq
        %v1649 = vshrl.u32 %v1648, 7
        %v1650 = vsub.s32 %v980, %v1649
        %v1651 = vrot.slane %v524, %v1650
        %v1652 = vsel %vm985, %v1651, %v1647
        %v1653 = vlaneseq
        %v1654 = vshrl.u32 %v1653, 7
        %v1655 = vsub.s32 %v987, %v1654
        %v1656 = vrot.slane %v527, %v1655
        %v1657 = vsel %vm992, %v1656, %v1652
        %v1658 = vlaneseq
        %v1659 = vshrl.u32 %v1658, 7
        %v1660 = vsub.s32 %v968, %v1659
        %v1661 = vrot.slane %v530, %v1660
        %v1662 = vlaneseq
        %v1663 = vshrl.u32 %v1662, 7
        %v1664 = vsub.s32 %v973, %v1663
        %v1665 = vrot.slane %v533, %v1664
        %v1666 = vsel %vm978, %v1665, %v1661
        %v1667 = vlaneseq
        %v1668 = vshrl.u32 %v1667, 7
        %v1669 = vsub.s32 %v980, %v1668
        %v1670 = vrot.slane %v536, %v1669
        %v1671 = vsel %vm985, %v1670, %v1666
        %v1672 = vlaneseq
        %v1673 = vshrl.u32 %v1672, 7
        %v1674 = vsub.s32 %v987, %v1673
        %v1675 = vrot.slane %v539, %v1674
        %v1676 = vsel %vm992, %v1675, %v1671
        %v1677 = vsel %vm1127, %v1562, %v1543
        %v1678 = vsel %vm1129, %v1581, %v1677
        %v1679 = vsel %vm1131, %v1600, %v1678
        %v1680 = vsel %vm1133, %v1619, %v1679
        %v1681 = vsel %vm1135, %v1638, %v1680
        %v1682 = vsel %vm1137, %v1657, %v1681
        %v1683 = vsel %vm1139, %v1676, %v1682
        %v1684 = vsel %vm1141, %v1683, 0
        %1686 = vmatprep.subr.mxu0 0.0
        %1687 = vmatpush1.msra.mxu0 0.0
        %1688 = vmatprep.subr.mxu0 0.0
        %1689 = vmatpush1.msra.mxu0 0.0
        %1690 = vmatprep.subr.mxu0 0.0
        %1691 = vmatpush1.msra.mxu0 0.0
        %1692 = vmatprep.subr.mxu0 0.0
        %1693 = vmatpush1.msra.mxu0 0.0
        %1694 = vmatprep.subr.mxu0 0.0
        %1695 = vmatpush1.msra.mxu0 0.0
        %1696 = vmatprep.subr.mxu0 0.0
        %1697 = vmatpush1.msra.mxu0 0.0
        %1698 = vmatprep.subr.mxu0 0.0
        %1699 = vmatpush1.msra.mxu0 0.0
        %1700 = vmatprep.subr.mxu0 0.0
        %1701 = vmatpush1.msra.mxu0 0.0
        %1702 = vmatprep.subr.mxu0 0.0
        %1703 = vmatpush1.msra.mxu0 0.0
        %1704 = vmatprep.subr.mxu0 0.0
        %1705 = vmatpush1.msra.mxu0 0.0
        %1706 = vmatprep.subr.mxu0 0.0
        %1707 = vmatpush1.msra.mxu0 0.0
        %1708 = vmatprep.subr.mxu0 0.0
        %1709 = vmatpush1.msra.mxu0 0.0
        %1710 = vmatprep.subr.mxu0 0.0
        %1711 = vmatpush1.msra.mxu0 %v1492
        %1712 = vmatprep.subr.mxu0 0.0
        %1713 = vmatpush1.msra.mxu0 %v1491
        %1714 = vmatprep.subr.mxu0 0.0
        %1715 = vmatpush1.msra.mxu0 %v1490
        %1716 = vmatprep.subr.mxu0 0.0
        %1717 = vmatpush1.msra.mxu0 %v1489
        %1718 = vmatprep.subr.mxu0 0.0
        %1719 = vmatpush2.msra.mxu0 0.0
        %1720 = vmatprep.subr.mxu0 0.0
        %1721 = vmatpush2.msra.mxu0 0.0
        %1722 = vmatprep.subr.mxu0 0.0
        %1723 = vmatpush2.msra.mxu0 0.0
        %1724 = vmatprep.subr.mxu0 0.0
        %1725 = vmatpush2.msra.mxu0 0.0
        %1726 = vmatprep.subr.mxu0 0.0
        %1727 = vmatpush2.msra.mxu0 0.0
        %1728 = vmatprep.subr.mxu0 0.0
        %1729 = vmatpush2.msra.mxu0 0.0
        %1730 = vmatprep.subr.mxu0 0.0
        %1731 = vmatpush2.msra.mxu0 0.0
        %1732 = vmatprep.subr.mxu0 0.0
        %1733 = vmatpush2.msra.mxu0 0.0
        %1734 = vmatprep.subr.mxu0 0.0
        %1735 = vmatpush2.msra.mxu0 0.0
        %1736 = vmatprep.subr.mxu0 0.0
        %1737 = vmatpush2.msra.mxu0 0.0
        %1738 = vmatprep.subr.mxu0 0.0
        %1739 = vmatpush2.msra.mxu0 0.0
        %1740 = vmatprep.subr.mxu0 0.0
        %1741 = vmatpush2.msra.mxu0 0.0
        %1742 = vmatprep.subr.mxu0 0.0
        %1743 = vmatpush2.msra.mxu0 0.0
        %1744 = vmatprep.subr.mxu0 0.0
        %1745 = vmatpush2.msra.mxu0 0.0
        %1746 = vmatprep.subr.mxu0 0.0
        %1747 = vmatpush2.msra.mxu0 0.0
        %1748 = vmatprep.subr.mxu0 0.0
        %1749 = vmatpush2.msra.mxu0 0.0
        %1750 = vmatprep.mubr.f32.mxu0 0.0
        %1751 = vmatmul.mubr.f32.gmra.mxu0 %v1684
        %v1752 = vpop.f32.mrf.mxu0
        %v1753 = vadd.f32 0.0, %v1752
        %v1754 = vpop.f32.mrf.mxu0
        %1755 = vdwg.mxu0
        %v1756 = vmul.f32 %v1753, %v1753
        %v1757 = vsel %vm1482, %v1756, 0.0
        %1758 = vadd.xlane.f32.xlu0 %v1757
        %v1759 = vpop.xlane.xlu0 %1758
        %v1760 = vmax.f32 %v1759, 1e-24
        %v1761 = vrsqrt.pop %v1760
        %v1762 = vmul.f32 %v1753, %v1761
        %1763 = vst.msk [vmem:[%s274] sm:$0xff] %vm1482, %v1488
        %1765 = vrot.lane.b32.xlu0 %v1762, 8
        %v1766 = vpop.permute.xlu0 %1765
        %1768 = vst.msk [vmem:[%s274] sm:$0xff] %vm978, %v1766
        %vm1769 = vcmask 130048
        %1770 = vst.msk [vmem:[%s281] sm:$0xff] %vm1769, %v1211
        %s1771 = sand.u32 %s145, 1
        %s1772 = scalar_lea.sflag [#allocation4], %s1771
        %s1773 = sand.u32 %s145, 1
        %s1774 = smul.addr %s1773, 8
        %s1775 = scalar_lea.vmem [#allocation5], %s1774
        %s1776 = sand.u32 %s171, 1
        %s1777 = scalar_lea.sflag [#allocation7], %s1776
        %s1778 = sand.u32 %s171, 1
        %s1779 = smul.addr %s1778, 8
        %s1780 = scalar_lea.vmem [#allocation6], %s1779
        // Predicated region
        $region45: #{tpu_custom_call.1} parent=39 // pred_check
          %p1781 = pneg %p155
        $region46: #{tpu_custom_call.1} parent=39 // pred_check_branch
          %1783 = sbr.rel (%p1781) target = $region48
        $region47: #{tpu_custom_call.1} parent=39 // pred_region
          %s1785 = ssub.s32 128, 128
          %1786 = vsyncadd %s1772, %s1785
          %s1787 = smul.addr %s27, 128
          %s1788 = scalar_lea.hbm %s5, %s1787
          %s1790 = sshll.u32 %s1775, 4
          %s1791 = int_to_ptr.vmem [resolvable:$true] %s1790
          %1793 = dma.vmem_to_hbm [thread:$0]  %s1791, 128, %s1788, %s1772
        $region48: #{tpu_custom_call.1} parent=39 // pred_fallthru
          _
        // Predicated region
        $region49: #{tpu_custom_call.1} parent=39 // pred_check
          %p1794 = pneg %p181
        $region50: #{tpu_custom_call.1} parent=39 // pred_check_branch
          %1796 = sbr.rel (%p1794) target = $region52
        $region51: #{tpu_custom_call.1} parent=39 // pred_region
          %s1798 = ssub.s32 128, 128
          %1799 = vsyncadd %s1777, %s1798
          %s1800 = smul.addr %s27, 128
          %s1801 = scalar_lea.hbm %s6, %s1800
          %s1803 = sshll.u32 %s1780, 4
          %s1804 = int_to_ptr.vmem [resolvable:$true] %s1803
          %1806 = dma.vmem_to_hbm [thread:$0]  %s1804, 128, %s1801, %s1777
        $region52: #{tpu_custom_call.1} parent=39 // pred_fallthru
          _
      $region40: #{tpu_custom_call.1} parent=5 // pred_fallthru
        _
      %p1807 = scmp.le.s32.totalorder 2, %s22
      // Predicated region
      $region53: #{tpu_custom_call.1} parent=5 // pred_check
        %p1808 = pneg %p1807
      $region54: #{tpu_custom_call.1} parent=5 // pred_check_branch
        %1810 = sbr.rel (%p1808) target = $region56
      $region55: #{tpu_custom_call.1} parent=5 // pred_region
        %s1811 = ssub.s32 %s22, 2
        // Predicated region
        $region57: #{tpu_custom_call.1} parent=55 // pred_check
          %p1812 = pneg %p161
        $region58: #{tpu_custom_call.1} parent=55 // pred_check_branch
          %1814 = sbr.rel (%p1812) target = $region60
        $region59: #{tpu_custom_call.1} parent=55 // pred_region
          %s1815 = sand.u32 %s146, 1
          %s1816 = scalar_lea.sflag [#allocation4], %s1815
          %s1817 = sand.u32 %s146, 1
          %s1818 = smul.addr %s1817, 8
          %s1819 = scalar_lea.vmem [#allocation5], %s1818
          %1820 = dma.done %s1816, 128
        $region60: #{tpu_custom_call.1} parent=55 // pred_fallthru
          _
        // Predicated region
        $region61: #{tpu_custom_call.1} parent=55 // pred_check
          %p1821 = pneg %p187
        $region62: #{tpu_custom_call.1} parent=55 // pred_check_branch
          %1823 = sbr.rel (%p1821) target = $region64
        $region63: #{tpu_custom_call.1} parent=55 // pred_region
          %s1824 = sand.u32 %s172, 1
          %s1825 = scalar_lea.sflag [#allocation7], %s1824
          %s1826 = sand.u32 %s172, 1
          %s1827 = smul.addr %s1826, 8
          %s1828 = scalar_lea.vmem [#allocation6], %s1827
          %1829 = dma.done %s1825, 128
        $region64: #{tpu_custom_call.1} parent=55 // pred_fallthru
          _
      $region56: #{tpu_custom_call.1} parent=5 // pred_fallthru
        _
    $region6: #{tpu_custom_call.1} parent=1 // loop_footer
      %s26 = sadd.s32 1, %s22
    $region7: #{tpu_custom_call.1} parent=1 // loop_footer_branch
      %21 = sbr.rel target = $region3
    $region8: #{tpu_custom_call.1} parent=1 // loop_exit
      _
    %1830 = vsyncpa [#allocation3], 1
    %s1831 = scalar_lea.sflag [#allocation3], 1
    %1832 = vsyncpa %s1831, 1
    %1833 = vsyncpa [#allocation4], 1
    %s1834 = scalar_lea.sflag [#allocation4], 1
    %1835 = vsyncpa %s1834, 1
    %1836 = vsyncpa [#allocation7], 1
    %s1837 = scalar_lea.sflag [#allocation7], 1
    %1838 = vsyncpa %s1837, 1

</llo_original>
